<compile_context>
chip_gen: v7x
topology: tpu7x:2x2x1
jax: 0.10.0
libtpu: 0.0.40
codegen_flags: <defaults>
</compile_context>

<pallas_src>
import jax
import jax.numpy as jnp
from jax import lax
from jax.experimental import pallas as pl
from jax.experimental.pallas import tpu as pltpu

LANE = 128  # TPU vreg lane width; batch tile kept a multiple of this.


def mlp_kernel(x_ref, w1t_ref, b1_ref, w2t_ref, b2_ref, w3t_ref, b3_ref, o_ref):
    # Natural (batch, feature) layout throughout; weights are pre-transposed to (in, out)
    # in the wrapper so every dot is the default contraction straight onto the MXU.
    hp = lax.Precision.HIGHEST
    x = x_ref[...]                                                       # (tile_b, in_dim)
    h1 = jnp.dot(x, w1t_ref[...], preferred_element_type=jnp.float32,
                 precision=hp) + b1_ref[...]
    h1 = jnp.maximum(h1, 0.0)                                            # (tile_b, 64) f32 VPU
    h2 = jnp.dot(h1, w2t_ref[...], preferred_element_type=jnp.float32,
                 precision=hp) + b2_ref[...]
    h2 = jnp.maximum(h2, 0.0)                                            # (tile_b, 32)
    o = jnp.dot(h2, w3t_ref[...], preferred_element_type=jnp.float32,
                precision=hp) + b3_ref[...]
    o_ref[...] = o.astype(o_ref.dtype)                                   # (tile_b, 16)


def transaction_encoder(x, params, *, tile_b=2048):
    """x: (B, input_dim) float32. params: PyTorch-layout weights (out, in), biases (out,)."""
    B, in_dim = x.shape
    w1, b1 = params["w1"], params["b1"]
    w2, b2 = params["w2"], params["b2"]
    w3, b3 = params["w3"], params["b3"]
    h1_dim, h2_dim, out_dim = w1.shape[0], w2.shape[0], w3.shape[0]

    # Tiny layout plumbing (a few KB, once per call) -- the big (B-sized) transposes are gone.
    w1t, w2t, w3t = w1.T, w2.T, w3.T                                     # (in, out) layout
    b1r = b1.reshape(1, h1_dim)
    b2r = b2.reshape(1, h2_dim)
    b3r = b3.reshape(1, out_dim)

    # Batch tile: multiple of 128 so batch-on-sublane blocks and in-kernel vregs stay aligned.
    tile_b = max(LANE, (tile_b // LANE) * LANE)
    bp_lane = pl.cdiv(B, LANE) * LANE
    tile_b = min(tile_b, bp_lane)
    # Prefer >= 2 grid steps so the "parallel" axis shards over v7x's two TensorCores.
    if bp_lane >= 2 * LANE and bp_lane <= tile_b:
        tile_b = max(LANE, ((bp_lane // 2) // LANE) * LANE)
    Bp = pl.cdiv(B, tile_b) * tile_b
    grid = (Bp // tile_b,)

    # Batch-only zero padding (no transpose); padded rows carry bias garbage and are trimmed off.
    x_p = jnp.pad(x, ((0, Bp - B), (0, 0))) if Bp != B else x

    full = lambda a: pl.BlockSpec(a.shape, lambda i: (0, 0))             # weights/biases resident

    cost = pl.CostEstimate(
        flops=2 * B * (in_dim * h1_dim + h1_dim * h2_dim + h2_dim * out_dim),
        transcendentals=0,
        bytes_accessed=B * (in_dim + out_dim) * 4
        + sum(int(p.size) * 4 for p in (w1, b1, w2, b2, w3, b3)),
    )

    out = pl.pallas_call(
        mlp_kernel,
        out_shape=jax.ShapeDtypeStruct((Bp, out_dim), x.dtype),
        grid_spec=pl.GridSpec(
            grid=grid,
            in_specs=[
                pl.BlockSpec((tile_b, in_dim), lambda i: (i, 0)),        # x batch tile
                full(w1t), full(b1r),
                full(w2t), full(b2r),
                full(w3t), full(b3r),
            ],
            out_specs=pl.BlockSpec((tile_b, out_dim), lambda i: (i, 0)),
        ),
        compiler_params=pltpu.CompilerParams(
            dimension_semantics=("parallel",),                           # shards over v7x's 2 TCs
        ),
        cost_estimate=cost,
    )(x_p, w1t, b1r, w2t, b2r, w3t, b3r)

    # Drop batch padding only (row slice, no transpose); result is (B, out_dim) like PyTorch.
    return out[:B] if Bp != B else out


def init_params(key, input_dim=5, hidden_dim=64):
    """Deterministic PyTorch-style init: U(-1/sqrt(fan_in), 1/sqrt(fan_in)).
    Weights in PyTorch (out_features, in_features) layout; biases as (out,)."""
    dims = [(input_dim, hidden_dim),
            (hidden_dim, hidden_dim // 2),
            (hidden_dim // 2, hidden_dim // 4)]
    params = {}
    for idx, (fan_in, fan_out) in enumerate(dims, start=1):
        key, kw, kb = jax.random.split(key, 3)
        bound = 1.0 / jnp.sqrt(float(fan_in))
        params[f"w{idx}"] = jax.random.uniform(
            kw, (fan_out, fan_in), jnp.float32, -bound, bound)
        params[f"b{idx}"] = jax.random.uniform(
            kb, (fan_out,), jnp.float32, -bound, bound)
    return params


def reference(x, params):
    hp = lax.Precision.HIGHEST
    h = jnp.maximum(jnp.dot(x, params["w1"].T, precision=hp) + params["b1"], 0.0)
    h = jnp.maximum(jnp.dot(h, params["w2"].T, precision=hp) + params["b2"], 0.0)
    return jnp.dot(h, params["w3"].T, precision=hp) + params["b3"]


if __name__ == "__main__":
    key = jax.random.PRNGKey(0)
    key, kx = jax.random.split(key)

    batch, input_dim, hidden_dim = 16, 5, 64
    x = jax.random.normal(kx, (batch, input_dim), jnp.float32)
    params = init_params(key, input_dim=input_dim, hidden_dim=hidden_dim)

    out = transaction_encoder(x, params)
    out = jax.block_until_ready(out)

    ref = reference(x, params)
    assert out.shape == (batch, hidden_dim // 4), out.shape
    assert jnp.allclose(out, ref, atol=1e-5, rtol=1e-5), "mismatch vs reference"

    print("KERNEL_OK")
</pallas_src>

<mosaic_0001>
module attributes {stable_mosaic.version = 11 : i64} {
  func.func @mlp_kernel(%arg0: i32, %arg1: memref<128x5xf32, #tpu.memory_space<vmem>>, %arg2: memref<5x64xf32, #tpu.memory_space<vmem>>, %arg3: memref<1x64xf32, #tpu.memory_space<vmem>>, %arg4: memref<64x32xf32, #tpu.memory_space<vmem>>, %arg5: memref<1x32xf32, #tpu.memory_space<vmem>>, %arg6: memref<32x16xf32, #tpu.memory_space<vmem>>, %arg7: memref<1x16xf32, #tpu.memory_space<vmem>>, %arg8: memref<128x16xf32, #tpu.memory_space<vmem>>) attributes {dimension_semantics = [#tpu.dimension_semantics<parallel>], iteration_bounds = array<i64: 1>, scalar_prefetch = 0 : i64, scratch_operands = 0 : i64, tpu.core_type = #tpu.core_type<tc>, window_params = [{transform_indices = @transform_0, window_bounds = array<i64: 128, 5>}, {pipeline_mode = #tpu.pipeline_mode<synchronous>, transform_indices = @transform_1, window_bounds = array<i64: 5, 64>}, {pipeline_mode = #tpu.pipeline_mode<synchronous>, transform_indices = @transform_2, window_bounds = array<i64: 1, 64>}, {pipeline_mode = #tpu.pipeline_mode<synchronous>, transform_indices = @transform_3, window_bounds = array<i64: 64, 32>}, {pipeline_mode = #tpu.pipeline_mode<synchronous>, transform_indices = @transform_4, window_bounds = array<i64: 1, 32>}, {pipeline_mode = #tpu.pipeline_mode<synchronous>, transform_indices = @transform_5, window_bounds = array<i64: 32, 16>}, {pipeline_mode = #tpu.pipeline_mode<synchronous>, transform_indices = @transform_6, window_bounds = array<i64: 1, 16>}, {transform_indices = @transform_7, window_bounds = array<i64: 128, 16>}]} {
    %c0 = arith.constant 0 : index
    %c0_0 = arith.constant 0 : index
    %0 = vector.load %arg1[%c0, %c0_0] : memref<128x5xf32, #tpu.memory_space<vmem>>, vector<128x5xf32>
    %c0_1 = arith.constant 0 : index
    %c0_2 = arith.constant 0 : index
    %1 = vector.load %arg2[%c0_1, %c0_2] : memref<5x64xf32, #tpu.memory_space<vmem>>, vector<5x64xf32>
    %cst = arith.constant dense<0.000000e+00> : vector<128x64xf32>
    %2 = tpu.matmul %0, %1, %cst {dimension_numbers = #tpu.dot_dimension_numbers<[1], [0], [0], [1], [0, 0, 1, 1], [], []>, precision = #tpu.contract_precision<fp32>} : vector<128x5xf32>, vector<5x64xf32>, vector<128x64xf32> -> vector<128x64xf32>
    %c0_3 = arith.constant 0 : index
    %c0_4 = arith.constant 0 : index
    %3 = vector.load %arg3[%c0_3, %c0_4] : memref<1x64xf32, #tpu.memory_space<vmem>>, vector<1x64xf32>
    %4 = vector.broadcast %3 : vector<1x64xf32> to vector<128x64xf32>
    %5 = arith.addf %2, %4 : vector<128x64xf32>
    %cst_5 = arith.constant 0.000000e+00 : f32
    %6 = vector.broadcast %cst_5 : f32 to vector<128x64xf32>
    %7 = arith.maximumf %5, %6 : vector<128x64xf32>
    %c0_6 = arith.constant 0 : index
    %c0_7 = arith.constant 0 : index
    %8 = vector.load %arg4[%c0_6, %c0_7] : memref<64x32xf32, #tpu.memory_space<vmem>>, vector<64x32xf32>
    %cst_8 = arith.constant dense<0.000000e+00> : vector<128x32xf32>
    %9 = tpu.matmul %7, %8, %cst_8 {dimension_numbers = #tpu.dot_dimension_numbers<[1], [0], [0], [1], [0, 0, 1, 1], [], []>, precision = #tpu.contract_precision<fp32>} : vector<128x64xf32>, vector<64x32xf32>, vector<128x32xf32> -> vector<128x32xf32>
    %c0_9 = arith.constant 0 : index
    %c0_10 = arith.constant 0 : index
    %10 = vector.load %arg5[%c0_9, %c0_10] : memref<1x32xf32, #tpu.memory_space<vmem>>, vector<1x32xf32>
    %11 = vector.broadcast %10 : vector<1x32xf32> to vector<128x32xf32>
    %12 = arith.addf %9, %11 : vector<128x32xf32>
    %cst_11 = arith.constant 0.000000e+00 : f32
    %13 = vector.broadcast %cst_11 : f32 to vector<128x32xf32>
    %14 = arith.maximumf %12, %13 : vector<128x32xf32>
    %c0_12 = arith.constant 0 : index
    %c0_13 = arith.constant 0 : index
    %15 = vector.load %arg6[%c0_12, %c0_13] : memref<32x16xf32, #tpu.memory_space<vmem>>, vector<32x16xf32>
    %cst_14 = arith.constant dense<0.000000e+00> : vector<128x16xf32>
    %16 = tpu.matmul %14, %15, %cst_14 {dimension_numbers = #tpu.dot_dimension_numbers<[1], [0], [0], [1], [0, 0, 1, 1], [], []>, precision = #tpu.contract_precision<fp32>} : vector<128x32xf32>, vector<32x16xf32>, vector<128x16xf32> -> vector<128x16xf32>
    %c0_15 = arith.constant 0 : index
    %c0_16 = arith.constant 0 : index
    %17 = vector.load %arg7[%c0_15, %c0_16] : memref<1x16xf32, #tpu.memory_space<vmem>>, vector<1x16xf32>
    %18 = vector.broadcast %17 : vector<1x16xf32> to vector<128x16xf32>
    %19 = arith.addf %16, %18 : vector<128x16xf32>
    %c0_17 = arith.constant 0 : index
    %c0_18 = arith.constant 0 : index
    %20 = vector.load %arg8[%c0_17, %c0_18] : memref<128x16xf32, #tpu.memory_space<vmem>>, vector<128x16xf32>
    tpu.vector_store %arg8[%c0_17, %c0_18], %19 {strides = array<i32>} : memref<128x16xf32, #tpu.memory_space<vmem>>, vector<128x16xf32>,
    return
  }
  func.func @transform_0(%arg0: i32) -> (i32, i32) {
    %c0_i32 = arith.constant 0 : i32
    %c0_i32_0 = arith.constant 0 : i32
    return %arg0, %c0_i32 : i32, i32
  }
  func.func @transform_1(%arg0: i32) -> (i32, i32) {
    %c0_i32 = arith.constant 0 : i32
    %c0_i32_0 = arith.constant 0 : i32
    %c0_i32_1 = arith.constant 0 : i32
    return %c0_i32, %c0_i32_0 : i32, i32
  }
  func.func @transform_2(%arg0: i32) -> (i32, i32) {
    %c0_i32 = arith.constant 0 : i32
    %c0_i32_0 = arith.constant 0 : i32
    %c0_i32_1 = arith.constant 0 : i32
    return %c0_i32, %c0_i32_0 : i32, i32
  }
  func.func @transform_3(%arg0: i32) -> (i32, i32) {
    %c0_i32 = arith.constant 0 : i32
    %c0_i32_0 = arith.constant 0 : i32
    %c0_i32_1 = arith.constant 0 : i32
    return %c0_i32, %c0_i32_0 : i32, i32
  }
  func.func @transform_4(%arg0: i32) -> (i32, i32) {
    %c0_i32 = arith.constant 0 : i32
    %c0_i32_0 = arith.constant 0 : i32
    %c0_i32_1 = arith.constant 0 : i32
    return %c0_i32, %c0_i32_0 : i32, i32
  }
  func.func @transform_5(%arg0: i32) -> (i32, i32) {
    %c0_i32 = arith.constant 0 : i32
    %c0_i32_0 = arith.constant 0 : i32
    %c0_i32_1 = arith.constant 0 : i32
    return %c0_i32, %c0_i32_0 : i32, i32
  }
  func.func @transform_6(%arg0: i32) -> (i32, i32) {
    %c0_i32 = arith.constant 0 : i32
    %c0_i32_0 = arith.constant 0 : i32
    %c0_i32_1 = arith.constant 0 : i32
    return %c0_i32, %c0_i32_0 : i32, i32
  }
  func.func @transform_7(%arg0: i32) -> (i32, i32) {
    %c0_i32 = arith.constant 0 : i32
    %c0_i32_0 = arith.constant 0 : i32
    return %arg0, %c0_i32 : i32, i32
  }
}

</mosaic_0001>

<llo_original>
// kernel: tpu_custom_call.1
$region0: #{tpu_custom_call.1}
  #allocation0 [shape = 'u32[]', space=smem, size = 0x4, offset = 0x4, fixed_abs, tag = 'smem constant byte address 0x4 - core index']
  #allocation1 [shape = 'u32[144,128]{1,0:T(1,128)}', space=vmem, size = 0x12000, scoped, tag = 'internal scratch']
  %s0 = inlined_call_operand.vmem [shape: f32[128,5], index: 0, kind: input, shape index: {}]
  %s1 = inlined_call_operand.vmem [shape: f32[5,64], index: 1, kind: input, shape index: {}]
  %s2 = inlined_call_operand.vmem [shape: f32[1,64], index: 2, kind: input, shape index: {}]
  %s3 = inlined_call_operand.vmem [shape: f32[64,32], index: 3, kind: input, shape index: {}]
  %s4 = inlined_call_operand.vmem [shape: f32[1,32], index: 4, kind: input, shape index: {}]
  %s5 = inlined_call_operand.vmem [shape: f32[32,16], index: 5, kind: input, shape index: {}]
  %s6 = inlined_call_operand.vmem [shape: f32[1,16], index: 6, kind: input, shape index: {}]
  %s7 = inlined_call_operand.vmem [shape: f32[128,16], index: 7, kind: output, shape index: {}]
  %s8 = sld [smem:[#allocation0]]
  $region38: #{tpu_custom_call.1} parent=0
    _
  %s10 = ssub.s32 1, %s8
  %s11 = scalar_select 0, %s10, %s8
  // Predicated region
  $region2: #{tpu_custom_call.1} parent=0 // pred_check
    _
  $region3: #{tpu_custom_call.1} parent=0 // pred_check_branch
    %13 = sbr.rel (0) target = $region5
  $region4: #{tpu_custom_call.1} parent=0 // pred_region
    _
  $region5: #{tpu_custom_call.1} parent=0 // pred_fallthru
    _
  // Predicated region
  $region6: #{tpu_custom_call.1} parent=0 // pred_check
    _
  $region7: #{tpu_custom_call.1} parent=0 // pred_check_branch
    %15 = sbr.rel (0) target = $region9
  $region8: #{tpu_custom_call.1} parent=0 // pred_region
    _
  $region9: #{tpu_custom_call.1} parent=0 // pred_fallthru
    _
  // Predicated region
  $region10: #{tpu_custom_call.1} parent=0 // pred_check
    _
  $region11: #{tpu_custom_call.1} parent=0 // pred_check_branch
    %17 = sbr.rel (0) target = $region13
  $region12: #{tpu_custom_call.1} parent=0 // pred_region
    _
  $region13: #{tpu_custom_call.1} parent=0 // pred_fallthru
    _
  // Predicated region
  $region14: #{tpu_custom_call.1} parent=0 // pred_check
    _
  $region15: #{tpu_custom_call.1} parent=0 // pred_check_branch
    %19 = sbr.rel (0) target = $region17
  $region16: #{tpu_custom_call.1} parent=0 // pred_region
    _
  $region17: #{tpu_custom_call.1} parent=0 // pred_fallthru
    _
  // Predicated region
  $region18: #{tpu_custom_call.1} parent=0 // pred_check
    _
  $region19: #{tpu_custom_call.1} parent=0 // pred_check_branch
    %21 = sbr.rel (0) target = $region21
  $region20: #{tpu_custom_call.1} parent=0 // pred_region
    _
  $region21: #{tpu_custom_call.1} parent=0 // pred_fallthru
    _
  // Predicated region
  $region22: #{tpu_custom_call.1} parent=0 // pred_check
    _
  $region23: #{tpu_custom_call.1} parent=0 // pred_check_branch
    %23 = sbr.rel (0) target = $region25
  $region24: #{tpu_custom_call.1} parent=0 // pred_region
    _
  $region25: #{tpu_custom_call.1} parent=0 // pred_fallthru
    _
  // Predicated region
  $region26: #{tpu_custom_call.1} parent=0 // pred_check
    _
  $region27: #{tpu_custom_call.1} parent=0 // pred_check_branch
    %25 = sbr.rel (0) target = $region29
  $region28: #{tpu_custom_call.1} parent=0 // pred_region
    _
  $region29: #{tpu_custom_call.1} parent=0 // pred_fallthru
    _
  %v26 = vld [vmem:[%s0] sm:$0xff]
  %v27 = vld [vmem:[%s0 + $0x8] sm:$0xff]
  %v28 = vld [vmem:[%s0 + $0x10] sm:$0xff]
  %v29 = vld [vmem:[%s0 + $0x18] sm:$0xff]
  %v30 = vld [vmem:[%s0 + $0x20] sm:$0xff]
  %v31 = vld [vmem:[%s0 + $0x28] sm:$0xff]
  %v32 = vld [vmem:[%s0 + $0x30] sm:$0xff]
  %v33 = vld [vmem:[%s0 + $0x38] sm:$0xff]
  %v34 = vld [vmem:[%s0 + $0x40] sm:$0xff]
  %v35 = vld [vmem:[%s0 + $0x48] sm:$0xff]
  %v36 = vld [vmem:[%s0 + $0x50] sm:$0xff]
  %v37 = vld [vmem:[%s0 + $0x58] sm:$0xff]
  %v38 = vld [vmem:[%s0 + $0x60] sm:$0xff]
  %v39 = vld [vmem:[%s0 + $0x68] sm:$0xff]
  %v40 = vld [vmem:[%s0 + $0x70] sm:$0xff]
  %v41 = vld [vmem:[%s0 + $0x78] sm:$0xff]
  %v42 = vld [vmem:[%s1] sm:$0x1f]
  %v43 = vld [vmem:[%s2] sm:$0x1]
  %v45 = vlaneseq
  %v46 = vshrl.u32 %v45, 7
  %v47 = vsub.s32 0, %v46
  %v48 = vrot.slane %v43, %v47
  %vm50 = vcmask 39936
  %v52 = vsel %vm50, %v26, 0
  %v55 = vsel %vm50, %v27, 0
  %v58 = vsel %vm50, %v28, 0
  %v61 = vsel %vm50, %v29, 0
  %v64 = vsel %vm50, %v30, 0
  %v67 = vsel %vm50, %v31, 0
  %v70 = vsel %vm50, %v32, 0
  %v73 = vsel %vm50, %v33, 0
  %v76 = vsel %vm50, %v34, 0
  %v79 = vsel %vm50, %v35, 0
  %v82 = vsel %vm50, %v36, 0
  %v85 = vsel %vm50, %v37, 0
  %v88 = vsel %vm50, %v38, 0
  %v91 = vsel %vm50, %v39, 0
  %v94 = vsel %vm50, %v40, 0
  %v97 = vsel %vm50, %v41, 0
  %vm99 = vcmask 1044480
  %v101 = vsel %vm99, %v42, 0
  %103 = vmatprep.subr.mxu0 0.0
  %v104 = vand.u32 %v101, 4294901760
  %105 = vmatpush1.msra.mxu0 %v104
  %106 = vmatprep.subr.mxu0 0.0
  %107 = vmatpush1.msra.mxu0 0.0
  %108 = vmatprep.subr.mxu0 0.0
  %109 = vmatpush1.msra.mxu0 0.0
  %110 = vmatprep.subr.mxu0 0.0
  %111 = vmatpush1.msra.mxu0 0.0
  %112 = vmatprep.subr.mxu0 0.0
  %113 = vmatpush1.msra.mxu0 0.0
  %114 = vmatprep.subr.mxu0 0.0
  %115 = vmatpush1.msra.mxu0 0.0
  %116 = vmatprep.subr.mxu0 0.0
  %117 = vmatpush1.msra.mxu0 0.0
  %118 = vmatprep.subr.mxu0 0.0
  %119 = vmatpush1.msra.mxu0 0.0
  %120 = vmatprep.subr.mxu0 0.0
  %121 = vmatpush1.msra.mxu0 0.0
  %122 = vmatprep.subr.mxu0 0.0
  %123 = vmatpush1.msra.mxu0 0.0
  %124 = vmatprep.subr.mxu0 0.0
  %125 = vmatpush1.msra.mxu0 0.0
  %126 = vmatprep.subr.mxu0 0.0
  %127 = vmatpush1.msra.mxu0 0.0
  %128 = vmatprep.subr.mxu0 0.0
  %129 = vmatpush1.msra.mxu0 0.0
  %130 = vmatprep.subr.mxu0 0.0
  %131 = vmatpush1.msra.mxu0 0.0
  %132 = vmatprep.subr.mxu0 0.0
  %133 = vmatpush1.msra.mxu0 0.0
  %134 = vmatprep.subr.mxu0 0.0
  %135 = vmatpush1.msra.mxu0 0.0
  %136 = vmatprep.subr.mxu0 0.0
  %137 = vmatpush1.msra.mxu0 0.0
  %138 = vmatprep.subr.mxu0 0.0
  %139 = vmatpush1.msra.mxu0 0.0
  %140 = vmatprep.subr.mxu0 0.0
  %141 = vmatpush1.msra.mxu0 0.0
  %142 = vmatprep.subr.mxu0 0.0
  %143 = vmatpush1.msra.mxu0 0.0
  %144 = vmatprep.subr.mxu0 0.0
  %145 = vmatpush1.msra.mxu0 0.0
  %146 = vmatprep.subr.mxu0 0.0
  %147 = vmatpush1.msra.mxu0 0.0
  %148 = vmatprep.subr.mxu0 0.0
  %149 = vmatpush1.msra.mxu0 0.0
  %150 = vmatprep.subr.mxu0 0.0
  %151 = vmatpush1.msra.mxu0 0.0
  %152 = vmatprep.subr.mxu0 0.0
  %153 = vmatpush1.msra.mxu0 0.0
  %154 = vmatprep.subr.mxu0 0.0
  %155 = vmatpush1.msra.mxu0 0.0
  %156 = vmatprep.subr.mxu0 0.0
  %157 = vmatpush1.msra.mxu0 0.0
  %158 = vmatprep.subr.mxu0 0.0
  %159 = vmatpush1.msra.mxu0 0.0
  %160 = vmatprep.subr.mxu0 0.0
  %161 = vmatpush1.msra.mxu0 0.0
  %162 = vmatprep.subr.mxu0 0.0
  %163 = vmatpush1.msra.mxu0 0.0
  %164 = vmatprep.subr.mxu0 0.0
  %165 = vmatpush1.msra.mxu0 0.0
  %166 = vmatprep.subr.mxu0 0.0
  %167 = vmatpush1.msra.mxu0 0.0
  %168 = vmatprep.mubr.f32.mxu0 0.0
  %v169 = vand.u32 %v52, 4294901760
  %v170 = vsub.f32 %v52, %v169
  %v171 = vand.u32 %v170, 4294901760
  %v172 = vsub.f32 %v170, %v171
  %v173 = vand.u32 %v172, 4294901760
  %174 = vmatmul.mubr.f32.gmra.mrb[0].mxu0 %v173
  %v175 = vpop.f32.mrb[0].mxu0
  %v176 = vadd.f32 %v48, %v175
  %v177 = vpop.f32.mrb[0].mxu0
  %178 = vmatprep.mubr.f32.mxu0 0.0
  %v179 = vand.u32 %v55, 4294901760
  %v180 = vsub.f32 %v55, %v179
  %v181 = vand.u32 %v180, 4294901760
  %v182 = vsub.f32 %v180, %v181
  %v183 = vand.u32 %v182, 4294901760
  %184 = vmatmul.mubr.f32.gmra.mrb[0].mxu0 %v183
  %v185 = vpop.f32.mrb[0].mxu0
  %v186 = vadd.f32 %v48, %v185
  %v187 = vpop.f32.mrb[0].mxu0
  %188 = vmatprep.mubr.f32.mxu0 0.0
  %v189 = vand.u32 %v58, 4294901760
  %v190 = vsub.f32 %v58, %v189
  %v191 = vand.u32 %v190, 4294901760
  %v192 = vsub.f32 %v190, %v191
  %v193 = vand.u32 %v192, 4294901760
  %194 = vmatmul.mubr.f32.gmra.mrb[0].mxu0 %v193
  %v195 = vpop.f32.mrb[0].mxu0
  %v196 = vadd.f32 %v48, %v195
  %v197 = vpop.f32.mrb[0].mxu0
  %198 = vmatprep.mubr.f32.mxu0 0.0
  %v199 = vand.u32 %v61, 4294901760
  %v200 = vsub.f32 %v61, %v199
  %v201 = vand.u32 %v200, 4294901760
  %v202 = vsub.f32 %v200, %v201
  %v203 = vand.u32 %v202, 4294901760
  %204 = vmatmul.mubr.f32.gmra.mrb[0].mxu0 %v203
  %v205 = vpop.f32.mrb[0].mxu0
  %v206 = vadd.f32 %v48, %v205
  %v207 = vpop.f32.mrb[0].mxu0
  %208 = vmatprep.mubr.f32.mxu0 0.0
  %v209 = vand.u32 %v64, 4294901760
  %v210 = vsub.f32 %v64, %v209
  %v211 = vand.u32 %v210, 4294901760
  %v212 = vsub.f32 %v210, %v211
  %v213 = vand.u32 %v212, 4294901760
  %214 = vmatmul.mubr.f32.gmra.mrb[0].mxu0 %v213
  %v215 = vpop.f32.mrb[0].mxu0
  %v216 = vadd.f32 %v48, %v215
  %v217 = vpop.f32.mrb[0].mxu0
  %218 = vmatprep.mubr.f32.mxu0 0.0
  %v219 = vand.u32 %v67, 4294901760
  %v220 = vsub.f32 %v67, %v219
  %v221 = vand.u32 %v220, 4294901760
  %v222 = vsub.f32 %v220, %v221
  %v223 = vand.u32 %v222, 4294901760
  %224 = vmatmul.mubr.f32.gmra.mrb[0].mxu0 %v223
  %v225 = vpop.f32.mrb[0].mxu0
  %v226 = vadd.f32 %v48, %v225
  %v227 = vpop.f32.mrb[0].mxu0
  %228 = vmatprep.mubr.f32.mxu0 0.0
  %v229 = vand.u32 %v70, 4294901760
  %v230 = vsub.f32 %v70, %v229
  %v231 = vand.u32 %v230, 4294901760
  %v232 = vsub.f32 %v230, %v231
  %v233 = vand.u32 %v232, 4294901760
  %234 = vmatmul.mubr.f32.gmra.mrb[0].mxu0 %v233
  %v235 = vpop.f32.mrb[0].mxu0
  %v236 = vadd.f32 %v48, %v235
  %v237 = vpop.f32.mrb[0].mxu0
  %238 = vmatprep.mubr.f32.mxu0 0.0
  %v239 = vand.u32 %v73, 4294901760
  %v240 = vsub.f32 %v73, %v239
  %v241 = vand.u32 %v240, 4294901760
  %v242 = vsub.f32 %v240, %v241
  %v243 = vand.u32 %v242, 4294901760
  %244 = vmatmul.mubr.f32.gmra.mrb[0].mxu0 %v243
  %v245 = vpop.f32.mrb[0].mxu0
  %v246 = vadd.f32 %v48, %v245
  %v247 = vpop.f32.mrb[0].mxu0
  %248 = vmatprep.mubr.f32.mxu0 0.0
  %v249 = vand.u32 %v76, 4294901760
  %v250 = vsub.f32 %v76, %v249
  %v251 = vand.u32 %v250, 4294901760
  %v252 = vsub.f32 %v250, %v251
  %v253 = vand.u32 %v252, 4294901760
  %254 = vmatmul.mubr.f32.gmra.mrb[0].mxu0 %v253
  %v255 = vpop.f32.mrb[0].mxu0
  %v256 = vadd.f32 %v48, %v255
  %v257 = vpop.f32.mrb[0].mxu0
  %258 = vmatprep.mubr.f32.mxu0 0.0
  %v259 = vand.u32 %v79, 4294901760
  %v260 = vsub.f32 %v79, %v259
  %v261 = vand.u32 %v260, 4294901760
  %v262 = vsub.f32 %v260, %v261
  %v263 = vand.u32 %v262, 4294901760
  %264 = vmatmul.mubr.f32.gmra.mrb[0].mxu0 %v263
  %v265 = vpop.f32.mrb[0].mxu0
  %v266 = vadd.f32 %v48, %v265
  %v267 = vpop.f32.mrb[0].mxu0
  %268 = vmatprep.mubr.f32.mxu0 0.0
  %v269 = vand.u32 %v82, 4294901760
  %v270 = vsub.f32 %v82, %v269
  %v271 = vand.u32 %v270, 4294901760
  %v272 = vsub.f32 %v270, %v271
  %v273 = vand.u32 %v272, 4294901760
  %274 = vmatmul.mubr.f32.gmra.mrb[0].mxu0 %v273
  %v275 = vpop.f32.mrb[0].mxu0
  %v276 = vadd.f32 %v48, %v275
  %v277 = vpop.f32.mrb[0].mxu0
  %278 = vmatprep.mubr.f32.mxu0 0.0
  %v279 = vand.u32 %v85, 4294901760
  %v280 = vsub.f32 %v85, %v279
  %v281 = vand.u32 %v280, 4294901760
  %v282 = vsub.f32 %v280, %v281
  %v283 = vand.u32 %v282, 4294901760
  %284 = vmatmul.mubr.f32.gmra.mrb[0].mxu0 %v283
  %v285 = vpop.f32.mrb[0].mxu0
  %v286 = vadd.f32 %v48, %v285
  %v287 = vpop.f32.mrb[0].mxu0
  %288 = vmatprep.mubr.f32.mxu0 0.0
  %v289 = vand.u32 %v88, 4294901760
  %v290 = vsub.f32 %v88, %v289
  %v291 = vand.u32 %v290, 4294901760
  %v292 = vsub.f32 %v290, %v291
  %v293 = vand.u32 %v292, 4294901760
  %294 = vmatmul.mubr.f32.gmra.mrb[0].mxu0 %v293
  %v295 = vpop.f32.mrb[0].mxu0
  %v296 = vadd.f32 %v48, %v295
  %v297 = vpop.f32.mrb[0].mxu0
  %298 = vmatprep.mubr.f32.mxu0 0.0
  %v299 = vand.u32 %v91, 4294901760
  %v300 = vsub.f32 %v91, %v299
  %v301 = vand.u32 %v300, 4294901760
  %v302 = vsub.f32 %v300, %v301
  %v303 = vand.u32 %v302, 4294901760
  %304 = vmatmul.mubr.f32.gmra.mrb[0].mxu0 %v303
  %v305 = vpop.f32.mrb[0].mxu0
  %v306 = vadd.f32 %v48, %v305
  %v307 = vpop.f32.mrb[0].mxu0
  %308 = vmatprep.mubr.f32.mxu0 0.0
  %v309 = vand.u32 %v94, 4294901760
  %v310 = vsub.f32 %v94, %v309
  %v311 = vand.u32 %v310, 4294901760
  %v312 = vsub.f32 %v310, %v311
  %v313 = vand.u32 %v312, 4294901760
  %314 = vmatmul.mubr.f32.gmra.mrb[0].mxu0 %v313
  %v315 = vpop.f32.mrb[0].mxu0
  %v316 = vadd.f32 %v48, %v315
  %v317 = vpop.f32.mrb[0].mxu0
  %318 = vmatprep.mubr.f32.mxu0 0.0
  %v319 = vand.u32 %v97, 4294901760
  %v320 = vsub.f32 %v97, %v319
  %v321 = vand.u32 %v320, 4294901760
  %v322 = vsub.f32 %v320, %v321
  %v323 = vand.u32 %v322, 4294901760
  %324 = vmatmul.mubr.f32.gmra.mrb[0].mxu0 %v323
  %v325 = vpop.f32.mrb[0].mxu0
  %v326 = vadd.f32 %v48, %v325
  %v327 = vpop.f32.mrb[0].mxu0
  %328 = vdwg.mxu0
  %329 = vmatprep.subr.mxu0 0.0
  %v330 = vand.u32 %v101, 4294901760
  %v331 = vsub.f32 %v101, %v330
  %v332 = vand.u32 %v331, 4294901760
  %v333 = vsub.f32 %v331, %v332
  %v334 = vand.u32 %v333, 4294901760
  %335 = vmatpush1.msra.mxu0 %v334
  %336 = vmatprep.subr.mxu0 0.0
  %337 = vmatpush1.msra.mxu0 0.0
  %338 = vmatprep.subr.mxu0 0.0
  %339 = vmatpush1.msra.mxu0 0.0
  %340 = vmatprep.subr.mxu0 0.0
  %341 = vmatpush1.msra.mxu0 0.0
  %342 = vmatprep.subr.mxu0 0.0
  %343 = vmatpush1.msra.mxu0 0.0
  %344 = vmatprep.subr.mxu0 0.0
  %345 = vmatpush1.msra.mxu0 0.0
  %346 = vmatprep.subr.mxu0 0.0
  %347 = vmatpush1.msra.mxu0 0.0
  %348 = vmatprep.subr.mxu0 0.0
  %349 = vmatpush1.msra.mxu0 0.0
  %350 = vmatprep.subr.mxu0 0.0
  %351 = vmatpush1.msra.mxu0 0.0
  %352 = vmatprep.subr.mxu0 0.0
  %353 = vmatpush1.msra.mxu0 0.0
  %354 = vmatprep.subr.mxu0 0.0
  %355 = vmatpush1.msra.mxu0 0.0
  %356 = vmatprep.subr.mxu0 0.0
  %357 = vmatpush1.msra.mxu0 0.0
  %358 = vmatprep.subr.mxu0 0.0
  %359 = vmatpush1.msra.mxu0 0.0
  %360 = vmatprep.subr.mxu0 0.0
  %361 = vmatpush1.msra.mxu0 0.0
  %362 = vmatprep.subr.mxu0 0.0
  %363 = vmatpush1.msra.mxu0 0.0
  %364 = vmatprep.subr.mxu0 0.0
  %365 = vmatpush1.msra.mxu0 0.0
  %366 = vmatprep.subr.mxu0 0.0
  %367 = vmatpush1.msra.mxu0 0.0
  %368 = vmatprep.subr.mxu0 0.0
  %369 = vmatpush1.msra.mxu0 0.0
  %370 = vmatprep.subr.mxu0 0.0
  %371 = vmatpush1.msra.mxu0 0.0
  %372 = vmatprep.subr.mxu0 0.0
  %373 = vmatpush1.msra.mxu0 0.0
  %374 = vmatprep.subr.mxu0 0.0
  %375 = vmatpush1.msra.mxu0 0.0
  %376 = vmatprep.subr.mxu0 0.0
  %377 = vmatpush1.msra.mxu0 0.0
  %378 = vmatprep.subr.mxu0 0.0
  %379 = vmatpush1.msra.mxu0 0.0
  %380 = vmatprep.subr.mxu0 0.0
  %381 = vmatpush1.msra.mxu0 0.0
  %382 = vmatprep.subr.mxu0 0.0
  %383 = vmatpush1.msra.mxu0 0.0
  %384 = vmatprep.subr.mxu0 0.0
  %385 = vmatpush1.msra.mxu0 0.0
  %386 = vmatprep.subr.mxu0 0.0
  %387 = vmatpush1.msra.mxu0 0.0
  %388 = vmatprep.subr.mxu0 0.0
  %389 = vmatpush1.msra.mxu0 0.0
  %390 = vmatprep.subr.mxu0 0.0
  %391 = vmatpush1.msra.mxu0 0.0
  %392 = vmatprep.subr.mxu0 0.0
  %393 = vmatpush1.msra.mxu0 0.0
  %394 = vmatprep.subr.mxu0 0.0
  %395 = vmatpush1.msra.mxu0 0.0
  %396 = vmatprep.subr.mxu0 0.0
  %397 = vmatpush1.msra.mxu0 0.0
  %398 = vmatprep.mubr.f32.mxu0 0.0
  %v399 = vand.u32 %v52, 4294901760
  %400 = vmatmul.mubr.f32.gmra.mrb[0].mxu0 %v399
  %v401 = vpop.f32.mrb[0].mxu0
  %v402 = vadd.f32 %v176, %v401
  %v403 = vpop.f32.mrb[0].mxu0
  %404 = vmatprep.mubr.f32.mxu0 0.0
  %v405 = vand.u32 %v55, 4294901760
  %406 = vmatmul.mubr.f32.gmra.mrb[0].mxu0 %v405
  %v407 = vpop.f32.mrb[0].mxu0
  %v408 = vadd.f32 %v186, %v407
  %v409 = vpop.f32.mrb[0].mxu0
  %410 = vmatprep.mubr.f32.mxu0 0.0
  %v411 = vand.u32 %v58, 4294901760
  %412 = vmatmul.mubr.f32.gmra.mrb[0].mxu0 %v411
  %v413 = vpop.f32.mrb[0].mxu0
  %v414 = vadd.f32 %v196, %v413
  %v415 = vpop.f32.mrb[0].mxu0
  %416 = vmatprep.mubr.f32.mxu0 0.0
  %v417 = vand.u32 %v61, 4294901760
  %418 = vmatmul.mubr.f32.gmra.mrb[0].mxu0 %v417
  %v419 = vpop.f32.mrb[0].mxu0
  %v420 = vadd.f32 %v206, %v419
  %v421 = vpop.f32.mrb[0].mxu0
  %422 = vmatprep.mubr.f32.mxu0 0.0
  %v423 = vand.u32 %v64, 4294901760
  %424 = vmatmul.mubr.f32.gmra.mrb[0].mxu0 %v423
  %v425 = vpop.f32.mrb[0].mxu0
  %v426 = vadd.f32 %v216, %v425
  %v427 = vpop.f32.mrb[0].mxu0
  %428 = vmatprep.mubr.f32.mxu0 0.0
  %v429 = vand.u32 %v67, 4294901760
  %430 = vmatmul.mubr.f32.gmra.mrb[0].mxu0 %v429
  %v431 = vpop.f32.mrb[0].mxu0
  %v432 = vadd.f32 %v226, %v431
  %v433 = vpop.f32.mrb[0].mxu0
  %434 = vmatprep.mubr.f32.mxu0 0.0
  %v435 = vand.u32 %v70, 4294901760
  %436 = vmatmul.mubr.f32.gmra.mrb[0].mxu0 %v435
  %v437 = vpop.f32.mrb[0].mxu0
  %v438 = vadd.f32 %v236, %v437
  %v439 = vpop.f32.mrb[0].mxu0
  %440 = vmatprep.mubr.f32.mxu0 0.0
  %v441 = vand.u32 %v73, 4294901760
  %442 = vmatmul.mubr.f32.gmra.mrb[0].mxu0 %v441
  %v443 = vpop.f32.mrb[0].mxu0
  %v444 = vadd.f32 %v246, %v443
  %v445 = vpop.f32.mrb[0].mxu0
  %446 = vmatprep.mubr.f32.mxu0 0.0
  %v447 = vand.u32 %v76, 4294901760
  %448 = vmatmul.mubr.f32.gmra.mrb[0].mxu0 %v447
  %v449 = vpop.f32.mrb[0].mxu0
  %v450 = vadd.f32 %v256, %v449
  %v451 = vpop.f32.mrb[0].mxu0
  %452 = vmatprep.mubr.f32.mxu0 0.0
  %v453 = vand.u32 %v79, 4294901760
  %454 = vmatmul.mubr.f32.gmra.mrb[0].mxu0 %v453
  %v455 = vpop.f32.mrb[0].mxu0
  %v456 = vadd.f32 %v266, %v455
  %v457 = vpop.f32.mrb[0].mxu0
  %458 = vmatprep.mubr.f32.mxu0 0.0
  %v459 = vand.u32 %v82, 4294901760
  %460 = vmatmul.mubr.f32.gmra.mrb[0].mxu0 %v459
  %v461 = vpop.f32.mrb[0].mxu0
  %v462 = vadd.f32 %v276, %v461
  %v463 = vpop.f32.mrb[0].mxu0
  %464 = vmatprep.mubr.f32.mxu0 0.0
  %v465 = vand.u32 %v85, 4294901760
  %466 = vmatmul.mubr.f32.gmra.mrb[0].mxu0 %v465
  %v467 = vpop.f32.mrb[0].mxu0
  %v468 = vadd.f32 %v286, %v467
  %v469 = vpop.f32.mrb[0].mxu0
  %470 = vmatprep.mubr.f32.mxu0 0.0
  %v471 = vand.u32 %v88, 4294901760
  %472 = vmatmul.mubr.f32.gmra.mrb[0].mxu0 %v471
  %v473 = vpop.f32.mrb[0].mxu0
  %v474 = vadd.f32 %v296, %v473
  %v475 = vpop.f32.mrb[0].mxu0
  %476 = vmatprep.mubr.f32.mxu0 0.0
  %v477 = vand.u32 %v91, 4294901760
  %478 = vmatmul.mubr.f32.gmra.mrb[0].mxu0 %v477
  %v479 = vpop.f32.mrb[0].mxu0
  %v480 = vadd.f32 %v306, %v479
  %v481 = vpop.f32.mrb[0].mxu0
  %482 = vmatprep.mubr.f32.mxu0 0.0
  %v483 = vand.u32 %v94, 4294901760
  %484 = vmatmul.mubr.f32.gmra.mrb[0].mxu0 %v483
  %v485 = vpop.f32.mrb[0].mxu0
  %v486 = vadd.f32 %v316, %v485
  %v487 = vpop.f32.mrb[0].mxu0
  %488 = vmatprep.mubr.f32.mxu0 0.0
  %v489 = vand.u32 %v97, 4294901760
  %490 = vmatmul.mubr.f32.gmra.mrb[0].mxu0 %v489
  %v491 = vpop.f32.mrb[0].mxu0
  %v492 = vadd.f32 %v326, %v491
  %v493 = vpop.f32.mrb[0].mxu0
  %494 = vdwg.mxu0
  %495 = vmatprep.subr.mxu0 0.0
  %v496 = vand.u32 %v101, 4294901760
  %v497 = vsub.f32 %v101, %v496
  %498 = vmatpush1.msra.mxu0 %v497
  %499 = vmatprep.subr.mxu0 0.0
  %500 = vmatpush1.msra.mxu0 0.0
  %501 = vmatprep.subr.mxu0 0.0
  %502 = vmatpush1.msra.mxu0 0.0
  %503 = vmatprep.subr.mxu0 0.0
  %504 = vmatpush1.msra.mxu0 0.0
  %505 = vmatprep.subr.mxu0 0.0
  %506 = vmatpush1.msra.mxu0 0.0
  %507 = vmatprep.subr.mxu0 0.0
  %508 = vmatpush1.msra.mxu0 0.0
  %509 = vmatprep.subr.mxu0 0.0
  %510 = vmatpush1.msra.mxu0 0.0
  %511 = vmatprep.subr.mxu0 0.0
  %512 = vmatpush1.msra.mxu0 0.0
  %513 = vmatprep.subr.mxu0 0.0
  %514 = vmatpush1.msra.mxu0 0.0
  %515 = vmatprep.subr.mxu0 0.0
  %516 = vmatpush1.msra.mxu0 0.0
  %517 = vmatprep.subr.mxu0 0.0
  %518 = vmatpush1.msra.mxu0 0.0
  %519 = vmatprep.subr.mxu0 0.0
  %520 = vmatpush1.msra.mxu0 0.0
  %521 = vmatprep.subr.mxu0 0.0
  %522 = vmatpush1.msra.mxu0 0.0
  %523 = vmatprep.subr.mxu0 0.0
  %524 = vmatpush1.msra.mxu0 0.0
  %525 = vmatprep.subr.mxu0 0.0
  %526 = vmatpush1.msra.mxu0 0.0
  %527 = vmatprep.subr.mxu0 0.0
  %528 = vmatpush1.msra.mxu0 0.0
  %529 = vmatprep.subr.mxu0 0.0
  %530 = vmatpush1.msra.mxu0 0.0
  %531 = vmatprep.subr.mxu0 0.0
  %532 = vmatpush1.msra.mxu0 0.0
  %533 = vmatprep.subr.mxu0 0.0
  %534 = vmatpush1.msra.mxu0 0.0
  %535 = vmatprep.subr.mxu0 0.0
  %536 = vmatpush1.msra.mxu0 0.0
  %537 = vmatprep.subr.mxu0 0.0
  %538 = vmatpush1.msra.mxu0 0.0
  %539 = vmatprep.subr.mxu0 0.0
  %540 = vmatpush1.msra.mxu0 0.0
  %541 = vmatprep.subr.mxu0 0.0
  %542 = vmatpush1.msra.mxu0 0.0
  %543 = vmatprep.subr.mxu0 0.0
  %544 = vmatpush1.msra.mxu0 0.0
  %545 = vmatprep.subr.mxu0 0.0
  %546 = vmatpush1.msra.mxu0 0.0
  %547 = vmatprep.subr.mxu0 0.0
  %548 = vmatpush1.msra.mxu0 0.0
  %549 = vmatprep.subr.mxu0 0.0
  %550 = vmatpush1.msra.mxu0 0.0
  %551 = vmatprep.subr.mxu0 0.0
  %552 = vmatpush1.msra.mxu0 0.0
  %553 = vmatprep.subr.mxu0 0.0
  %554 = vmatpush1.msra.mxu0 0.0
  %555 = vmatprep.subr.mxu0 0.0
  %556 = vmatpush1.msra.mxu0 0.0
  %557 = vmatprep.subr.mxu0 0.0
  %558 = vmatpush1.msra.mxu0 0.0
  %559 = vmatprep.subr.mxu0 0.0
  %560 = vmatpush1.msra.mxu0 0.0
  %561 = vmatprep.mubr.f32.mxu0 0.0
  %v562 = vand.u32 %v52, 4294901760
  %v563 = vsub.f32 %v52, %v562
  %564 = vmatmul.mubr.f32.gmra.mrb[0].mxu0 %v563
  %v565 = vpop.f32.mrb[0].mxu0
  %v566 = vadd.f32 %v402, %v565
  %v567 = vpop.f32.mrb[0].mxu0
  %568 = vmatprep.mubr.f32.mxu0 0.0
  %v569 = vand.u32 %v55, 4294901760
  %v570 = vsub.f32 %v55, %v569
  %571 = vmatmul.mubr.f32.gmra.mrb[0].mxu0 %v570
  %v572 = vpop.f32.mrb[0].mxu0
  %v573 = vadd.f32 %v408, %v572
  %v574 = vpop.f32.mrb[0].mxu0
  %575 = vmatprep.mubr.f32.mxu0 0.0
  %v576 = vand.u32 %v58, 4294901760
  %v577 = vsub.f32 %v58, %v576
  %578 = vmatmul.mubr.f32.gmra.mrb[0].mxu0 %v577
  %v579 = vpop.f32.mrb[0].mxu0
  %v580 = vadd.f32 %v414, %v579
  %v581 = vpop.f32.mrb[0].mxu0
  %582 = vmatprep.mubr.f32.mxu0 0.0
  %v583 = vand.u32 %v61, 4294901760
  %v584 = vsub.f32 %v61, %v583
  %585 = vmatmul.mubr.f32.gmra.mrb[0].mxu0 %v584
  %v586 = vpop.f32.mrb[0].mxu0
  %v587 = vadd.f32 %v420, %v586
  %v588 = vpop.f32.mrb[0].mxu0
  %589 = vmatprep.mubr.f32.mxu0 0.0
  %v590 = vand.u32 %v64, 4294901760
  %v591 = vsub.f32 %v64, %v590
  %592 = vmatmul.mubr.f32.gmra.mrb[0].mxu0 %v591
  %v593 = vpop.f32.mrb[0].mxu0
  %v594 = vadd.f32 %v426, %v593
  %v595 = vpop.f32.mrb[0].mxu0
  %596 = vmatprep.mubr.f32.mxu0 0.0
  %v597 = vand.u32 %v67, 4294901760
  %v598 = vsub.f32 %v67, %v597
  %599 = vmatmul.mubr.f32.gmra.mrb[0].mxu0 %v598
  %v600 = vpop.f32.mrb[0].mxu0
  %v601 = vadd.f32 %v432, %v600
  %v602 = vpop.f32.mrb[0].mxu0
  %603 = vmatprep.mubr.f32.mxu0 0.0
  %v604 = vand.u32 %v70, 4294901760
  %v605 = vsub.f32 %v70, %v604
  %606 = vmatmul.mubr.f32.gmra.mrb[0].mxu0 %v605
  %v607 = vpop.f32.mrb[0].mxu0
  %v608 = vadd.f32 %v438, %v607
  %v609 = vpop.f32.mrb[0].mxu0
  %610 = vmatprep.mubr.f32.mxu0 0.0
  %v611 = vand.u32 %v73, 4294901760
  %v612 = vsub.f32 %v73, %v611
  %613 = vmatmul.mubr.f32.gmra.mrb[0].mxu0 %v612
  %v614 = vpop.f32.mrb[0].mxu0
  %v615 = vadd.f32 %v444, %v614
  %v616 = vpop.f32.mrb[0].mxu0
  %617 = vmatprep.mubr.f32.mxu0 0.0
  %v618 = vand.u32 %v76, 4294901760
  %v619 = vsub.f32 %v76, %v618
  %620 = vmatmul.mubr.f32.gmra.mrb[0].mxu0 %v619
  %v621 = vpop.f32.mrb[0].mxu0
  %v622 = vadd.f32 %v450, %v621
  %v623 = vpop.f32.mrb[0].mxu0
  %624 = vmatprep.mubr.f32.mxu0 0.0
  %v625 = vand.u32 %v79, 4294901760
  %v626 = vsub.f32 %v79, %v625
  %627 = vmatmul.mubr.f32.gmra.mrb[0].mxu0 %v626
  %v628 = vpop.f32.mrb[0].mxu0
  %v629 = vadd.f32 %v456, %v628
  %v630 = vpop.f32.mrb[0].mxu0
  %631 = vmatprep.mubr.f32.mxu0 0.0
  %v632 = vand.u32 %v82, 4294901760
  %v633 = vsub.f32 %v82, %v632
  %634 = vmatmul.mubr.f32.gmra.mrb[0].mxu0 %v633
  %v635 = vpop.f32.mrb[0].mxu0
  %v636 = vadd.f32 %v462, %v635
  %v637 = vpop.f32.mrb[0].mxu0
  %638 = vmatprep.mubr.f32.mxu0 0.0
  %v639 = vand.u32 %v85, 4294901760
  %v640 = vsub.f32 %v85, %v639
  %641 = vmatmul.mubr.f32.gmra.mrb[0].mxu0 %v640
  %v642 = vpop.f32.mrb[0].mxu0
  %v643 = vadd.f32 %v468, %v642
  %v644 = vpop.f32.mrb[0].mxu0
  %645 = vmatprep.mubr.f32.mxu0 0.0
  %v646 = vand.u32 %v88, 4294901760
  %v647 = vsub.f32 %v88, %v646
  %648 = vmatmul.mubr.f32.gmra.mrb[0].mxu0 %v647
  %v649 = vpop.f32.mrb[0].mxu0
  %v650 = vadd.f32 %v474, %v649
  %v651 = vpop.f32.mrb[0].mxu0
  %652 = vmatprep.mubr.f32.mxu0 0.0
  %v653 = vand.u32 %v91, 4294901760
  %v654 = vsub.f32 %v91, %v653
  %655 = vmatmul.mubr.f32.gmra.mrb[0].mxu0 %v654
  %v656 = vpop.f32.mrb[0].mxu0
  %v657 = vadd.f32 %v480, %v656
  %v658 = vpop.f32.mrb[0].mxu0
  %659 = vmatprep.mubr.f32.mxu0 0.0
  %v660 = vand.u32 %v94, 4294901760
  %v661 = vsub.f32 %v94, %v660
  %662 = vmatmul.mubr.f32.gmra.mrb[0].mxu0 %v661
  %v663 = vpop.f32.mrb[0].mxu0
  %v664 = vadd.f32 %v486, %v663
  %v665 = vpop.f32.mrb[0].mxu0
  %666 = vmatprep.mubr.f32.mxu0 0.0
  %v667 = vand.u32 %v97, 4294901760
  %v668 = vsub.f32 %v97, %v667
  %669 = vmatmul.mubr.f32.gmra.mrb[0].mxu0 %v668
  %v670 = vpop.f32.mrb[0].mxu0
  %v671 = vadd.f32 %v492, %v670
  %v672 = vpop.f32.mrb[0].mxu0
  %673 = vdwg.mxu0
  %674 = vmatprep.subr.mxu0 0.0
  %v675 = vand.u32 %v101, 4294901760
  %676 = vmatpush1.msra.mxu0 %v675
  %677 = vmatprep.subr.mxu0 0.0
  %678 = vmatpush1.msra.mxu0 0.0
  %679 = vmatprep.subr.mxu0 0.0
  %680 = vmatpush1.msra.mxu0 0.0
  %681 = vmatprep.subr.mxu0 0.0
  %682 = vmatpush1.msra.mxu0 0.0
  %683 = vmatprep.subr.mxu0 0.0
  %684 = vmatpush1.msra.mxu0 0.0
  %685 = vmatprep.subr.mxu0 0.0
  %686 = vmatpush1.msra.mxu0 0.0
  %687 = vmatprep.subr.mxu0 0.0
  %688 = vmatpush1.msra.mxu0 0.0
  %689 = vmatprep.subr.mxu0 0.0
  %690 = vmatpush1.msra.mxu0 0.0
  %691 = vmatprep.subr.mxu0 0.0
  %692 = vmatpush1.msra.mxu0 0.0
  %693 = vmatprep.subr.mxu0 0.0
  %694 = vmatpush1.msra.mxu0 0.0
  %695 = vmatprep.subr.mxu0 0.0
  %696 = vmatpush1.msra.mxu0 0.0
  %697 = vmatprep.subr.mxu0 0.0
  %698 = vmatpush1.msra.mxu0 0.0
  %699 = vmatprep.subr.mxu0 0.0
  %700 = vmatpush1.msra.mxu0 0.0
  %701 = vmatprep.subr.mxu0 0.0
  %702 = vmatpush1.msra.mxu0 0.0
  %703 = vmatprep.subr.mxu0 0.0
  %704 = vmatpush1.msra.mxu0 0.0
  %705 = vmatprep.subr.mxu0 0.0
  %706 = vmatpush1.msra.mxu0 0.0
  %707 = vmatprep.subr.mxu0 0.0
  %708 = vmatpush1.msra.mxu0 0.0
  %709 = vmatprep.subr.mxu0 0.0
  %710 = vmatpush1.msra.mxu0 0.0
  %711 = vmatprep.subr.mxu0 0.0
  %712 = vmatpush1.msra.mxu0 0.0
  %713 = vmatprep.subr.mxu0 0.0
  %714 = vmatpush1.msra.mxu0 0.0
  %715 = vmatprep.subr.mxu0 0.0
  %716 = vmatpush1.msra.mxu0 0.0
  %717 = vmatprep.subr.mxu0 0.0
  %718 = vmatpush1.msra.mxu0 0.0
  %719 = vmatprep.subr.mxu0 0.0
  %720 = vmatpush1.msra.mxu0 0.0
  %721 = vmatprep.subr.mxu0 0.0
  %722 = vmatpush1.msra.mxu0 0.0
  %723 = vmatprep.subr.mxu0 0.0
  %724 = vmatpush1.msra.mxu0 0.0
  %725 = vmatprep.subr.mxu0 0.0
  %726 = vmatpush1.msra.mxu0 0.0
  %727 = vmatprep.subr.mxu0 0.0
  %728 = vmatpush1.msra.mxu0 0.0
  %729 = vmatprep.subr.mxu0 0.0
  %730 = vmatpush1.msra.mxu0 0.0
  %731 = vmatprep.subr.mxu0 0.0
  %732 = vmatpush1.msra.mxu0 0.0
  %733 = vmatprep.subr.mxu0 0.0
  %734 = vmatpush1.msra.mxu0 0.0
  %735 = vmatprep.subr.mxu0 0.0
  %736 = vmatpush1.msra.mxu0 0.0
  %737 = vmatprep.subr.mxu0 0.0
  %738 = vmatpush1.msra.mxu0 0.0
  %739 = vmatprep.mubr.f32.mxu0 0.0
  %v740 = vand.u32 %v52, 4294901760
  %v741 = vsub.f32 %v52, %v740
  %v742 = vand.u32 %v741, 4294901760
  %743 = vmatmul.mubr.f32.gmra.mrb[0].mxu0 %v742
  %v744 = vpop.f32.mrb[0].mxu0
  %v745 = vadd.f32 %v566, %v744
  %v746 = vpop.f32.mrb[0].mxu0
  %747 = vmatprep.mubr.f32.mxu0 0.0
  %v748 = vand.u32 %v55, 4294901760
  %v749 = vsub.f32 %v55, %v748
  %v750 = vand.u32 %v749, 4294901760
  %751 = vmatmul.mubr.f32.gmra.mrb[0].mxu0 %v750
  %v752 = vpop.f32.mrb[0].mxu0
  %v753 = vadd.f32 %v573, %v752
  %v754 = vpop.f32.mrb[0].mxu0
  %755 = vmatprep.mubr.f32.mxu0 0.0
  %v756 = vand.u32 %v58, 4294901760
  %v757 = vsub.f32 %v58, %v756
  %v758 = vand.u32 %v757, 4294901760
  %759 = vmatmul.mubr.f32.gmra.mrb[0].mxu0 %v758
  %v760 = vpop.f32.mrb[0].mxu0
  %v761 = vadd.f32 %v580, %v760
  %v762 = vpop.f32.mrb[0].mxu0
  %763 = vmatprep.mubr.f32.mxu0 0.0
  %v764 = vand.u32 %v61, 4294901760
  %v765 = vsub.f32 %v61, %v764
  %v766 = vand.u32 %v765, 4294901760
  %767 = vmatmul.mubr.f32.gmra.mrb[0].mxu0 %v766
  %v768 = vpop.f32.mrb[0].mxu0
  %v769 = vadd.f32 %v587, %v768
  %v770 = vpop.f32.mrb[0].mxu0
  %771 = vmatprep.mubr.f32.mxu0 0.0
  %v772 = vand.u32 %v64, 4294901760
  %v773 = vsub.f32 %v64, %v772
  %v774 = vand.u32 %v773, 4294901760
  %775 = vmatmul.mubr.f32.gmra.mrb[0].mxu0 %v774
  %v776 = vpop.f32.mrb[0].mxu0
  %v777 = vadd.f32 %v594, %v776
  %v778 = vpop.f32.mrb[0].mxu0
  %779 = vmatprep.mubr.f32.mxu0 0.0
  %v780 = vand.u32 %v67, 4294901760
  %v781 = vsub.f32 %v67, %v780
  %v782 = vand.u32 %v781, 4294901760
  %783 = vmatmul.mubr.f32.gmra.mrb[0].mxu0 %v782
  %v784 = vpop.f32.mrb[0].mxu0
  %v785 = vadd.f32 %v601, %v784
  %v786 = vpop.f32.mrb[0].mxu0
  %787 = vmatprep.mubr.f32.mxu0 0.0
  %v788 = vand.u32 %v70, 4294901760
  %v789 = vsub.f32 %v70, %v788
  %v790 = vand.u32 %v789, 4294901760
  %791 = vmatmul.mubr.f32.gmra.mrb[0].mxu0 %v790
  %v792 = vpop.f32.mrb[0].mxu0
  %v793 = vadd.f32 %v608, %v792
  %v794 = vpop.f32.mrb[0].mxu0
  %795 = vmatprep.mubr.f32.mxu0 0.0
  %v796 = vand.u32 %v73, 4294901760
  %v797 = vsub.f32 %v73, %v796
  %v798 = vand.u32 %v797, 4294901760
  %799 = vmatmul.mubr.f32.gmra.mrb[0].mxu0 %v798
  %v800 = vpop.f32.mrb[0].mxu0
  %v801 = vadd.f32 %v615, %v800
  %v802 = vpop.f32.mrb[0].mxu0
  %803 = vmatprep.mubr.f32.mxu0 0.0
  %v804 = vand.u32 %v76, 4294901760
  %v805 = vsub.f32 %v76, %v804
  %v806 = vand.u32 %v805, 4294901760
  %807 = vmatmul.mubr.f32.gmra.mrb[0].mxu0 %v806
  %v808 = vpop.f32.mrb[0].mxu0
  %v809 = vadd.f32 %v622, %v808
  %v810 = vpop.f32.mrb[0].mxu0
  %811 = vmatprep.mubr.f32.mxu0 0.0
  %v812 = vand.u32 %v79, 4294901760
  %v813 = vsub.f32 %v79, %v812
  %v814 = vand.u32 %v813, 4294901760
  %815 = vmatmul.mubr.f32.gmra.mrb[0].mxu0 %v814
  %v816 = vpop.f32.mrb[0].mxu0
  %v817 = vadd.f32 %v629, %v816
  %v818 = vpop.f32.mrb[0].mxu0
  %819 = vmatprep.mubr.f32.mxu0 0.0
  %v820 = vand.u32 %v82, 4294901760
  %v821 = vsub.f32 %v82, %v820
  %v822 = vand.u32 %v821, 4294901760
  %823 = vmatmul.mubr.f32.gmra.mrb[0].mxu0 %v822
  %v824 = vpop.f32.mrb[0].mxu0
  %v825 = vadd.f32 %v636, %v824
  %v826 = vpop.f32.mrb[0].mxu0
  %827 = vmatprep.mubr.f32.mxu0 0.0
  %v828 = vand.u32 %v85, 4294901760
  %v829 = vsub.f32 %v85, %v828
  %v830 = vand.u32 %v829, 4294901760
  %831 = vmatmul.mubr.f32.gmra.mrb[0].mxu0 %v830
  %v832 = vpop.f32.mrb[0].mxu0
  %v833 = vadd.f32 %v643, %v832
  %v834 = vpop.f32.mrb[0].mxu0
  %835 = vmatprep.mubr.f32.mxu0 0.0
  %v836 = vand.u32 %v88, 4294901760
  %v837 = vsub.f32 %v88, %v836
  %v838 = vand.u32 %v837, 4294901760
  %839 = vmatmul.mubr.f32.gmra.mrb[0].mxu0 %v838
  %v840 = vpop.f32.mrb[0].mxu0
  %v841 = vadd.f32 %v650, %v840
  %v842 = vpop.f32.mrb[0].mxu0
  %843 = vmatprep.mubr.f32.mxu0 0.0
  %v844 = vand.u32 %v91, 4294901760
  %v845 = vsub.f32 %v91, %v844
  %v846 = vand.u32 %v845, 4294901760
  %847 = vmatmul.mubr.f32.gmra.mrb[0].mxu0 %v846
  %v848 = vpop.f32.mrb[0].mxu0
  %v849 = vadd.f32 %v657, %v848
  %v850 = vpop.f32.mrb[0].mxu0
  %851 = vmatprep.mubr.f32.mxu0 0.0
  %v852 = vand.u32 %v94, 4294901760
  %v853 = vsub.f32 %v94, %v852
  %v854 = vand.u32 %v853, 4294901760
  %855 = vmatmul.mubr.f32.gmra.mrb[0].mxu0 %v854
  %v856 = vpop.f32.mrb[0].mxu0
  %v857 = vadd.f32 %v664, %v856
  %v858 = vpop.f32.mrb[0].mxu0
  %859 = vmatprep.mubr.f32.mxu0 0.0
  %v860 = vand.u32 %v97, 4294901760
  %v861 = vsub.f32 %v97, %v860
  %v862 = vand.u32 %v861, 4294901760
  %863 = vmatmul.mubr.f32.gmra.mrb[0].mxu0 %v862
  %v864 = vpop.f32.mrb[0].mxu0
  %v865 = vadd.f32 %v671, %v864
  %v866 = vpop.f32.mrb[0].mxu0
  %867 = vdwg.mxu0
  %868 = vmatprep.subr.mxu0 0.0
  %v869 = vand.u32 %v101, 4294901760
  %v870 = vsub.f32 %v101, %v869
  %v871 = vand.u32 %v870, 4294901760
  %872 = vmatpush1.msra.mxu0 %v871
  %873 = vmatprep.subr.mxu0 0.0
  %874 = vmatpush1.msra.mxu0 0.0
  %875 = vmatprep.subr.mxu0 0.0
  %876 = vmatpush1.msra.mxu0 0.0
  %877 = vmatprep.subr.mxu0 0.0
  %878 = vmatpush1.msra.mxu0 0.0
  %879 = vmatprep.subr.mxu0 0.0
  %880 = vmatpush1.msra.mxu0 0.0
  %881 = vmatprep.subr.mxu0 0.0
  %882 = vmatpush1.msra.mxu0 0.0
  %883 = vmatprep.subr.mxu0 0.0
  %884 = vmatpush1.msra.mxu0 0.0
  %885 = vmatprep.subr.mxu0 0.0
  %886 = vmatpush1.msra.mxu0 0.0
  %887 = vmatprep.subr.mxu0 0.0
  %888 = vmatpush1.msra.mxu0 0.0
  %889 = vmatprep.subr.mxu0 0.0
  %890 = vmatpush1.msra.mxu0 0.0
  %891 = vmatprep.subr.mxu0 0.0
  %892 = vmatpush1.msra.mxu0 0.0
  %893 = vmatprep.subr.mxu0 0.0
  %894 = vmatpush1.msra.mxu0 0.0
  %895 = vmatprep.subr.mxu0 0.0
  %896 = vmatpush1.msra.mxu0 0.0
  %897 = vmatprep.subr.mxu0 0.0
  %898 = vmatpush1.msra.mxu0 0.0
  %899 = vmatprep.subr.mxu0 0.0
  %900 = vmatpush1.msra.mxu0 0.0
  %901 = vmatprep.subr.mxu0 0.0
  %902 = vmatpush1.msra.mxu0 0.0
  %903 = vmatprep.subr.mxu0 0.0
  %904 = vmatpush1.msra.mxu0 0.0
  %905 = vmatprep.subr.mxu0 0.0
  %906 = vmatpush1.msra.mxu0 0.0
  %907 = vmatprep.subr.mxu0 0.0
  %908 = vmatpush1.msra.mxu0 0.0
  %909 = vmatprep.subr.mxu0 0.0
  %910 = vmatpush1.msra.mxu0 0.0
  %911 = vmatprep.subr.mxu0 0.0
  %912 = vmatpush1.msra.mxu0 0.0
  %913 = vmatprep.subr.mxu0 0.0
  %914 = vmatpush1.msra.mxu0 0.0
  %915 = vmatprep.subr.mxu0 0.0
  %916 = vmatpush1.msra.mxu0 0.0
  %917 = vmatprep.subr.mxu0 0.0
  %918 = vmatpush1.msra.mxu0 0.0
  %919 = vmatprep.subr.mxu0 0.0
  %920 = vmatpush1.msra.mxu0 0.0
  %921 = vmatprep.subr.mxu0 0.0
  %922 = vmatpush1.msra.mxu0 0.0
  %923 = vmatprep.subr.mxu0 0.0
  %924 = vmatpush1.msra.mxu0 0.0
  %925 = vmatprep.subr.mxu0 0.0
  %926 = vmatpush1.msra.mxu0 0.0
  %927 = vmatprep.subr.mxu0 0.0
  %928 = vmatpush1.msra.mxu0 0.0
  %929 = vmatprep.subr.mxu0 0.0
  %930 = vmatpush1.msra.mxu0 0.0
  %931 = vmatprep.subr.mxu0 0.0
  %932 = vmatpush1.msra.mxu0 0.0
  %933 = vmatprep.subr.mxu0 0.0
  %934 = vmatpush1.msra.mxu0 0.0
  %935 = vmatprep.mubr.f32.mxu0 0.0
  %v936 = vand.u32 %v52, 4294901760
  %937 = vmatmul.mubr.f32.gmra.mrb[0].mxu0 %v936
  %v938 = vpop.f32.mrb[0].mxu0
  %v939 = vadd.f32 %v745, %v938
  %v940 = vpop.f32.mrb[0].mxu0
  %941 = vmatprep.mubr.f32.mxu0 0.0
  %v942 = vand.u32 %v55, 4294901760
  %943 = vmatmul.mubr.f32.gmra.mrb[0].mxu0 %v942
  %v944 = vpop.f32.mrb[0].mxu0
  %v945 = vadd.f32 %v753, %v944
  %v946 = vpop.f32.mrb[0].mxu0
  %947 = vmatprep.mubr.f32.mxu0 0.0
  %v948 = vand.u32 %v58, 4294901760
  %949 = vmatmul.mubr.f32.gmra.mrb[0].mxu0 %v948
  %v950 = vpop.f32.mrb[0].mxu0
  %v951 = vadd.f32 %v761, %v950
  %v952 = vpop.f32.mrb[0].mxu0
  %953 = vmatprep.mubr.f32.mxu0 0.0
  %v954 = vand.u32 %v61, 4294901760
  %955 = vmatmul.mubr.f32.gmra.mrb[0].mxu0 %v954
  %v956 = vpop.f32.mrb[0].mxu0
  %v957 = vadd.f32 %v769, %v956
  %v958 = vpop.f32.mrb[0].mxu0
  %959 = vmatprep.mubr.f32.mxu0 0.0
  %v960 = vand.u32 %v64, 4294901760
  %961 = vmatmul.mubr.f32.gmra.mrb[0].mxu0 %v960
  %v962 = vpop.f32.mrb[0].mxu0
  %v963 = vadd.f32 %v777, %v962
  %v964 = vpop.f32.mrb[0].mxu0
  %965 = vmatprep.mubr.f32.mxu0 0.0
  %v966 = vand.u32 %v67, 4294901760
  %967 = vmatmul.mubr.f32.gmra.mrb[0].mxu0 %v966
  %v968 = vpop.f32.mrb[0].mxu0
  %v969 = vadd.f32 %v785, %v968
  %v970 = vpop.f32.mrb[0].mxu0
  %971 = vmatprep.mubr.f32.mxu0 0.0
  %v972 = vand.u32 %v70, 4294901760
  %973 = vmatmul.mubr.f32.gmra.mrb[0].mxu0 %v972
  %v974 = vpop.f32.mrb[0].mxu0
  %v975 = vadd.f32 %v793, %v974
  %v976 = vpop.f32.mrb[0].mxu0
  %977 = vmatprep.mubr.f32.mxu0 0.0
  %v978 = vand.u32 %v73, 4294901760
  %979 = vmatmul.mubr.f32.gmra.mrb[0].mxu0 %v978
  %v980 = vpop.f32.mrb[0].mxu0
  %v981 = vadd.f32 %v801, %v980
  %v982 = vpop.f32.mrb[0].mxu0
  %983 = vmatprep.mubr.f32.mxu0 0.0
  %v984 = vand.u32 %v76, 4294901760
  %985 = vmatmul.mubr.f32.gmra.mrb[0].mxu0 %v984
  %v986 = vpop.f32.mrb[0].mxu0
  %v987 = vadd.f32 %v809, %v986
  %v988 = vpop.f32.mrb[0].mxu0
  %989 = vmatprep.mubr.f32.mxu0 0.0
  %v990 = vand.u32 %v79, 4294901760
  %991 = vmatmul.mubr.f32.gmra.mrb[0].mxu0 %v990
  %v992 = vpop.f32.mrb[0].mxu0
  %v993 = vadd.f32 %v817, %v992
  %v994 = vpop.f32.mrb[0].mxu0
  %995 = vmatprep.mubr.f32.mxu0 0.0
  %v996 = vand.u32 %v82, 4294901760
  %997 = vmatmul.mubr.f32.gmra.mrb[0].mxu0 %v996
  %v998 = vpop.f32.mrb[0].mxu0
  %v999 = vadd.f32 %v825, %v998
  %v1000 = vpop.f32.mrb[0].mxu0
  %1001 = vmatprep.mubr.f32.mxu0 0.0
  %v1002 = vand.u32 %v85, 4294901760
  %1003 = vmatmul.mubr.f32.gmra.mrb[0].mxu0 %v1002
  %v1004 = vpop.f32.mrb[0].mxu0
  %v1005 = vadd.f32 %v833, %v1004
  %v1006 = vpop.f32.mrb[0].mxu0
  %1007 = vmatprep.mubr.f32.mxu0 0.0
  %v1008 = vand.u32 %v88, 4294901760
  %1009 = vmatmul.mubr.f32.gmra.mrb[0].mxu0 %v1008
  %v1010 = vpop.f32.mrb[0].mxu0
  %v1011 = vadd.f32 %v841, %v1010
  %v1012 = vpop.f32.mrb[0].mxu0
  %1013 = vmatprep.mubr.f32.mxu0 0.0
  %v1014 = vand.u32 %v91, 4294901760
  %1015 = vmatmul.mubr.f32.gmra.mrb[0].mxu0 %v1014
  %v1016 = vpop.f32.mrb[0].mxu0
  %v1017 = vadd.f32 %v849, %v1016
  %v1018 = vpop.f32.mrb[0].mxu0
  %1019 = vmatprep.mubr.f32.mxu0 0.0
  %v1020 = vand.u32 %v94, 4294901760
  %1021 = vmatmul.mubr.f32.gmra.mrb[0].mxu0 %v1020
  %v1022 = vpop.f32.mrb[0].mxu0
  %v1023 = vadd.f32 %v857, %v1022
  %v1024 = vpop.f32.mrb[0].mxu0
  %1025 = vmatprep.mubr.f32.mxu0 0.0
  %v1026 = vand.u32 %v97, 4294901760
  %1027 = vmatmul.mubr.f32.gmra.mrb[0].mxu0 %v1026
  %v1028 = vpop.f32.mrb[0].mxu0
  %v1029 = vadd.f32 %v865, %v1028
  %v1030 = vpop.f32.mrb[0].mxu0
  %1031 = vdwg.mxu0
  %1032 = vmatprep.subr.mxu0 0.0
  %v1033 = vand.u32 %v101, 4294901760
  %1034 = vmatpush1.msra.mxu0 %v1033
  %1035 = vmatprep.subr.mxu0 0.0
  %1036 = vmatpush1.msra.mxu0 0.0
  %1037 = vmatprep.subr.mxu0 0.0
  %1038 = vmatpush1.msra.mxu0 0.0
  %1039 = vmatprep.subr.mxu0 0.0
  %1040 = vmatpush1.msra.mxu0 0.0
  %1041 = vmatprep.subr.mxu0 0.0
  %1042 = vmatpush1.msra.mxu0 0.0
  %1043 = vmatprep.subr.mxu0 0.0
  %1044 = vmatpush1.msra.mxu0 0.0
  %1045 = vmatprep.subr.mxu0 0.0
  %1046 = vmatpush1.msra.mxu0 0.0
  %1047 = vmatprep.subr.mxu0 0.0
  %1048 = vmatpush1.msra.mxu0 0.0
  %1049 = vmatprep.subr.mxu0 0.0
  %1050 = vmatpush1.msra.mxu0 0.0
  %1051 = vmatprep.subr.mxu0 0.0
  %1052 = vmatpush1.msra.mxu0 0.0
  %1053 = vmatprep.subr.mxu0 0.0
  %1054 = vmatpush1.msra.mxu0 0.0
  %1055 = vmatprep.subr.mxu0 0.0
  %1056 = vmatpush1.msra.mxu0 0.0
  %1057 = vmatprep.subr.mxu0 0.0
  %1058 = vmatpush1.msra.mxu0 0.0
  %1059 = vmatprep.subr.mxu0 0.0
  %1060 = vmatpush1.msra.mxu0 0.0
  %1061 = vmatprep.subr.mxu0 0.0
  %1062 = vmatpush1.msra.mxu0 0.0
  %1063 = vmatprep.subr.mxu0 0.0
  %1064 = vmatpush1.msra.mxu0 0.0
  %1065 = vmatprep.subr.mxu0 0.0
  %1066 = vmatpush1.msra.mxu0 0.0
  %1067 = vmatprep.subr.mxu0 0.0
  %1068 = vmatpush1.msra.mxu0 0.0
  %1069 = vmatprep.subr.mxu0 0.0
  %1070 = vmatpush1.msra.mxu0 0.0
  %1071 = vmatprep.subr.mxu0 0.0
  %1072 = vmatpush1.msra.mxu0 0.0
  %1073 = vmatprep.subr.mxu0 0.0
  %1074 = vmatpush1.msra.mxu0 0.0
  %1075 = vmatprep.subr.mxu0 0.0
  %1076 = vmatpush1.msra.mxu0 0.0
  %1077 = vmatprep.subr.mxu0 0.0
  %1078 = vmatpush1.msra.mxu0 0.0
  %1079 = vmatprep.subr.mxu0 0.0
  %1080 = vmatpush1.msra.mxu0 0.0
  %1081 = vmatprep.subr.mxu0 0.0
  %1082 = vmatpush1.msra.mxu0 0.0
  %1083 = vmatprep.subr.mxu0 0.0
  %1084 = vmatpush1.msra.mxu0 0.0
  %1085 = vmatprep.subr.mxu0 0.0
  %1086 = vmatpush1.msra.mxu0 0.0
  %1087 = vmatprep.subr.mxu0 0.0
  %1088 = vmatpush1.msra.mxu0 0.0
  %1089 = vmatprep.subr.mxu0 0.0
  %1090 = vmatpush1.msra.mxu0 0.0
  %1091 = vmatprep.subr.mxu0 0.0
  %1092 = vmatpush1.msra.mxu0 0.0
  %1093 = vmatprep.subr.mxu0 0.0
  %1094 = vmatpush1.msra.mxu0 0.0
  %1095 = vmatprep.subr.mxu0 0.0
  %1096 = vmatpush1.msra.mxu0 0.0
  %1097 = vmatprep.mubr.f32.mxu0 0.0
  %v1098 = vand.u32 %v52, 4294901760
  %1099 = vmatmul.mubr.f32.gmra.mrb[0].mxu0 %v1098
  %v1100 = vpop.f32.mrb[0].mxu0
  %v1101 = vadd.f32 %v939, %v1100
  %v1102 = vpop.f32.mrb[0].mxu0
  %1103 = vmatprep.mubr.f32.mxu0 0.0
  %v1104 = vand.u32 %v55, 4294901760
  %1105 = vmatmul.mubr.f32.gmra.mrb[0].mxu0 %v1104
  %v1106 = vpop.f32.mrb[0].mxu0
  %v1107 = vadd.f32 %v945, %v1106
  %v1108 = vpop.f32.mrb[0].mxu0
  %1109 = vmatprep.mubr.f32.mxu0 0.0
  %v1110 = vand.u32 %v58, 4294901760
  %1111 = vmatmul.mubr.f32.gmra.mrb[0].mxu0 %v1110
  %v1112 = vpop.f32.mrb[0].mxu0
  %v1113 = vadd.f32 %v951, %v1112
  %v1114 = vpop.f32.mrb[0].mxu0
  %1115 = vmatprep.mubr.f32.mxu0 0.0
  %v1116 = vand.u32 %v61, 4294901760
  %1117 = vmatmul.mubr.f32.gmra.mrb[0].mxu0 %v1116
  %v1118 = vpop.f32.mrb[0].mxu0
  %v1119 = vadd.f32 %v957, %v1118
  %v1120 = vpop.f32.mrb[0].mxu0
  %1121 = vmatprep.mubr.f32.mxu0 0.0
  %v1122 = vand.u32 %v64, 4294901760
  %1123 = vmatmul.mubr.f32.gmra.mrb[0].mxu0 %v1122
  %v1124 = vpop.f32.mrb[0].mxu0
  %v1125 = vadd.f32 %v963, %v1124
  %v1126 = vpop.f32.mrb[0].mxu0
  %1127 = vmatprep.mubr.f32.mxu0 0.0
  %v1128 = vand.u32 %v67, 4294901760
  %1129 = vmatmul.mubr.f32.gmra.mrb[0].mxu0 %v1128
  %v1130 = vpop.f32.mrb[0].mxu0
  %v1131 = vadd.f32 %v969, %v1130
  %v1132 = vpop.f32.mrb[0].mxu0
  %1133 = vmatprep.mubr.f32.mxu0 0.0
  %v1134 = vand.u32 %v70, 4294901760
  %1135 = vmatmul.mubr.f32.gmra.mrb[0].mxu0 %v1134
  %v1136 = vpop.f32.mrb[0].mxu0
  %v1137 = vadd.f32 %v975, %v1136
  %v1138 = vpop.f32.mrb[0].mxu0
  %1139 = vmatprep.mubr.f32.mxu0 0.0
  %v1140 = vand.u32 %v73, 4294901760
  %1141 = vmatmul.mubr.f32.gmra.mrb[0].mxu0 %v1140
  %v1142 = vpop.f32.mrb[0].mxu0
  %v1143 = vadd.f32 %v981, %v1142
  %v1144 = vpop.f32.mrb[0].mxu0
  %1145 = vmatprep.mubr.f32.mxu0 0.0
  %v1146 = vand.u32 %v76, 4294901760
  %1147 = vmatmul.mubr.f32.gmra.mrb[0].mxu0 %v1146
  %v1148 = vpop.f32.mrb[0].mxu0
  %v1149 = vadd.f32 %v987, %v1148
  %v1150 = vpop.f32.mrb[0].mxu0
  %1151 = vmatprep.mubr.f32.mxu0 0.0
  %v1152 = vand.u32 %v79, 4294901760
  %1153 = vmatmul.mubr.f32.gmra.mrb[0].mxu0 %v1152
  %v1154 = vpop.f32.mrb[0].mxu0
  %v1155 = vadd.f32 %v993, %v1154
  %v1156 = vpop.f32.mrb[0].mxu0
  %1157 = vmatprep.mubr.f32.mxu0 0.0
  %v1158 = vand.u32 %v82, 4294901760
  %1159 = vmatmul.mubr.f32.gmra.mrb[0].mxu0 %v1158
  %v1160 = vpop.f32.mrb[0].mxu0
  %v1161 = vadd.f32 %v999, %v1160
  %v1162 = vpop.f32.mrb[0].mxu0
  %1163 = vmatprep.mubr.f32.mxu0 0.0
  %v1164 = vand.u32 %v85, 4294901760
  %1165 = vmatmul.mubr.f32.gmra.mrb[0].mxu0 %v1164
  %v1166 = vpop.f32.mrb[0].mxu0
  %v1167 = vadd.f32 %v1005, %v1166
  %v1168 = vpop.f32.mrb[0].mxu0
  %1169 = vmatprep.mubr.f32.mxu0 0.0
  %v1170 = vand.u32 %v88, 4294901760
  %1171 = vmatmul.mubr.f32.gmra.mrb[0].mxu0 %v1170
  %v1172 = vpop.f32.mrb[0].mxu0
  %v1173 = vadd.f32 %v1011, %v1172
  %v1174 = vpop.f32.mrb[0].mxu0
  %1175 = vmatprep.mubr.f32.mxu0 0.0
  %v1176 = vand.u32 %v91, 4294901760
  %1177 = vmatmul.mubr.f32.gmra.mrb[0].mxu0 %v1176
  %v1178 = vpop.f32.mrb[0].mxu0
  %v1179 = vadd.f32 %v1017, %v1178
  %v1180 = vpop.f32.mrb[0].mxu0
  %1181 = vmatprep.mubr.f32.mxu0 0.0
  %v1182 = vand.u32 %v94, 4294901760
  %1183 = vmatmul.mubr.f32.gmra.mrb[0].mxu0 %v1182
  %v1184 = vpop.f32.mrb[0].mxu0
  %v1185 = vadd.f32 %v1023, %v1184
  %v1186 = vpop.f32.mrb[0].mxu0
  %1187 = vmatprep.mubr.f32.mxu0 0.0
  %v1188 = vand.u32 %v97, 4294901760
  %1189 = vmatmul.mubr.f32.gmra.mrb[0].mxu0 %v1188
  %v1190 = vpop.f32.mrb[0].mxu0
  %v1191 = vadd.f32 %v1029, %v1190
  %v1192 = vpop.f32.mrb[0].mxu0
  %1193 = vdwg.mxu0
  %v1194 = vmax.f32 %v1101, 0.0
  %v1195 = vmax.f32 %v1107, 0.0
  %v1196 = vmax.f32 %v1113, 0.0
  %v1197 = vmax.f32 %v1119, 0.0
  %v1198 = vmax.f32 %v1125, 0.0
  %v1199 = vmax.f32 %v1131, 0.0
  %v1200 = vmax.f32 %v1137, 0.0
  %v1201 = vmax.f32 %v1143, 0.0
  %v1202 = vmax.f32 %v1149, 0.0
  %v1203 = vmax.f32 %v1155, 0.0
  %v1204 = vmax.f32 %v1161, 0.0
  %v1205 = vmax.f32 %v1167, 0.0
  %v1206 = vmax.f32 %v1173, 0.0
  %v1207 = vmax.f32 %v1179, 0.0
  %v1208 = vmax.f32 %v1185, 0.0
  %v1209 = vmax.f32 %v1191, 0.0
  %v1210 = vld [vmem:[%s3] sm:$0xff]
  %v1211 = vld [vmem:[%s3 + $0x8] sm:$0xff]
  %v1212 = vld [vmem:[%s3 + $0x10] sm:$0xff]
  %v1213 = vld [vmem:[%s3 + $0x18] sm:$0xff]
  %v1214 = vld [vmem:[%s3 + $0x20] sm:$0xff]
  %v1215 = vld [vmem:[%s3 + $0x28] sm:$0xff]
  %v1216 = vld [vmem:[%s3 + $0x30] sm:$0xff]
  %v1217 = vld [vmem:[%s3 + $0x38] sm:$0xff]
  %v1218 = vld [vmem:[%s4] sm:$0x1]
  %v1220 = vlaneseq
  %v1221 = vshrl.u32 %v1220, 7
  %v1222 = vsub.s32 0, %v1221
  %v1223 = vrot.slane %v1218, %v1222
  %vm1225 = vcmask 523264
  %v1227 = vsel %vm1225, %v1194, 0
  %v1230 = vsel %vm1225, %v1195, 0
  %v1233 = vsel %vm1225, %v1196, 0
  %v1236 = vsel %vm1225, %v1197, 0
  %v1239 = vsel %vm1225, %v1198, 0
  %v1242 = vsel %vm1225, %v1199, 0
  %v1245 = vsel %vm1225, %v1200, 0
  %v1248 = vsel %vm1225, %v1201, 0
  %v1251 = vsel %vm1225, %v1202, 0
  %v1254 = vsel %vm1225, %v1203, 0
  %v1257 = vsel %vm1225, %v1204, 0
  %v1260 = vsel %vm1225, %v1205, 0
  %v1263 = vsel %vm1225, %v1206, 0
  %v1266 = vsel %vm1225, %v1207, 0
  %v1269 = vsel %vm1225, %v1208, 0
  %v1272 = vsel %vm1225, %v1209, 0
  %1274 = vmatprep.subr.mxu0 0.0
  %v1275 = vand.u32 %v1210, 4294901760
  %1276 = vmatpush1.msra.mxu0 %v1275
  %1277 = vmatprep.subr.mxu0 0.0
  %v1278 = vand.u32 %v1211, 4294901760
  %1279 = vmatpush1.msra.mxu0 %v1278
  %1280 = vmatprep.subr.mxu0 0.0
  %v1281 = vand.u32 %v1212, 4294901760
  %1282 = vmatpush1.msra.mxu0 %v1281
  %1283 = vmatprep.subr.mxu0 0.0
  %v1284 = vand.u32 %v1213, 4294901760
  %1285 = vmatpush1.msra.mxu0 %v1284
  %1286 = vmatprep.subr.mxu0 0.0
  %v1287 = vand.u32 %v1214, 4294901760
  %1288 = vmatpush1.msra.mxu0 %v1287
  %1289 = vmatprep.subr.mxu0 0.0
  %v1290 = vand.u32 %v1215, 4294901760
  %1291 = vmatpush1.msra.mxu0 %v1290
  %1292 = vmatprep.subr.mxu0 0.0
  %v1293 = vand.u32 %v1216, 4294901760
  %1294 = vmatpush1.msra.mxu0 %v1293
  %1295 = vmatprep.subr.mxu0 0.0
  %v1296 = vand.u32 %v1217, 4294901760
  %1297 = vmatpush1.msra.mxu0 %v1296
  %1298 = vmatprep.subr.mxu0 0.0
  %1299 = vmatpush1.msra.mxu0 0.0
  %1300 = vmatprep.subr.mxu0 0.0
  %1301 = vmatpush1.msra.mxu0 0.0
  %1302 = vmatprep.subr.mxu0 0.0
  %1303 = vmatpush1.msra.mxu0 0.0
  %1304 = vmatprep.subr.mxu0 0.0
  %1305 = vmatpush1.msra.mxu0 0.0
  %1306 = vmatprep.subr.mxu0 0.0
  %1307 = vmatpush1.msra.mxu0 0.0
  %1308 = vmatprep.subr.mxu0 0.0
  %1309 = vmatpush1.msra.mxu0 0.0
  %1310 = vmatprep.subr.mxu0 0.0
  %1311 = vmatpush1.msra.mxu0 0.0
  %1312 = vmatprep.subr.mxu0 0.0
  %1313 = vmatpush1.msra.mxu0 0.0
  %1314 = vmatprep.subr.mxu0 0.0
  %1315 = vmatpush1.msra.mxu0 0.0
  %1316 = vmatprep.subr.mxu0 0.0
  %1317 = vmatpush1.msra.mxu0 0.0
  %1318 = vmatprep.subr.mxu0 0.0
  %1319 = vmatpush1.msra.mxu0 0.0
  %1320 = vmatprep.subr.mxu0 0.0
  %1321 = vmatpush1.msra.mxu0 0.0
  %1322 = vmatprep.subr.mxu0 0.0
  %1323 = vmatpush1.msra.mxu0 0.0
  %1324 = vmatprep.subr.mxu0 0.0
  %1325 = vmatpush1.msra.mxu0 0.0
  %1326 = vmatprep.subr.mxu0 0.0
  %1327 = vmatpush1.msra.mxu0 0.0
  %1328 = vmatprep.subr.mxu0 0.0
  %1329 = vmatpush1.msra.mxu0 0.0
  %1330 = vmatprep.subr.mxu0 0.0
  %1331 = vmatpush1.msra.mxu0 0.0
  %1332 = vmatprep.subr.mxu0 0.0
  %1333 = vmatpush1.msra.mxu0 0.0
  %1334 = vmatprep.subr.mxu0 0.0
  %1335 = vmatpush1.msra.mxu0 0.0
  %1336 = vmatprep.subr.mxu0 0.0
  %1337 = vmatpush1.msra.mxu0 0.0
  %1338 = vmatprep.subr.mxu0 0.0
  %1339 = vmatpush1.msra.mxu0 0.0
  %1340 = vmatprep.subr.mxu0 0.0
  %1341 = vmatpush1.msra.mxu0 0.0
  %1342 = vmatprep.subr.mxu0 0.0
  %1343 = vmatpush1.msra.mxu0 0.0
  %1344 = vmatprep.subr.mxu0 0.0
  %1345 = vmatpush1.msra.mxu0 0.0
  %1346 = vmatprep.mubr.f32.mxu0 0.0
  %v1347 = vand.u32 %v1227, 4294901760
  %v1348 = vsub.f32 %v1227, %v1347
  %v1349 = vand.u32 %v1348, 4294901760
  %v1350 = vsub.f32 %v1348, %v1349
  %v1351 = vand.u32 %v1350, 4294901760
  %1352 = vmatmul.mubr.f32.gmra.mrb[0].mxu0 %v1351
  %v1353 = vpop.f32.mrb[0].mxu0
  %v1354 = vadd.f32 %v1223, %v1353
  %v1355 = vpop.f32.mrb[0].mxu0
  %1356 = vmatprep.mubr.f32.mxu0 0.0
  %v1357 = vand.u32 %v1230, 4294901760
  %v1358 = vsub.f32 %v1230, %v1357
  %v1359 = vand.u32 %v1358, 4294901760
  %v1360 = vsub.f32 %v1358, %v1359
  %v1361 = vand.u32 %v1360, 4294901760
  %1362 = vmatmul.mubr.f32.gmra.mrb[0].mxu0 %v1361
  %v1363 = vpop.f32.mrb[0].mxu0
  %v1364 = vadd.f32 %v1223, %v1363
  %v1365 = vpop.f32.mrb[0].mxu0
  %1366 = vmatprep.mubr.f32.mxu0 0.0
  %v1367 = vand.u32 %v1233, 4294901760
  %v1368 = vsub.f32 %v1233, %v1367
  %v1369 = vand.u32 %v1368, 4294901760
  %v1370 = vsub.f32 %v1368, %v1369
  %v1371 = vand.u32 %v1370, 4294901760
  %1372 = vmatmul.mubr.f32.gmra.mrb[0].mxu0 %v1371
  %v1373 = vpop.f32.mrb[0].mxu0
  %v1374 = vadd.f32 %v1223, %v1373
  %v1375 = vpop.f32.mrb[0].mxu0
  %1376 = vmatprep.mubr.f32.mxu0 0.0
  %v1377 = vand.u32 %v1236, 4294901760
  %v1378 = vsub.f32 %v1236, %v1377
  %v1379 = vand.u32 %v1378, 4294901760
  %v1380 = vsub.f32 %v1378, %v1379
  %v1381 = vand.u32 %v1380, 4294901760
  %1382 = vmatmul.mubr.f32.gmra.mrb[0].mxu0 %v1381
  %v1383 = vpop.f32.mrb[0].mxu0
  %v1384 = vadd.f32 %v1223, %v1383
  %v1385 = vpop.f32.mrb[0].mxu0
  %1386 = vmatprep.mubr.f32.mxu0 0.0
  %v1387 = vand.u32 %v1239, 4294901760
  %v1388 = vsub.f32 %v1239, %v1387
  %v1389 = vand.u32 %v1388, 4294901760
  %v1390 = vsub.f32 %v1388, %v1389
  %v1391 = vand.u32 %v1390, 4294901760
  %1392 = vmatmul.mubr.f32.gmra.mrb[0].mxu0 %v1391
  %v1393 = vpop.f32.mrb[0].mxu0
  %v1394 = vadd.f32 %v1223, %v1393
  %v1395 = vpop.f32.mrb[0].mxu0
  %1396 = vmatprep.mubr.f32.mxu0 0.0
  %v1397 = vand.u32 %v1242, 4294901760
  %v1398 = vsub.f32 %v1242, %v1397
  %v1399 = vand.u32 %v1398, 4294901760
  %v1400 = vsub.f32 %v1398, %v1399
  %v1401 = vand.u32 %v1400, 4294901760
  %1402 = vmatmul.mubr.f32.gmra.mrb[0].mxu0 %v1401
  %v1403 = vpop.f32.mrb[0].mxu0
  %v1404 = vadd.f32 %v1223, %v1403
  %v1405 = vpop.f32.mrb[0].mxu0
  %1406 = vmatprep.mubr.f32.mxu0 0.0
  %v1407 = vand.u32 %v1245, 4294901760
  %v1408 = vsub.f32 %v1245, %v1407
  %v1409 = vand.u32 %v1408, 4294901760
  %v1410 = vsub.f32 %v1408, %v1409
  %v1411 = vand.u32 %v1410, 4294901760
  %1412 = vmatmul.mubr.f32.gmra.mrb[0].mxu0 %v1411
  %v1413 = vpop.f32.mrb[0].mxu0
  %v1414 = vadd.f32 %v1223, %v1413
  %v1415 = vpop.f32.mrb[0].mxu0
  %1416 = vmatprep.mubr.f32.mxu0 0.0
  %v1417 = vand.u32 %v1248, 4294901760
  %v1418 = vsub.f32 %v1248, %v1417
  %v1419 = vand.u32 %v1418, 4294901760
  %v1420 = vsub.f32 %v1418, %v1419
  %v1421 = vand.u32 %v1420, 4294901760
  %1422 = vmatmul.mubr.f32.gmra.mrb[0].mxu0 %v1421
  %v1423 = vpop.f32.mrb[0].mxu0
  %v1424 = vadd.f32 %v1223, %v1423
  %v1425 = vpop.f32.mrb[0].mxu0
  %1426 = vmatprep.mubr.f32.mxu0 0.0
  %v1427 = vand.u32 %v1251, 4294901760
  %v1428 = vsub.f32 %v1251, %v1427
  %v1429 = vand.u32 %v1428, 4294901760
  %v1430 = vsub.f32 %v1428, %v1429
  %v1431 = vand.u32 %v1430, 4294901760
  %1432 = vmatmul.mubr.f32.gmra.mrb[0].mxu0 %v1431
  %v1433 = vpop.f32.mrb[0].mxu0
  %v1434 = vadd.f32 %v1223, %v1433
  %v1435 = vpop.f32.mrb[0].mxu0
  %1436 = vmatprep.mubr.f32.mxu0 0.0
  %v1437 = vand.u32 %v1254, 4294901760
  %v1438 = vsub.f32 %v1254, %v1437
  %v1439 = vand.u32 %v1438, 4294901760
  %v1440 = vsub.f32 %v1438, %v1439
  %v1441 = vand.u32 %v1440, 4294901760
  %1442 = vmatmul.mubr.f32.gmra.mrb[0].mxu0 %v1441
  %v1443 = vpop.f32.mrb[0].mxu0
  %v1444 = vadd.f32 %v1223, %v1443
  %v1445 = vpop.f32.mrb[0].mxu0
  %1446 = vmatprep.mubr.f32.mxu0 0.0
  %v1447 = vand.u32 %v1257, 4294901760
  %v1448 = vsub.f32 %v1257, %v1447
  %v1449 = vand.u32 %v1448, 4294901760
  %v1450 = vsub.f32 %v1448, %v1449
  %v1451 = vand.u32 %v1450, 4294901760
  %1452 = vmatmul.mubr.f32.gmra.mrb[0].mxu0 %v1451
  %v1453 = vpop.f32.mrb[0].mxu0
  %v1454 = vadd.f32 %v1223, %v1453
  %v1455 = vpop.f32.mrb[0].mxu0
  %1456 = vmatprep.mubr.f32.mxu0 0.0
  %v1457 = vand.u32 %v1260, 4294901760
  %v1458 = vsub.f32 %v1260, %v1457
  %v1459 = vand.u32 %v1458, 4294901760
  %v1460 = vsub.f32 %v1458, %v1459
  %v1461 = vand.u32 %v1460, 4294901760
  %1462 = vmatmul.mubr.f32.gmra.mrb[0].mxu0 %v1461
  %v1463 = vpop.f32.mrb[0].mxu0
  %v1464 = vadd.f32 %v1223, %v1463
  %v1465 = vpop.f32.mrb[0].mxu0
  %1466 = vmatprep.mubr.f32.mxu0 0.0
  %v1467 = vand.u32 %v1263, 4294901760
  %v1468 = vsub.f32 %v1263, %v1467
  %v1469 = vand.u32 %v1468, 4294901760
  %v1470 = vsub.f32 %v1468, %v1469
  %v1471 = vand.u32 %v1470, 4294901760
  %1472 = vmatmul.mubr.f32.gmra.mrb[0].mxu0 %v1471
  %v1473 = vpop.f32.mrb[0].mxu0
  %v1474 = vadd.f32 %v1223, %v1473
  %v1475 = vpop.f32.mrb[0].mxu0
  %1476 = vmatprep.mubr.f32.mxu0 0.0
  %v1477 = vand.u32 %v1266, 4294901760
  %v1478 = vsub.f32 %v1266, %v1477
  %v1479 = vand.u32 %v1478, 4294901760
  %v1480 = vsub.f32 %v1478, %v1479
  %v1481 = vand.u32 %v1480, 4294901760
  %1482 = vmatmul.mubr.f32.gmra.mrb[0].mxu0 %v1481
  %v1483 = vpop.f32.mrb[0].mxu0
  %v1484 = vadd.f32 %v1223, %v1483
  %v1485 = vpop.f32.mrb[0].mxu0
  %1486 = vmatprep.mubr.f32.mxu0 0.0
  %v1487 = vand.u32 %v1269, 4294901760
  %v1488 = vsub.f32 %v1269, %v1487
  %v1489 = vand.u32 %v1488, 4294901760
  %v1490 = vsub.f32 %v1488, %v1489
  %v1491 = vand.u32 %v1490, 4294901760
  %1492 = vmatmul.mubr.f32.gmra.mrb[0].mxu0 %v1491
  %v1493 = vpop.f32.mrb[0].mxu0
  %v1494 = vadd.f32 %v1223, %v1493
  %v1495 = vpop.f32.mrb[0].mxu0
  %1496 = vmatprep.mubr.f32.mxu0 0.0
  %v1497 = vand.u32 %v1272, 4294901760
  %v1498 = vsub.f32 %v1272, %v1497
  %v1499 = vand.u32 %v1498, 4294901760
  %v1500 = vsub.f32 %v1498, %v1499
  %v1501 = vand.u32 %v1500, 4294901760
  %1502 = vmatmul.mubr.f32.gmra.mrb[0].mxu0 %v1501
  %v1503 = vpop.f32.mrb[0].mxu0
  %v1504 = vadd.f32 %v1223, %v1503
  %v1505 = vpop.f32.mrb[0].mxu0
  %1506 = vdwg.mxu0
  %1507 = vmatprep.subr.mxu0 0.0
  %v1508 = vand.u32 %v1210, 4294901760
  %v1509 = vsub.f32 %v1210, %v1508
  %v1510 = vand.u32 %v1509, 4294901760
  %v1511 = vsub.f32 %v1509, %v1510
  %v1512 = vand.u32 %v1511, 4294901760
  %1513 = vmatpush1.msra.mxu0 %v1512
  %1514 = vmatprep.subr.mxu0 0.0
  %v1515 = vand.u32 %v1211, 4294901760
  %v1516 = vsub.f32 %v1211, %v1515
  %v1517 = vand.u32 %v1516, 4294901760
  %v1518 = vsub.f32 %v1516, %v1517
  %v1519 = vand.u32 %v1518, 4294901760
  %1520 = vmatpush1.msra.mxu0 %v1519
  %1521 = vmatprep.subr.mxu0 0.0
  %v1522 = vand.u32 %v1212, 4294901760
  %v1523 = vsub.f32 %v1212, %v1522
  %v1524 = vand.u32 %v1523, 4294901760
  %v1525 = vsub.f32 %v1523, %v1524
  %v1526 = vand.u32 %v1525, 4294901760
  %1527 = vmatpush1.msra.mxu0 %v1526
  %1528 = vmatprep.subr.mxu0 0.0
  %v1529 = vand.u32 %v1213, 4294901760
  %v1530 = vsub.f32 %v1213, %v1529
  %v1531 = vand.u32 %v1530, 4294901760
  %v1532 = vsub.f32 %v1530, %v1531
  %v1533 = vand.u32 %v1532, 4294901760
  %1534 = vmatpush1.msra.mxu0 %v1533
  %1535 = vmatprep.subr.mxu0 0.0
  %v1536 = vand.u32 %v1214, 4294901760
  %v1537 = vsub.f32 %v1214, %v1536
  %v1538 = vand.u32 %v1537, 4294901760
  %v1539 = vsub.f32 %v1537, %v1538
  %v1540 = vand.u32 %v1539, 4294901760
  %1541 = vmatpush1.msra.mxu0 %v1540
  %1542 = vmatprep.subr.mxu0 0.0
  %v1543 = vand.u32 %v1215, 4294901760
  %v1544 = vsub.f32 %v1215, %v1543
  %v1545 = vand.u32 %v1544, 4294901760
  %v1546 = vsub.f32 %v1544, %v1545
  %v1547 = vand.u32 %v1546, 4294901760
  %1548 = vmatpush1.msra.mxu0 %v1547
  %1549 = vmatprep.subr.mxu0 0.0
  %v1550 = vand.u32 %v1216, 4294901760
  %v1551 = vsub.f32 %v1216, %v1550
  %v1552 = vand.u32 %v1551, 4294901760
  %v1553 = vsub.f32 %v1551, %v1552
  %v1554 = vand.u32 %v1553, 4294901760
  %1555 = vmatpush1.msra.mxu0 %v1554
  %1556 = vmatprep.subr.mxu0 0.0
  %v1557 = vand.u32 %v1217, 4294901760
  %v1558 = vsub.f32 %v1217, %v1557
  %v1559 = vand.u32 %v1558, 4294901760
  %v1560 = vsub.f32 %v1558, %v1559
  %v1561 = vand.u32 %v1560, 4294901760
  %1562 = vmatpush1.msra.mxu0 %v1561
  %1563 = vmatprep.subr.mxu0 0.0
  %1564 = vmatpush1.msra.mxu0 0.0
  %1565 = vmatprep.subr.mxu0 0.0
  %1566 = vmatpush1.msra.mxu0 0.0
  %1567 = vmatprep.subr.mxu0 0.0
  %1568 = vmatpush1.msra.mxu0 0.0
  %1569 = vmatprep.subr.mxu0 0.0
  %1570 = vmatpush1.msra.mxu0 0.0
  %1571 = vmatprep.subr.mxu0 0.0
  %1572 = vmatpush1.msra.mxu0 0.0
  %1573 = vmatprep.subr.mxu0 0.0
  %1574 = vmatpush1.msra.mxu0 0.0
  %1575 = vmatprep.subr.mxu0 0.0
  %1576 = vmatpush1.msra.mxu0 0.0
  %1577 = vmatprep.subr.mxu0 0.0
  %1578 = vmatpush1.msra.mxu0 0.0
  %1579 = vmatprep.subr.mxu0 0.0
  %1580 = vmatpush1.msra.mxu0 0.0
  %1581 = vmatprep.subr.mxu0 0.0
  %1582 = vmatpush1.msra.mxu0 0.0
  %1583 = vmatprep.subr.mxu0 0.0
  %1584 = vmatpush1.msra.mxu0 0.0
  %1585 = vmatprep.subr.mxu0 0.0
  %1586 = vmatpush1.msra.mxu0 0.0
  %1587 = vmatprep.subr.mxu0 0.0
  %1588 = vmatpush1.msra.mxu0 0.0
  %1589 = vmatprep.subr.mxu0 0.0
  %1590 = vmatpush1.msra.mxu0 0.0
  %1591 = vmatprep.subr.mxu0 0.0
  %1592 = vmatpush1.msra.mxu0 0.0
  %1593 = vmatprep.subr.mxu0 0.0
  %1594 = vmatpush1.msra.mxu0 0.0
  %1595 = vmatprep.subr.mxu0 0.0
  %1596 = vmatpush1.msra.mxu0 0.0
  %1597 = vmatprep.subr.mxu0 0.0
  %1598 = vmatpush1.msra.mxu0 0.0
  %1599 = vmatprep.subr.mxu0 0.0
  %1600 = vmatpush1.msra.mxu0 0.0
  %1601 = vmatprep.subr.mxu0 0.0
  %1602 = vmatpush1.msra.mxu0 0.0
  %1603 = vmatprep.subr.mxu0 0.0
  %1604 = vmatpush1.msra.mxu0 0.0
  %1605 = vmatprep.subr.mxu0 0.0
  %1606 = vmatpush1.msra.mxu0 0.0
  %1607 = vmatprep.subr.mxu0 0.0
  %1608 = vmatpush1.msra.mxu0 0.0
  %1609 = vmatprep.subr.mxu0 0.0
  %1610 = vmatpush1.msra.mxu0 0.0
  %1611 = vmatprep.mubr.f32.mxu0 0.0
  %v1612 = vand.u32 %v1227, 4294901760
  %1613 = vmatmul.mubr.f32.gmra.mrb[0].mxu0 %v1612
  %v1614 = vpop.f32.mrb[0].mxu0
  %v1615 = vadd.f32 %v1354, %v1614
  %v1616 = vpop.f32.mrb[0].mxu0
  %1617 = vmatprep.mubr.f32.mxu0 0.0
  %v1618 = vand.u32 %v1230, 4294901760
  %1619 = vmatmul.mubr.f32.gmra.mrb[0].mxu0 %v1618
  %v1620 = vpop.f32.mrb[0].mxu0
  %v1621 = vadd.f32 %v1364, %v1620
  %v1622 = vpop.f32.mrb[0].mxu0
  %1623 = vmatprep.mubr.f32.mxu0 0.0
  %v1624 = vand.u32 %v1233, 4294901760
  %1625 = vmatmul.mubr.f32.gmra.mrb[0].mxu0 %v1624
  %v1626 = vpop.f32.mrb[0].mxu0
  %v1627 = vadd.f32 %v1374, %v1626
  %v1628 = vpop.f32.mrb[0].mxu0
  %1629 = vmatprep.mubr.f32.mxu0 0.0
  %v1630 = vand.u32 %v1236, 4294901760
  %1631 = vmatmul.mubr.f32.gmra.mrb[0].mxu0 %v1630
  %v1632 = vpop.f32.mrb[0].mxu0
  %v1633 = vadd.f32 %v1384, %v1632
  %v1634 = vpop.f32.mrb[0].mxu0
  %1635 = vmatprep.mubr.f32.mxu0 0.0
  %v1636 = vand.u32 %v1239, 4294901760
  %1637 = vmatmul.mubr.f32.gmra.mrb[0].mxu0 %v1636
  %v1638 = vpop.f32.mrb[0].mxu0
  %v1639 = vadd.f32 %v1394, %v1638
  %v1640 = vpop.f32.mrb[0].mxu0
  %1641 = vmatprep.mubr.f32.mxu0 0.0
  %v1642 = vand.u32 %v1242, 4294901760
  %1643 = vmatmul.mubr.f32.gmra.mrb[0].mxu0 %v1642
  %v1644 = vpop.f32.mrb[0].mxu0
  %v1645 = vadd.f32 %v1404, %v1644
  %v1646 = vpop.f32.mrb[0].mxu0
  %1647 = vmatprep.mubr.f32.mxu0 0.0
  %v1648 = vand.u32 %v1245, 4294901760
  %1649 = vmatmul.mubr.f32.gmra.mrb[0].mxu0 %v1648
  %v1650 = vpop.f32.mrb[0].mxu0
  %v1651 = vadd.f32 %v1414, %v1650
  %v1652 = vpop.f32.mrb[0].mxu0
  %1653 = vmatprep.mubr.f32.mxu0 0.0
  %v1654 = vand.u32 %v1248, 4294901760
  %1655 = vmatmul.mubr.f32.gmra.mrb[0].mxu0 %v1654
  %v1656 = vpop.f32.mrb[0].mxu0
  %v1657 = vadd.f32 %v1424, %v1656
  %v1658 = vpop.f32.mrb[0].mxu0
  %1659 = vmatprep.mubr.f32.mxu0 0.0
  %v1660 = vand.u32 %v1251, 4294901760
  %1661 = vmatmul.mubr.f32.gmra.mrb[0].mxu0 %v1660
  %v1662 = vpop.f32.mrb[0].mxu0
  %v1663 = vadd.f32 %v1434, %v1662
  %v1664 = vpop.f32.mrb[0].mxu0
  %1665 = vmatprep.mubr.f32.mxu0 0.0
  %v1666 = vand.u32 %v1254, 4294901760
  %1667 = vmatmul.mubr.f32.gmra.mrb[0].mxu0 %v1666
  %v1668 = vpop.f32.mrb[0].mxu0
  %v1669 = vadd.f32 %v1444, %v1668
  %v1670 = vpop.f32.mrb[0].mxu0
  %1671 = vmatprep.mubr.f32.mxu0 0.0
  %v1672 = vand.u32 %v1257, 4294901760
  %1673 = vmatmul.mubr.f32.gmra.mrb[0].mxu0 %v1672
  %v1674 = vpop.f32.mrb[0].mxu0
  %v1675 = vadd.f32 %v1454, %v1674
  %v1676 = vpop.f32.mrb[0].mxu0
  %1677 = vmatprep.mubr.f32.mxu0 0.0
  %v1678 = vand.u32 %v1260, 4294901760
  %1679 = vmatmul.mubr.f32.gmra.mrb[0].mxu0 %v1678
  %v1680 = vpop.f32.mrb[0].mxu0
  %v1681 = vadd.f32 %v1464, %v1680
  %v1682 = vpop.f32.mrb[0].mxu0
  %1683 = vmatprep.mubr.f32.mxu0 0.0
  %v1684 = vand.u32 %v1263, 4294901760
  %1685 = vmatmul.mubr.f32.gmra.mrb[0].mxu0 %v1684
  %v1686 = vpop.f32.mrb[0].mxu0
  %v1687 = vadd.f32 %v1474, %v1686
  %v1688 = vpop.f32.mrb[0].mxu0
  %1689 = vmatprep.mubr.f32.mxu0 0.0
  %v1690 = vand.u32 %v1266, 4294901760
  %1691 = vmatmul.mubr.f32.gmra.mrb[0].mxu0 %v1690
  %v1692 = vpop.f32.mrb[0].mxu0
  %v1693 = vadd.f32 %v1484, %v1692
  %v1694 = vpop.f32.mrb[0].mxu0
  %1695 = vmatprep.mubr.f32.mxu0 0.0
  %v1696 = vand.u32 %v1269, 4294901760
  %1697 = vmatmul.mubr.f32.gmra.mrb[0].mxu0 %v1696
  %v1698 = vpop.f32.mrb[0].mxu0
  %v1699 = vadd.f32 %v1494, %v1698
  %v1700 = vpop.f32.mrb[0].mxu0
  %1701 = vmatprep.mubr.f32.mxu0 0.0
  %v1702 = vand.u32 %v1272, 4294901760
  %1703 = vmatmul.mubr.f32.gmra.mrb[0].mxu0 %v1702
  %v1704 = vpop.f32.mrb[0].mxu0
  %v1705 = vadd.f32 %v1504, %v1704
  %v1706 = vpop.f32.mrb[0].mxu0
  %1707 = vdwg.mxu0
  %1708 = vmatprep.subr.mxu0 0.0
  %v1709 = vand.u32 %v1210, 4294901760
  %v1710 = vsub.f32 %v1210, %v1709
  %1711 = vmatpush1.msra.mxu0 %v1710
  %1712 = vmatprep.subr.mxu0 0.0
  %v1713 = vand.u32 %v1211, 4294901760
  %v1714 = vsub.f32 %v1211, %v1713
  %1715 = vmatpush1.msra.mxu0 %v1714
  %1716 = vmatprep.subr.mxu0 0.0
  %v1717 = vand.u32 %v1212, 4294901760
  %v1718 = vsub.f32 %v1212, %v1717
  %1719 = vmatpush1.msra.mxu0 %v1718
  %1720 = vmatprep.subr.mxu0 0.0
  %v1721 = vand.u32 %v1213, 4294901760
  %v1722 = vsub.f32 %v1213, %v1721
  %1723 = vmatpush1.msra.mxu0 %v1722
  %1724 = vmatprep.subr.mxu0 0.0
  %v1725 = vand.u32 %v1214, 4294901760
  %v1726 = vsub.f32 %v1214, %v1725
  %1727 = vmatpush1.msra.mxu0 %v1726
  %1728 = vmatprep.subr.mxu0 0.0
  %v1729 = vand.u32 %v1215, 4294901760
  %v1730 = vsub.f32 %v1215, %v1729
  %1731 = vmatpush1.msra.mxu0 %v1730
  %1732 = vmatprep.subr.mxu0 0.0
  %v1733 = vand.u32 %v1216, 4294901760
  %v1734 = vsub.f32 %v1216, %v1733
  %1735 = vmatpush1.msra.mxu0 %v1734
  %1736 = vmatprep.subr.mxu0 0.0
  %v1737 = vand.u32 %v1217, 4294901760
  %v1738 = vsub.f32 %v1217, %v1737
  %1739 = vmatpush1.msra.mxu0 %v1738
  %1740 = vmatprep.subr.mxu0 0.0
  %1741 = vmatpush1.msra.mxu0 0.0
  %1742 = vmatprep.subr.mxu0 0.0
  %1743 = vmatpush1.msra.mxu0 0.0
  %1744 = vmatprep.subr.mxu0 0.0
  %1745 = vmatpush1.msra.mxu0 0.0
  %1746 = vmatprep.subr.mxu0 0.0
  %1747 = vmatpush1.msra.mxu0 0.0
  %1748 = vmatprep.subr.mxu0 0.0
  %1749 = vmatpush1.msra.mxu0 0.0
  %1750 = vmatprep.subr.mxu0 0.0
  %1751 = vmatpush1.msra.mxu0 0.0
  %1752 = vmatprep.subr.mxu0 0.0
  %1753 = vmatpush1.msra.mxu0 0.0
  %1754 = vmatprep.subr.mxu0 0.0
  %1755 = vmatpush1.msra.mxu0 0.0
  %1756 = vmatprep.subr.mxu0 0.0
  %1757 = vmatpush1.msra.mxu0 0.0
  %1758 = vmatprep.subr.mxu0 0.0
  %1759 = vmatpush1.msra.mxu0 0.0
  %1760 = vmatprep.subr.mxu0 0.0
  %1761 = vmatpush1.msra.mxu0 0.0
  %1762 = vmatprep.subr.mxu0 0.0
  %1763 = vmatpush1.msra.mxu0 0.0
  %1764 = vmatprep.subr.mxu0 0.0
  %1765 = vmatpush1.msra.mxu0 0.0
  %1766 = vmatprep.subr.mxu0 0.0
  %1767 = vmatpush1.msra.mxu0 0.0
  %1768 = vmatprep.subr.mxu0 0.0
  %1769 = vmatpush1.msra.mxu0 0.0
  %1770 = vmatprep.subr.mxu0 0.0
  %1771 = vmatpush1.msra.mxu0 0.0
  %1772 = vmatprep.subr.mxu0 0.0
  %1773 = vmatpush1.msra.mxu0 0.0
  %1774 = vmatprep.subr.mxu0 0.0
  %1775 = vmatpush1.msra.mxu0 0.0
  %1776 = vmatprep.subr.mxu0 0.0
  %1777 = vmatpush1.msra.mxu0 0.0
  %1778 = vmatprep.subr.mxu0 0.0
  %1779 = vmatpush1.msra.mxu0 0.0
  %1780 = vmatprep.subr.mxu0 0.0
  %1781 = vmatpush1.msra.mxu0 0.0
  %1782 = vmatprep.subr.mxu0 0.0
  %1783 = vmatpush1.msra.mxu0 0.0
  %1784 = vmatprep.subr.mxu0 0.0
  %1785 = vmatpush1.msra.mxu0 0.0
  %1786 = vmatprep.subr.mxu0 0.0
  %1787 = vmatpush1.msra.mxu0 0.0
  %1788 = vmatprep.mubr.f32.mxu0 0.0
  %v1789 = vand.u32 %v1227, 4294901760
  %v1790 = vsub.f32 %v1227, %v1789
  %1791 = vmatmul.mubr.f32.gmra.mrb[0].mxu0 %v1790
  %v1792 = vpop.f32.mrb[0].mxu0
  %v1793 = vadd.f32 %v1615, %v1792
  %v1794 = vpop.f32.mrb[0].mxu0
  %1795 = vmatprep.mubr.f32.mxu0 0.0
  %v1796 = vand.u32 %v1230, 4294901760
  %v1797 = vsub.f32 %v1230, %v1796
  %1798 = vmatmul.mubr.f32.gmra.mrb[0].mxu0 %v1797
  %v1799 = vpop.f32.mrb[0].mxu0
  %v1800 = vadd.f32 %v1621, %v1799
  %v1801 = vpop.f32.mrb[0].mxu0
  %1802 = vmatprep.mubr.f32.mxu0 0.0
  %v1803 = vand.u32 %v1233, 4294901760
  %v1804 = vsub.f32 %v1233, %v1803
  %1805 = vmatmul.mubr.f32.gmra.mrb[0].mxu0 %v1804
  %v1806 = vpop.f32.mrb[0].mxu0
  %v1807 = vadd.f32 %v1627, %v1806
  %v1808 = vpop.f32.mrb[0].mxu0
  %1809 = vmatprep.mubr.f32.mxu0 0.0
  %v1810 = vand.u32 %v1236, 4294901760
  %v1811 = vsub.f32 %v1236, %v1810
  %1812 = vmatmul.mubr.f32.gmra.mrb[0].mxu0 %v1811
  %v1813 = vpop.f32.mrb[0].mxu0
  %v1814 = vadd.f32 %v1633, %v1813
  %v1815 = vpop.f32.mrb[0].mxu0
  %1816 = vmatprep.mubr.f32.mxu0 0.0
  %v1817 = vand.u32 %v1239, 4294901760
  %v1818 = vsub.f32 %v1239, %v1817
  %1819 = vmatmul.mubr.f32.gmra.mrb[0].mxu0 %v1818
  %v1820 = vpop.f32.mrb[0].mxu0
  %v1821 = vadd.f32 %v1639, %v1820
  %v1822 = vpop.f32.mrb[0].mxu0
  %1823 = vmatprep.mubr.f32.mxu0 0.0
  %v1824 = vand.u32 %v1242, 4294901760
  %v1825 = vsub.f32 %v1242, %v1824
  %1826 = vmatmul.mubr.f32.gmra.mrb[0].mxu0 %v1825
  %v1827 = vpop.f32.mrb[0].mxu0
  %v1828 = vadd.f32 %v1645, %v1827
  %v1829 = vpop.f32.mrb[0].mxu0
  %1830 = vmatprep.mubr.f32.mxu0 0.0
  %v1831 = vand.u32 %v1245, 4294901760
  %v1832 = vsub.f32 %v1245, %v1831
  %1833 = vmatmul.mubr.f32.gmra.mrb[0].mxu0 %v1832
  %v1834 = vpop.f32.mrb[0].mxu0
  %v1835 = vadd.f32 %v1651, %v1834
  %v1836 = vpop.f32.mrb[0].mxu0
  %1837 = vmatprep.mubr.f32.mxu0 0.0
  %v1838 = vand.u32 %v1248, 4294901760
  %v1839 = vsub.f32 %v1248, %v1838
  %1840 = vmatmul.mubr.f32.gmra.mrb[0].mxu0 %v1839
  %v1841 = vpop.f32.mrb[0].mxu0
  %v1842 = vadd.f32 %v1657, %v1841
  %v1843 = vpop.f32.mrb[0].mxu0
  %1844 = vmatprep.mubr.f32.mxu0 0.0
  %v1845 = vand.u32 %v1251, 4294901760
  %v1846 = vsub.f32 %v1251, %v1845
  %1847 = vmatmul.mubr.f32.gmra.mrb[0].mxu0 %v1846
  %v1848 = vpop.f32.mrb[0].mxu0
  %v1849 = vadd.f32 %v1663, %v1848
  %v1850 = vpop.f32.mrb[0].mxu0
  %1851 = vmatprep.mubr.f32.mxu0 0.0
  %v1852 = vand.u32 %v1254, 4294901760
  %v1853 = vsub.f32 %v1254, %v1852
  %1854 = vmatmul.mubr.f32.gmra.mrb[0].mxu0 %v1853
  %v1855 = vpop.f32.mrb[0].mxu0
  %v1856 = vadd.f32 %v1669, %v1855
  %v1857 = vpop.f32.mrb[0].mxu0
  %1858 = vmatprep.mubr.f32.mxu0 0.0
  %v1859 = vand.u32 %v1257, 4294901760
  %v1860 = vsub.f32 %v1257, %v1859
  %1861 = vmatmul.mubr.f32.gmra.mrb[0].mxu0 %v1860
  %v1862 = vpop.f32.mrb[0].mxu0
  %v1863 = vadd.f32 %v1675, %v1862
  %v1864 = vpop.f32.mrb[0].mxu0
  %1865 = vmatprep.mubr.f32.mxu0 0.0
  %v1866 = vand.u32 %v1260, 4294901760
  %v1867 = vsub.f32 %v1260, %v1866
  %1868 = vmatmul.mubr.f32.gmra.mrb[0].mxu0 %v1867
  %v1869 = vpop.f32.mrb[0].mxu0
  %v1870 = vadd.f32 %v1681, %v1869
  %v1871 = vpop.f32.mrb[0].mxu0
  %1872 = vmatprep.mubr.f32.mxu0 0.0
  %v1873 = vand.u32 %v1263, 4294901760
  %v1874 = vsub.f32 %v1263, %v1873
  %1875 = vmatmul.mubr.f32.gmra.mrb[0].mxu0 %v1874
  %v1876 = vpop.f32.mrb[0].mxu0
  %v1877 = vadd.f32 %v1687, %v1876
  %v1878 = vpop.f32.mrb[0].mxu0
  %1879 = vmatprep.mubr.f32.mxu0 0.0
  %v1880 = vand.u32 %v1266, 4294901760
  %v1881 = vsub.f32 %v1266, %v1880
  %1882 = vmatmul.mubr.f32.gmra.mrb[0].mxu0 %v1881
  %v1883 = vpop.f32.mrb[0].mxu0
  %v1884 = vadd.f32 %v1693, %v1883
  %v1885 = vpop.f32.mrb[0].mxu0
  %1886 = vmatprep.mubr.f32.mxu0 0.0
  %v1887 = vand.u32 %v1269, 4294901760
  %v1888 = vsub.f32 %v1269, %v1887
  %1889 = vmatmul.mubr.f32.gmra.mrb[0].mxu0 %v1888
  %v1890 = vpop.f32.mrb[0].mxu0
  %v1891 = vadd.f32 %v1699, %v1890
  %v1892 = vpop.f32.mrb[0].mxu0
  %1893 = vmatprep.mubr.f32.mxu0 0.0
  %v1894 = vand.u32 %v1272, 4294901760
  %v1895 = vsub.f32 %v1272, %v1894
  %1896 = vmatmul.mubr.f32.gmra.mrb[0].mxu0 %v1895
  %v1897 = vpop.f32.mrb[0].mxu0
  %v1898 = vadd.f32 %v1705, %v1897
  %v1899 = vpop.f32.mrb[0].mxu0
  %1900 = vdwg.mxu0
  %1901 = vmatprep.subr.mxu0 0.0
  %v1902 = vand.u32 %v1210, 4294901760
  %1903 = vmatpush1.msra.mxu0 %v1902
  %1904 = vmatprep.subr.mxu0 0.0
  %v1905 = vand.u32 %v1211, 4294901760
  %1906 = vmatpush1.msra.mxu0 %v1905
  %1907 = vmatprep.subr.mxu0 0.0
  %v1908 = vand.u32 %v1212, 4294901760
  %1909 = vmatpush1.msra.mxu0 %v1908
  %1910 = vmatprep.subr.mxu0 0.0
  %v1911 = vand.u32 %v1213, 4294901760
  %1912 = vmatpush1.msra.mxu0 %v1911
  %1913 = vmatprep.subr.mxu0 0.0
  %v1914 = vand.u32 %v1214, 4294901760
  %1915 = vmatpush1.msra.mxu0 %v1914
  %1916 = vmatprep.subr.mxu0 0.0
  %v1917 = vand.u32 %v1215, 4294901760
  %1918 = vmatpush1.msra.mxu0 %v1917
  %1919 = vmatprep.subr.mxu0 0.0
  %v1920 = vand.u32 %v1216, 4294901760
  %1921 = vmatpush1.msra.mxu0 %v1920
  %1922 = vmatprep.subr.mxu0 0.0
  %v1923 = vand.u32 %v1217, 4294901760
  %1924 = vmatpush1.msra.mxu0 %v1923
  %1925 = vmatprep.subr.mxu0 0.0
  %1926 = vmatpush1.msra.mxu0 0.0
  %1927 = vmatprep.subr.mxu0 0.0
  %1928 = vmatpush1.msra.mxu0 0.0
  %1929 = vmatprep.subr.mxu0 0.0
  %1930 = vmatpush1.msra.mxu0 0.0
  %1931 = vmatprep.subr.mxu0 0.0
  %1932 = vmatpush1.msra.mxu0 0.0
  %1933 = vmatprep.subr.mxu0 0.0
  %1934 = vmatpush1.msra.mxu0 0.0
  %1935 = vmatprep.subr.mxu0 0.0
  %1936 = vmatpush1.msra.mxu0 0.0
  %1937 = vmatprep.subr.mxu0 0.0
  %1938 = vmatpush1.msra.mxu0 0.0
  %1939 = vmatprep.subr.mxu0 0.0
  %1940 = vmatpush1.msra.mxu0 0.0
  %1941 = vmatprep.subr.mxu0 0.0
  %1942 = vmatpush1.msra.mxu0 0.0
  %1943 = vmatprep.subr.mxu0 0.0
  %1944 = vmatpush1.msra.mxu0 0.0
  %1945 = vmatprep.subr.mxu0 0.0
  %1946 = vmatpush1.msra.mxu0 0.0
  %1947 = vmatprep.subr.mxu0 0.0
  %1948 = vmatpush1.msra.mxu0 0.0
  %1949 = vmatprep.subr.mxu0 0.0
  %1950 = vmatpush1.msra.mxu0 0.0
  %1951 = vmatprep.subr.mxu0 0.0
  %1952 = vmatpush1.msra.mxu0 0.0
  %1953 = vmatprep.subr.mxu0 0.0
  %1954 = vmatpush1.msra.mxu0 0.0
  %1955 = vmatprep.subr.mxu0 0.0
  %1956 = vmatpush1.msra.mxu0 0.0
  %1957 = vmatprep.subr.mxu0 0.0
  %1958 = vmatpush1.msra.mxu0 0.0
  %1959 = vmatprep.subr.mxu0 0.0
  %1960 = vmatpush1.msra.mxu0 0.0
  %1961 = vmatprep.subr.mxu0 0.0
  %1962 = vmatpush1.msra.mxu0 0.0
  %1963 = vmatprep.subr.mxu0 0.0
  %1964 = vmatpush1.msra.mxu0 0.0
  %1965 = vmatprep.subr.mxu0 0.0
  %1966 = vmatpush1.msra.mxu0 0.0
  %1967 = vmatprep.subr.mxu0 0.0
  %1968 = vmatpush1.msra.mxu0 0.0
  %1969 = vmatprep.subr.mxu0 0.0
  %1970 = vmatpush1.msra.mxu0 0.0
  %1971 = vmatprep.subr.mxu0 0.0
  %1972 = vmatpush1.msra.mxu0 0.0
  %1973 = vmatprep.mubr.f32.mxu0 0.0
  %v1974 = vand.u32 %v1227, 4294901760
  %v1975 = vsub.f32 %v1227, %v1974
  %v1976 = vand.u32 %v1975, 4294901760
  %1977 = vmatmul.mubr.f32.gmra.mrb[0].mxu0 %v1976
  %v1978 = vpop.f32.mrb[0].mxu0
  %v1979 = vadd.f32 %v1793, %v1978
  %v1980 = vpop.f32.mrb[0].mxu0
  %1981 = vmatprep.mubr.f32.mxu0 0.0
  %v1982 = vand.u32 %v1230, 4294901760
  %v1983 = vsub.f32 %v1230, %v1982
  %v1984 = vand.u32 %v1983, 4294901760
  %1985 = vmatmul.mubr.f32.gmra.mrb[0].mxu0 %v1984
  %v1986 = vpop.f32.mrb[0].mxu0
  %v1987 = vadd.f32 %v1800, %v1986
  %v1988 = vpop.f32.mrb[0].mxu0
  %1989 = vmatprep.mubr.f32.mxu0 0.0
  %v1990 = vand.u32 %v1233, 4294901760
  %v1991 = vsub.f32 %v1233, %v1990
  %v1992 = vand.u32 %v1991, 4294901760
  %1993 = vmatmul.mubr.f32.gmra.mrb[0].mxu0 %v1992
  %v1994 = vpop.f32.mrb[0].mxu0
  %v1995 = vadd.f32 %v1807, %v1994
  %v1996 = vpop.f32.mrb[0].mxu0
  %1997 = vmatprep.mubr.f32.mxu0 0.0
  %v1998 = vand.u32 %v1236, 4294901760
  %v1999 = vsub.f32 %v1236, %v1998
  %v2000 = vand.u32 %v1999, 4294901760
  %2001 = vmatmul.mubr.f32.gmra.mrb[0].mxu0 %v2000
  %v2002 = vpop.f32.mrb[0].mxu0
  %v2003 = vadd.f32 %v1814, %v2002
  %v2004 = vpop.f32.mrb[0].mxu0
  %2005 = vmatprep.mubr.f32.mxu0 0.0
  %v2006 = vand.u32 %v1239, 4294901760
  %v2007 = vsub.f32 %v1239, %v2006
  %v2008 = vand.u32 %v2007, 4294901760
  %2009 = vmatmul.mubr.f32.gmra.mrb[0].mxu0 %v2008
  %v2010 = vpop.f32.mrb[0].mxu0
  %v2011 = vadd.f32 %v1821, %v2010
  %v2012 = vpop.f32.mrb[0].mxu0
  %2013 = vmatprep.mubr.f32.mxu0 0.0
  %v2014 = vand.u32 %v1242, 4294901760
  %v2015 = vsub.f32 %v1242, %v2014
  %v2016 = vand.u32 %v2015, 4294901760
  %2017 = vmatmul.mubr.f32.gmra.mrb[0].mxu0 %v2016
  %v2018 = vpop.f32.mrb[0].mxu0
  %v2019 = vadd.f32 %v1828, %v2018
  %v2020 = vpop.f32.mrb[0].mxu0
  %2021 = vmatprep.mubr.f32.mxu0 0.0
  %v2022 = vand.u32 %v1245, 4294901760
  %v2023 = vsub.f32 %v1245, %v2022
  %v2024 = vand.u32 %v2023, 4294901760
  %2025 = vmatmul.mubr.f32.gmra.mrb[0].mxu0 %v2024
  %v2026 = vpop.f32.mrb[0].mxu0
  %v2027 = vadd.f32 %v1835, %v2026
  %v2028 = vpop.f32.mrb[0].mxu0
  %2029 = vmatprep.mubr.f32.mxu0 0.0
  %v2030 = vand.u32 %v1248, 4294901760
  %v2031 = vsub.f32 %v1248, %v2030
  %v2032 = vand.u32 %v2031, 4294901760
  %2033 = vmatmul.mubr.f32.gmra.mrb[0].mxu0 %v2032
  %v2034 = vpop.f32.mrb[0].mxu0
  %v2035 = vadd.f32 %v1842, %v2034
  %v2036 = vpop.f32.mrb[0].mxu0
  %2037 = vmatprep.mubr.f32.mxu0 0.0
  %v2038 = vand.u32 %v1251, 4294901760
  %v2039 = vsub.f32 %v1251, %v2038
  %v2040 = vand.u32 %v2039, 4294901760
  %2041 = vmatmul.mubr.f32.gmra.mrb[0].mxu0 %v2040
  %v2042 = vpop.f32.mrb[0].mxu0
  %v2043 = vadd.f32 %v1849, %v2042
  %v2044 = vpop.f32.mrb[0].mxu0
  %2045 = vmatprep.mubr.f32.mxu0 0.0
  %v2046 = vand.u32 %v1254, 4294901760
  %v2047 = vsub.f32 %v1254, %v2046
  %v2048 = vand.u32 %v2047, 4294901760
  %2049 = vmatmul.mubr.f32.gmra.mrb[0].mxu0 %v2048
  %v2050 = vpop.f32.mrb[0].mxu0
  %v2051 = vadd.f32 %v1856, %v2050
  %v2052 = vpop.f32.mrb[0].mxu0
  %2053 = vmatprep.mubr.f32.mxu0 0.0
  %v2054 = vand.u32 %v1257, 4294901760
  %v2055 = vsub.f32 %v1257, %v2054
  %v2056 = vand.u32 %v2055, 4294901760
  %2057 = vmatmul.mubr.f32.gmra.mrb[0].mxu0 %v2056
  %v2058 = vpop.f32.mrb[0].mxu0
  %v2059 = vadd.f32 %v1863, %v2058
  %v2060 = vpop.f32.mrb[0].mxu0
  %2061 = vmatprep.mubr.f32.mxu0 0.0
  %v2062 = vand.u32 %v1260, 4294901760
  %v2063 = vsub.f32 %v1260, %v2062
  %v2064 = vand.u32 %v2063, 4294901760
  %2065 = vmatmul.mubr.f32.gmra.mrb[0].mxu0 %v2064
  %v2066 = vpop.f32.mrb[0].mxu0
  %v2067 = vadd.f32 %v1870, %v2066
  %v2068 = vpop.f32.mrb[0].mxu0
  %2069 = vmatprep.mubr.f32.mxu0 0.0
  %v2070 = vand.u32 %v1263, 4294901760
  %v2071 = vsub.f32 %v1263, %v2070
  %v2072 = vand.u32 %v2071, 4294901760
  %2073 = vmatmul.mubr.f32.gmra.mrb[0].mxu0 %v2072
  %v2074 = vpop.f32.mrb[0].mxu0
  %v2075 = vadd.f32 %v1877, %v2074
  %v2076 = vpop.f32.mrb[0].mxu0
  %2077 = vmatprep.mubr.f32.mxu0 0.0
  %v2078 = vand.u32 %v1266, 4294901760
  %v2079 = vsub.f32 %v1266, %v2078
  %v2080 = vand.u32 %v2079, 4294901760
  %2081 = vmatmul.mubr.f32.gmra.mrb[0].mxu0 %v2080
  %v2082 = vpop.f32.mrb[0].mxu0
  %v2083 = vadd.f32 %v1884, %v2082
  %v2084 = vpop.f32.mrb[0].mxu0
  %2085 = vmatprep.mubr.f32.mxu0 0.0
  %v2086 = vand.u32 %v1269, 4294901760
  %v2087 = vsub.f32 %v1269, %v2086
  %v2088 = vand.u32 %v2087, 4294901760
  %2089 = vmatmul.mubr.f32.gmra.mrb[0].mxu0 %v2088
  %v2090 = vpop.f32.mrb[0].mxu0
  %v2091 = vadd.f32 %v1891, %v2090
  %v2092 = vpop.f32.mrb[0].mxu0
  %2093 = vmatprep.mubr.f32.mxu0 0.0
  %v2094 = vand.u32 %v1272, 4294901760
  %v2095 = vsub.f32 %v1272, %v2094
  %v2096 = vand.u32 %v2095, 4294901760
  %2097 = vmatmul.mubr.f32.gmra.mrb[0].mxu0 %v2096
  %v2098 = vpop.f32.mrb[0].mxu0
  %v2099 = vadd.f32 %v1898, %v2098
  %v2100 = vpop.f32.mrb[0].mxu0
  %2101 = vdwg.mxu0
  %2102 = vmatprep.subr.mxu0 0.0
  %v2103 = vand.u32 %v1210, 4294901760
  %v2104 = vsub.f32 %v1210, %v2103
  %v2105 = vand.u32 %v2104, 4294901760
  %2106 = vmatpush1.msra.mxu0 %v2105
  %2107 = vmatprep.subr.mxu0 0.0
  %v2108 = vand.u32 %v1211, 4294901760
  %v2109 = vsub.f32 %v1211, %v2108
  %v2110 = vand.u32 %v2109, 4294901760
  %2111 = vmatpush1.msra.mxu0 %v2110
  %2112 = vmatprep.subr.mxu0 0.0
  %v2113 = vand.u32 %v1212, 4294901760
  %v2114 = vsub.f32 %v1212, %v2113
  %v2115 = vand.u32 %v2114, 4294901760
  %2116 = vmatpush1.msra.mxu0 %v2115
  %2117 = vmatprep.subr.mxu0 0.0
  %v2118 = vand.u32 %v1213, 4294901760
  %v2119 = vsub.f32 %v1213, %v2118
  %v2120 = vand.u32 %v2119, 4294901760
  %2121 = vmatpush1.msra.mxu0 %v2120
  %2122 = vmatprep.subr.mxu0 0.0
  %v2123 = vand.u32 %v1214, 4294901760
  %v2124 = vsub.f32 %v1214, %v2123
  %v2125 = vand.u32 %v2124, 4294901760
  %2126 = vmatpush1.msra.mxu0 %v2125
  %2127 = vmatprep.subr.mxu0 0.0
  %v2128 = vand.u32 %v1215, 4294901760
  %v2129 = vsub.f32 %v1215, %v2128
  %v2130 = vand.u32 %v2129, 4294901760
  %2131 = vmatpush1.msra.mxu0 %v2130
  %2132 = vmatprep.subr.mxu0 0.0
  %v2133 = vand.u32 %v1216, 4294901760
  %v2134 = vsub.f32 %v1216, %v2133
  %v2135 = vand.u32 %v2134, 4294901760
  %2136 = vmatpush1.msra.mxu0 %v2135
  %2137 = vmatprep.subr.mxu0 0.0
  %v2138 = vand.u32 %v1217, 4294901760
  %v2139 = vsub.f32 %v1217, %v2138
  %v2140 = vand.u32 %v2139, 4294901760
  %2141 = vmatpush1.msra.mxu0 %v2140
  %2142 = vmatprep.subr.mxu0 0.0
  %2143 = vmatpush1.msra.mxu0 0.0
  %2144 = vmatprep.subr.mxu0 0.0
  %2145 = vmatpush1.msra.mxu0 0.0
  %2146 = vmatprep.subr.mxu0 0.0
  %2147 = vmatpush1.msra.mxu0 0.0
  %2148 = vmatprep.subr.mxu0 0.0
  %2149 = vmatpush1.msra.mxu0 0.0
  %2150 = vmatprep.subr.mxu0 0.0
  %2151 = vmatpush1.msra.mxu0 0.0
  %2152 = vmatprep.subr.mxu0 0.0
  %2153 = vmatpush1.msra.mxu0 0.0
  %2154 = vmatprep.subr.mxu0 0.0
  %2155 = vmatpush1.msra.mxu0 0.0
  %2156 = vmatprep.subr.mxu0 0.0
  %2157 = vmatpush1.msra.mxu0 0.0
  %2158 = vmatprep.subr.mxu0 0.0
  %2159 = vmatpush1.msra.mxu0 0.0
  %2160 = vmatprep.subr.mxu0 0.0
  %2161 = vmatpush1.msra.mxu0 0.0
  %2162 = vmatprep.subr.mxu0 0.0
  %2163 = vmatpush1.msra.mxu0 0.0
  %2164 = vmatprep.subr.mxu0 0.0
  %2165 = vmatpush1.msra.mxu0 0.0
  %2166 = vmatprep.subr.mxu0 0.0
  %2167 = vmatpush1.msra.mxu0 0.0
  %2168 = vmatprep.subr.mxu0 0.0
  %2169 = vmatpush1.msra.mxu0 0.0
  %2170 = vmatprep.subr.mxu0 0.0
  %2171 = vmatpush1.msra.mxu0 0.0
  %2172 = vmatprep.subr.mxu0 0.0
  %2173 = vmatpush1.msra.mxu0 0.0
  %2174 = vmatprep.subr.mxu0 0.0
  %2175 = vmatpush1.msra.mxu0 0.0
  %2176 = vmatprep.subr.mxu0 0.0
  %2177 = vmatpush1.msra.mxu0 0.0
  %2178 = vmatprep.subr.mxu0 0.0
  %2179 = vmatpush1.msra.mxu0 0.0
  %2180 = vmatprep.subr.mxu0 0.0
  %2181 = vmatpush1.msra.mxu0 0.0
  %2182 = vmatprep.subr.mxu0 0.0
  %2183 = vmatpush1.msra.mxu0 0.0
  %2184 = vmatprep.subr.mxu0 0.0
  %2185 = vmatpush1.msra.mxu0 0.0
  %2186 = vmatprep.subr.mxu0 0.0
  %2187 = vmatpush1.msra.mxu0 0.0
  %2188 = vmatprep.subr.mxu0 0.0
  %2189 = vmatpush1.msra.mxu0 0.0
  %2190 = vmatprep.mubr.f32.mxu0 0.0
  %v2191 = vand.u32 %v1227, 4294901760
  %2192 = vmatmul.mubr.f32.gmra.mrb[0].mxu0 %v2191
  %v2193 = vpop.f32.mrb[0].mxu0
  %v2194 = vadd.f32 %v1979, %v2193
  %v2195 = vpop.f32.mrb[0].mxu0
  %2196 = vmatprep.mubr.f32.mxu0 0.0
  %v2197 = vand.u32 %v1230, 4294901760
  %2198 = vmatmul.mubr.f32.gmra.mrb[0].mxu0 %v2197
  %v2199 = vpop.f32.mrb[0].mxu0
  %v2200 = vadd.f32 %v1987, %v2199
  %v2201 = vpop.f32.mrb[0].mxu0
  %2202 = vmatprep.mubr.f32.mxu0 0.0
  %v2203 = vand.u32 %v1233, 4294901760
  %2204 = vmatmul.mubr.f32.gmra.mrb[0].mxu0 %v2203
  %v2205 = vpop.f32.mrb[0].mxu0
  %v2206 = vadd.f32 %v1995, %v2205
  %v2207 = vpop.f32.mrb[0].mxu0
  %2208 = vmatprep.mubr.f32.mxu0 0.0
  %v2209 = vand.u32 %v1236, 4294901760
  %2210 = vmatmul.mubr.f32.gmra.mrb[0].mxu0 %v2209
  %v2211 = vpop.f32.mrb[0].mxu0
  %v2212 = vadd.f32 %v2003, %v2211
  %v2213 = vpop.f32.mrb[0].mxu0
  %2214 = vmatprep.mubr.f32.mxu0 0.0
  %v2215 = vand.u32 %v1239, 4294901760
  %2216 = vmatmul.mubr.f32.gmra.mrb[0].mxu0 %v2215
  %v2217 = vpop.f32.mrb[0].mxu0
  %v2218 = vadd.f32 %v2011, %v2217
  %v2219 = vpop.f32.mrb[0].mxu0
  %2220 = vmatprep.mubr.f32.mxu0 0.0
  %v2221 = vand.u32 %v1242, 4294901760
  %2222 = vmatmul.mubr.f32.gmra.mrb[0].mxu0 %v2221
  %v2223 = vpop.f32.mrb[0].mxu0
  %v2224 = vadd.f32 %v2019, %v2223
  %v2225 = vpop.f32.mrb[0].mxu0
  %2226 = vmatprep.mubr.f32.mxu0 0.0
  %v2227 = vand.u32 %v1245, 4294901760
  %2228 = vmatmul.mubr.f32.gmra.mrb[0].mxu0 %v2227
  %v2229 = vpop.f32.mrb[0].mxu0
  %v2230 = vadd.f32 %v2027, %v2229
  %v2231 = vpop.f32.mrb[0].mxu0
  %2232 = vmatprep.mubr.f32.mxu0 0.0
  %v2233 = vand.u32 %v1248, 4294901760
  %2234 = vmatmul.mubr.f32.gmra.mrb[0].mxu0 %v2233
  %v2235 = vpop.f32.mrb[0].mxu0
  %v2236 = vadd.f32 %v2035, %v2235
  %v2237 = vpop.f32.mrb[0].mxu0
  %2238 = vmatprep.mubr.f32.mxu0 0.0
  %v2239 = vand.u32 %v1251, 4294901760
  %2240 = vmatmul.mubr.f32.gmra.mrb[0].mxu0 %v2239
  %v2241 = vpop.f32.mrb[0].mxu0
  %v2242 = vadd.f32 %v2043, %v2241
  %v2243 = vpop.f32.mrb[0].mxu0
  %2244 = vmatprep.mubr.f32.mxu0 0.0
  %v2245 = vand.u32 %v1254, 4294901760
  %2246 = vmatmul.mubr.f32.gmra.mrb[0].mxu0 %v2245
  %v2247 = vpop.f32.mrb[0].mxu0
  %v2248 = vadd.f32 %v2051, %v2247
  %v2249 = vpop.f32.mrb[0].mxu0
  %2250 = vmatprep.mubr.f32.mxu0 0.0
  %v2251 = vand.u32 %v1257, 4294901760
  %2252 = vmatmul.mubr.f32.gmra.mrb[0].mxu0 %v2251
  %v2253 = vpop.f32.mrb[0].mxu0
  %v2254 = vadd.f32 %v2059, %v2253
  %v2255 = vpop.f32.mrb[0].mxu0
  %2256 = vmatprep.mubr.f32.mxu0 0.0
  %v2257 = vand.u32 %v1260, 4294901760
  %2258 = vmatmul.mubr.f32.gmra.mrb[0].mxu0 %v2257
  %v2259 = vpop.f32.mrb[0].mxu0
  %v2260 = vadd.f32 %v2067, %v2259
  %v2261 = vpop.f32.mrb[0].mxu0
  %2262 = vmatprep.mubr.f32.mxu0 0.0
  %v2263 = vand.u32 %v1263, 4294901760
  %2264 = vmatmul.mubr.f32.gmra.mrb[0].mxu0 %v2263
  %v2265 = vpop.f32.mrb[0].mxu0
  %v2266 = vadd.f32 %v2075, %v2265
  %v2267 = vpop.f32.mrb[0].mxu0
  %2268 = vmatprep.mubr.f32.mxu0 0.0
  %v2269 = vand.u32 %v1266, 4294901760
  %2270 = vmatmul.mubr.f32.gmra.mrb[0].mxu0 %v2269
  %v2271 = vpop.f32.mrb[0].mxu0
  %v2272 = vadd.f32 %v2083, %v2271
  %v2273 = vpop.f32.mrb[0].mxu0
  %2274 = vmatprep.mubr.f32.mxu0 0.0
  %v2275 = vand.u32 %v1269, 4294901760
  %2276 = vmatmul.mubr.f32.gmra.mrb[0].mxu0 %v2275
  %v2277 = vpop.f32.mrb[0].mxu0
  %v2278 = vadd.f32 %v2091, %v2277
  %v2279 = vpop.f32.mrb[0].mxu0
  %2280 = vmatprep.mubr.f32.mxu0 0.0
  %v2281 = vand.u32 %v1272, 4294901760
  %2282 = vmatmul.mubr.f32.gmra.mrb[0].mxu0 %v2281
  %v2283 = vpop.f32.mrb[0].mxu0
  %v2284 = vadd.f32 %v2099, %v2283
  %v2285 = vpop.f32.mrb[0].mxu0
  %2286 = vdwg.mxu0
  %2287 = vmatprep.subr.mxu0 0.0
  %v2288 = vand.u32 %v1210, 4294901760
  %2289 = vmatpush1.msra.mxu0 %v2288
  %2290 = vmatprep.subr.mxu0 0.0
  %v2291 = vand.u32 %v1211, 4294901760
  %2292 = vmatpush1.msra.mxu0 %v2291
  %2293 = vmatprep.subr.mxu0 0.0
  %v2294 = vand.u32 %v1212, 4294901760
  %2295 = vmatpush1.msra.mxu0 %v2294
  %2296 = vmatprep.subr.mxu0 0.0
  %v2297 = vand.u32 %v1213, 4294901760
  %2298 = vmatpush1.msra.mxu0 %v2297
  %2299 = vmatprep.subr.mxu0 0.0
  %v2300 = vand.u32 %v1214, 4294901760
  %2301 = vmatpush1.msra.mxu0 %v2300
  %2302 = vmatprep.subr.mxu0 0.0
  %v2303 = vand.u32 %v1215, 4294901760
  %2304 = vmatpush1.msra.mxu0 %v2303
  %2305 = vmatprep.subr.mxu0 0.0
  %v2306 = vand.u32 %v1216, 4294901760
  %2307 = vmatpush1.msra.mxu0 %v2306
  %2308 = vmatprep.subr.mxu0 0.0
  %v2309 = vand.u32 %v1217, 4294901760
  %2310 = vmatpush1.msra.mxu0 %v2309
  %2311 = vmatprep.subr.mxu0 0.0
  %2312 = vmatpush1.msra.mxu0 0.0
  %2313 = vmatprep.subr.mxu0 0.0
  %2314 = vmatpush1.msra.mxu0 0.0
  %2315 = vmatprep.subr.mxu0 0.0
  %2316 = vmatpush1.msra.mxu0 0.0
  %2317 = vmatprep.subr.mxu0 0.0
  %2318 = vmatpush1.msra.mxu0 0.0
  %2319 = vmatprep.subr.mxu0 0.0
  %2320 = vmatpush1.msra.mxu0 0.0
  %2321 = vmatprep.subr.mxu0 0.0
  %2322 = vmatpush1.msra.mxu0 0.0
  %2323 = vmatprep.subr.mxu0 0.0
  %2324 = vmatpush1.msra.mxu0 0.0
  %2325 = vmatprep.subr.mxu0 0.0
  %2326 = vmatpush1.msra.mxu0 0.0
  %2327 = vmatprep.subr.mxu0 0.0
  %2328 = vmatpush1.msra.mxu0 0.0
  %2329 = vmatprep.subr.mxu0 0.0
  %2330 = vmatpush1.msra.mxu0 0.0
  %2331 = vmatprep.subr.mxu0 0.0
  %2332 = vmatpush1.msra.mxu0 0.0
  %2333 = vmatprep.subr.mxu0 0.0
  %2334 = vmatpush1.msra.mxu0 0.0
  %2335 = vmatprep.subr.mxu0 0.0
  %2336 = vmatpush1.msra.mxu0 0.0
  %2337 = vmatprep.subr.mxu0 0.0
  %2338 = vmatpush1.msra.mxu0 0.0
  %2339 = vmatprep.subr.mxu0 0.0
  %2340 = vmatpush1.msra.mxu0 0.0
  %2341 = vmatprep.subr.mxu0 0.0
  %2342 = vmatpush1.msra.mxu0 0.0
  %2343 = vmatprep.subr.mxu0 0.0
  %2344 = vmatpush1.msra.mxu0 0.0
  %2345 = vmatprep.subr.mxu0 0.0
  %2346 = vmatpush1.msra.mxu0 0.0
  %2347 = vmatprep.subr.mxu0 0.0
  %2348 = vmatpush1.msra.mxu0 0.0
  %2349 = vmatprep.subr.mxu0 0.0
  %2350 = vmatpush1.msra.mxu0 0.0
  %2351 = vmatprep.subr.mxu0 0.0
  %2352 = vmatpush1.msra.mxu0 0.0
  %2353 = vmatprep.subr.mxu0 0.0
  %2354 = vmatpush1.msra.mxu0 0.0
  %2355 = vmatprep.subr.mxu0 0.0
  %2356 = vmatpush1.msra.mxu0 0.0
  %2357 = vmatprep.subr.mxu0 0.0
  %2358 = vmatpush1.msra.mxu0 0.0
  %2359 = vmatprep.mubr.f32.mxu0 0.0
  %v2360 = vand.u32 %v1227, 4294901760
  %2361 = vmatmul.mubr.f32.gmra.mrb[0].mxu0 %v2360
  %v2362 = vpop.f32.mrb[0].mxu0
  %v2363 = vadd.f32 %v2194, %v2362
  %v2364 = vpop.f32.mrb[0].mxu0
  %2365 = vmatprep.mubr.f32.mxu0 0.0
  %v2366 = vand.u32 %v1230, 4294901760
  %2367 = vmatmul.mubr.f32.gmra.mrb[0].mxu0 %v2366
  %v2368 = vpop.f32.mrb[0].mxu0
  %v2369 = vadd.f32 %v2200, %v2368
  %v2370 = vpop.f32.mrb[0].mxu0
  %2371 = vmatprep.mubr.f32.mxu0 0.0
  %v2372 = vand.u32 %v1233, 4294901760
  %2373 = vmatmul.mubr.f32.gmra.mrb[0].mxu0 %v2372
  %v2374 = vpop.f32.mrb[0].mxu0
  %v2375 = vadd.f32 %v2206, %v2374
  %v2376 = vpop.f32.mrb[0].mxu0
  %2377 = vmatprep.mubr.f32.mxu0 0.0
  %v2378 = vand.u32 %v1236, 4294901760
  %2379 = vmatmul.mubr.f32.gmra.mrb[0].mxu0 %v2378
  %v2380 = vpop.f32.mrb[0].mxu0
  %v2381 = vadd.f32 %v2212, %v2380
  %v2382 = vpop.f32.mrb[0].mxu0
  %2383 = vmatprep.mubr.f32.mxu0 0.0
  %v2384 = vand.u32 %v1239, 4294901760
  %2385 = vmatmul.mubr.f32.gmra.mrb[0].mxu0 %v2384
  %v2386 = vpop.f32.mrb[0].mxu0
  %v2387 = vadd.f32 %v2218, %v2386
  %v2388 = vpop.f32.mrb[0].mxu0
  %2389 = vmatprep.mubr.f32.mxu0 0.0
  %v2390 = vand.u32 %v1242, 4294901760
  %2391 = vmatmul.mubr.f32.gmra.mrb[0].mxu0 %v2390
  %v2392 = vpop.f32.mrb[0].mxu0
  %v2393 = vadd.f32 %v2224, %v2392
  %v2394 = vpop.f32.mrb[0].mxu0
  %2395 = vmatprep.mubr.f32.mxu0 0.0
  %v2396 = vand.u32 %v1245, 4294901760
  %2397 = vmatmul.mubr.f32.gmra.mrb[0].mxu0 %v2396
  %v2398 = vpop.f32.mrb[0].mxu0
  %v2399 = vadd.f32 %v2230, %v2398
  %v2400 = vpop.f32.mrb[0].mxu0
  %2401 = vmatprep.mubr.f32.mxu0 0.0
  %v2402 = vand.u32 %v1248, 4294901760
  %2403 = vmatmul.mubr.f32.gmra.mrb[0].mxu0 %v2402
  %v2404 = vpop.f32.mrb[0].mxu0
  %v2405 = vadd.f32 %v2236, %v2404
  %v2406 = vpop.f32.mrb[0].mxu0
  %2407 = vmatprep.mubr.f32.mxu0 0.0
  %v2408 = vand.u32 %v1251, 4294901760
  %2409 = vmatmul.mubr.f32.gmra.mrb[0].mxu0 %v2408
  %v2410 = vpop.f32.mrb[0].mxu0
  %v2411 = vadd.f32 %v2242, %v2410
  %v2412 = vpop.f32.mrb[0].mxu0
  %2413 = vmatprep.mubr.f32.mxu0 0.0
  %v2414 = vand.u32 %v1254, 4294901760
  %2415 = vmatmul.mubr.f32.gmra.mrb[0].mxu0 %v2414
  %v2416 = vpop.f32.mrb[0].mxu0
  %v2417 = vadd.f32 %v2248, %v2416
  %v2418 = vpop.f32.mrb[0].mxu0
  %2419 = vmatprep.mubr.f32.mxu0 0.0
  %v2420 = vand.u32 %v1257, 4294901760
  %2421 = vmatmul.mubr.f32.gmra.mrb[0].mxu0 %v2420
  %v2422 = vpop.f32.mrb[0].mxu0
  %v2423 = vadd.f32 %v2254, %v2422
  %v2424 = vpop.f32.mrb[0].mxu0
  %2425 = vmatprep.mubr.f32.mxu0 0.0
  %v2426 = vand.u32 %v1260, 4294901760
  %2427 = vmatmul.mubr.f32.gmra.mrb[0].mxu0 %v2426
  %v2428 = vpop.f32.mrb[0].mxu0
  %v2429 = vadd.f32 %v2260, %v2428
  %v2430 = vpop.f32.mrb[0].mxu0
  %2431 = vmatprep.mubr.f32.mxu0 0.0
  %v2432 = vand.u32 %v1263, 4294901760
  %2433 = vmatmul.mubr.f32.gmra.mrb[0].mxu0 %v2432
  %v2434 = vpop.f32.mrb[0].mxu0
  %v2435 = vadd.f32 %v2266, %v2434
  %v2436 = vpop.f32.mrb[0].mxu0
  %2437 = vmatprep.mubr.f32.mxu0 0.0
  %v2438 = vand.u32 %v1266, 4294901760
  %2439 = vmatmul.mubr.f32.gmra.mrb[0].mxu0 %v2438
  %v2440 = vpop.f32.mrb[0].mxu0
  %v2441 = vadd.f32 %v2272, %v2440
  %v2442 = vpop.f32.mrb[0].mxu0
  %2443 = vmatprep.mubr.f32.mxu0 0.0
  %v2444 = vand.u32 %v1269, 4294901760
  %2445 = vmatmul.mubr.f32.gmra.mrb[0].mxu0 %v2444
  %v2446 = vpop.f32.mrb[0].mxu0
  %v2447 = vadd.f32 %v2278, %v2446
  %v2448 = vpop.f32.mrb[0].mxu0
  %2449 = vmatprep.mubr.f32.mxu0 0.0
  %v2450 = vand.u32 %v1272, 4294901760
  %2451 = vmatmul.mubr.f32.gmra.mrb[0].mxu0 %v2450
  %v2452 = vpop.f32.mrb[0].mxu0
  %v2453 = vadd.f32 %v2284, %v2452
  %v2454 = vpop.f32.mrb[0].mxu0
  %2455 = vdwg.mxu0
  %v2456 = vmax.f32 %v2363, 0.0
  %v2457 = vmax.f32 %v2369, 0.0
  %v2458 = vmax.f32 %v2375, 0.0
  %v2459 = vmax.f32 %v2381, 0.0
  %v2460 = vmax.f32 %v2387, 0.0
  %v2461 = vmax.f32 %v2393, 0.0
  %v2462 = vmax.f32 %v2399, 0.0
  %v2463 = vmax.f32 %v2405, 0.0
  %v2464 = vmax.f32 %v2411, 0.0
  %v2465 = vmax.f32 %v2417, 0.0
  %v2466 = vmax.f32 %v2423, 0.0
  %v2467 = vmax.f32 %v2429, 0.0
  %v2468 = vmax.f32 %v2435, 0.0
  %v2469 = vmax.f32 %v2441, 0.0
  %v2470 = vmax.f32 %v2447, 0.0
  %v2471 = vmax.f32 %v2453, 0.0
  %v2472 = vld [vmem:[%s5] sm:$0xff]
  %v2473 = vld [vmem:[%s5 + $0x8] sm:$0xff]
  %v2474 = vld [vmem:[%s5 + $0x10] sm:$0xff]
  %v2475 = vld [vmem:[%s5 + $0x18] sm:$0xff]
  %v2476 = vld [vmem:[%s6] sm:$0x1]
  %v2478 = vlaneseq
  %v2479 = vshrl.u32 %v2478, 7
  %v2480 = vsub.s32 0, %v2479
  %v2481 = vrot.slane %v2476, %v2480
  %vm2483 = vcmask 261120
  %v2485 = vsel %vm2483, %v2456, 0
  %v2488 = vsel %vm2483, %v2457, 0
  %v2491 = vsel %vm2483, %v2458, 0
  %v2494 = vsel %vm2483, %v2459, 0
  %v2497 = vsel %vm2483, %v2460, 0
  %v2500 = vsel %vm2483, %v2461, 0
  %v2503 = vsel %vm2483, %v2462, 0
  %v2506 = vsel %vm2483, %v2463, 0
  %v2509 = vsel %vm2483, %v2464, 0
  %v2512 = vsel %vm2483, %v2465, 0
  %v2515 = vsel %vm2483, %v2466, 0
  %v2518 = vsel %vm2483, %v2467, 0
  %v2521 = vsel %vm2483, %v2468, 0
  %v2524 = vsel %vm2483, %v2469, 0
  %v2527 = vsel %vm2483, %v2470, 0
  %v2530 = vsel %vm2483, %v2471, 0
  %2532 = vmatprep.subr.mxu0 0.0
  %v2533 = vand.u32 %v2472, 4294901760
  %2534 = vmatpush1.msra.mxu0 %v2533
  %2535 = vmatprep.subr.mxu0 0.0
  %v2536 = vand.u32 %v2473, 4294901760
  %2537 = vmatpush1.msra.mxu0 %v2536
  %2538 = vmatprep.subr.mxu0 0.0
  %v2539 = vand.u32 %v2474, 4294901760
  %2540 = vmatpush1.msra.mxu0 %v2539
  %2541 = vmatprep.subr.mxu0 0.0
  %v2542 = vand.u32 %v2475, 4294901760
  %2543 = vmatpush1.msra.mxu0 %v2542
  %2544 = vmatprep.subr.mxu0 0.0
  %2545 = vmatpush1.msra.mxu0 0.0
  %2546 = vmatprep.subr.mxu0 0.0
  %2547 = vmatpush1.msra.mxu0 0.0
  %2548 = vmatprep.subr.mxu0 0.0
  %2549 = vmatpush1.msra.mxu0 0.0
  %2550 = vmatprep.subr.mxu0 0.0
  %2551 = vmatpush1.msra.mxu0 0.0
  %2552 = vmatprep.subr.mxu0 0.0
  %2553 = vmatpush1.msra.mxu0 0.0
  %2554 = vmatprep.subr.mxu0 0.0
  %2555 = vmatpush1.msra.mxu0 0.0
  %2556 = vmatprep.subr.mxu0 0.0
  %2557 = vmatpush1.msra.mxu0 0.0
  %2558 = vmatprep.subr.mxu0 0.0
  %2559 = vmatpush1.msra.mxu0 0.0
  %2560 = vmatprep.subr.mxu0 0.0
  %2561 = vmatpush1.msra.mxu0 0.0
  %2562 = vmatprep.subr.mxu0 0.0
  %2563 = vmatpush1.msra.mxu0 0.0
  %2564 = vmatprep.subr.mxu0 0.0
  %2565 = vmatpush1.msra.mxu0 0.0
  %2566 = vmatprep.subr.mxu0 0.0
  %2567 = vmatpush1.msra.mxu0 0.0
  %2568 = vmatprep.subr.mxu0 0.0
  %2569 = vmatpush1.msra.mxu0 0.0
  %2570 = vmatprep.subr.mxu0 0.0
  %2571 = vmatpush1.msra.mxu0 0.0
  %2572 = vmatprep.subr.mxu0 0.0
  %2573 = vmatpush1.msra.mxu0 0.0
  %2574 = vmatprep.subr.mxu0 0.0
  %2575 = vmatpush1.msra.mxu0 0.0
  %2576 = vmatprep.subr.mxu0 0.0
  %2577 = vmatpush1.msra.mxu0 0.0
  %2578 = vmatprep.subr.mxu0 0.0
  %2579 = vmatpush1.msra.mxu0 0.0
  %2580 = vmatprep.subr.mxu0 0.0
  %2581 = vmatpush1.msra.mxu0 0.0
  %2582 = vmatprep.subr.mxu0 0.0
  %2583 = vmatpush1.msra.mxu0 0.0
  %2584 = vmatprep.subr.mxu0 0.0
  %2585 = vmatpush1.msra.mxu0 0.0
  %2586 = vmatprep.subr.mxu0 0.0
  %2587 = vmatpush1.msra.mxu0 0.0
  %2588 = vmatprep.subr.mxu0 0.0
  %2589 = vmatpush1.msra.mxu0 0.0
  %2590 = vmatprep.subr.mxu0 0.0
  %2591 = vmatpush1.msra.mxu0 0.0
  %2592 = vmatprep.subr.mxu0 0.0
  %2593 = vmatpush1.msra.mxu0 0.0
  %2594 = vmatprep.subr.mxu0 0.0
  %2595 = vmatpush1.msra.mxu0 0.0
  %2596 = vmatprep.subr.mxu0 0.0
  %2597 = vmatpush1.msra.mxu0 0.0
  %2598 = vmatprep.subr.mxu0 0.0
  %2599 = vmatpush1.msra.mxu0 0.0
  %2600 = vmatprep.mubr.f32.mxu0 0.0
  %v2601 = vand.u32 %v2485, 4294901760
  %v2602 = vsub.f32 %v2485, %v2601
  %v2603 = vand.u32 %v2602, 4294901760
  %v2604 = vsub.f32 %v2602, %v2603
  %v2605 = vand.u32 %v2604, 4294901760
  %2606 = vmatmul.mubr.f32.gmra.mrb[0].mxu0 %v2605
  %v2607 = vpop.f32.mrb[0].mxu0
  %v2608 = vadd.f32 %v2481, %v2607
  %v2609 = vpop.f32.mrb[0].mxu0
  %2610 = vmatprep.mubr.f32.mxu0 0.0
  %v2611 = vand.u32 %v2488, 4294901760
  %v2612 = vsub.f32 %v2488, %v2611
  %v2613 = vand.u32 %v2612, 4294901760
  %v2614 = vsub.f32 %v2612, %v2613
  %v2615 = vand.u32 %v2614, 4294901760
  %2616 = vmatmul.mubr.f32.gmra.mrb[0].mxu0 %v2615
  %v2617 = vpop.f32.mrb[0].mxu0
  %v2618 = vadd.f32 %v2481, %v2617
  %v2619 = vpop.f32.mrb[0].mxu0
  %2620 = vmatprep.mubr.f32.mxu0 0.0
  %v2621 = vand.u32 %v2491, 4294901760
  %v2622 = vsub.f32 %v2491, %v2621
  %v2623 = vand.u32 %v2622, 4294901760
  %v2624 = vsub.f32 %v2622, %v2623
  %v2625 = vand.u32 %v2624, 4294901760
  %2626 = vmatmul.mubr.f32.gmra.mrb[0].mxu0 %v2625
  %v2627 = vpop.f32.mrb[0].mxu0
  %v2628 = vadd.f32 %v2481, %v2627
  %v2629 = vpop.f32.mrb[0].mxu0
  %2630 = vmatprep.mubr.f32.mxu0 0.0
  %v2631 = vand.u32 %v2494, 4294901760
  %v2632 = vsub.f32 %v2494, %v2631
  %v2633 = vand.u32 %v2632, 4294901760
  %v2634 = vsub.f32 %v2632, %v2633
  %v2635 = vand.u32 %v2634, 4294901760
  %2636 = vmatmul.mubr.f32.gmra.mrb[0].mxu0 %v2635
  %v2637 = vpop.f32.mrb[0].mxu0
  %v2638 = vadd.f32 %v2481, %v2637
  %v2639 = vpop.f32.mrb[0].mxu0
  %2640 = vmatprep.mubr.f32.mxu0 0.0
  %v2641 = vand.u32 %v2497, 4294901760
  %v2642 = vsub.f32 %v2497, %v2641
  %v2643 = vand.u32 %v2642, 4294901760
  %v2644 = vsub.f32 %v2642, %v2643
  %v2645 = vand.u32 %v2644, 4294901760
  %2646 = vmatmul.mubr.f32.gmra.mrb[0].mxu0 %v2645
  %v2647 = vpop.f32.mrb[0].mxu0
  %v2648 = vadd.f32 %v2481, %v2647
  %v2649 = vpop.f32.mrb[0].mxu0
  %2650 = vmatprep.mubr.f32.mxu0 0.0
  %v2651 = vand.u32 %v2500, 4294901760
  %v2652 = vsub.f32 %v2500, %v2651
  %v2653 = vand.u32 %v2652, 4294901760
  %v2654 = vsub.f32 %v2652, %v2653
  %v2655 = vand.u32 %v2654, 4294901760
  %2656 = vmatmul.mubr.f32.gmra.mrb[0].mxu0 %v2655
  %v2657 = vpop.f32.mrb[0].mxu0
  %v2658 = vadd.f32 %v2481, %v2657
  %v2659 = vpop.f32.mrb[0].mxu0
  %2660 = vmatprep.mubr.f32.mxu0 0.0
  %v2661 = vand.u32 %v2503, 4294901760
  %v2662 = vsub.f32 %v2503, %v2661
  %v2663 = vand.u32 %v2662, 4294901760
  %v2664 = vsub.f32 %v2662, %v2663
  %v2665 = vand.u32 %v2664, 4294901760
  %2666 = vmatmul.mubr.f32.gmra.mrb[0].mxu0 %v2665
  %v2667 = vpop.f32.mrb[0].mxu0
  %v2668 = vadd.f32 %v2481, %v2667
  %v2669 = vpop.f32.mrb[0].mxu0
  %2670 = vmatprep.mubr.f32.mxu0 0.0
  %v2671 = vand.u32 %v2506, 4294901760
  %v2672 = vsub.f32 %v2506, %v2671
  %v2673 = vand.u32 %v2672, 4294901760
  %v2674 = vsub.f32 %v2672, %v2673
  %v2675 = vand.u32 %v2674, 4294901760
  %2676 = vmatmul.mubr.f32.gmra.mrb[0].mxu0 %v2675
  %v2677 = vpop.f32.mrb[0].mxu0
  %v2678 = vadd.f32 %v2481, %v2677
  %v2679 = vpop.f32.mrb[0].mxu0
  %2680 = vmatprep.mubr.f32.mxu0 0.0
  %v2681 = vand.u32 %v2509, 4294901760
  %v2682 = vsub.f32 %v2509, %v2681
  %v2683 = vand.u32 %v2682, 4294901760
  %v2684 = vsub.f32 %v2682, %v2683
  %v2685 = vand.u32 %v2684, 4294901760
  %2686 = vmatmul.mubr.f32.gmra.mrb[0].mxu0 %v2685
  %v2687 = vpop.f32.mrb[0].mxu0
  %v2688 = vadd.f32 %v2481, %v2687
  %v2689 = vpop.f32.mrb[0].mxu0
  %2690 = vmatprep.mubr.f32.mxu0 0.0
  %v2691 = vand.u32 %v2512, 4294901760
  %v2692 = vsub.f32 %v2512, %v2691
  %v2693 = vand.u32 %v2692, 4294901760
  %v2694 = vsub.f32 %v2692, %v2693
  %v2695 = vand.u32 %v2694, 4294901760
  %2696 = vmatmul.mubr.f32.gmra.mrb[0].mxu0 %v2695
  %v2697 = vpop.f32.mrb[0].mxu0
  %v2698 = vadd.f32 %v2481, %v2697
  %v2699 = vpop.f32.mrb[0].mxu0
  %2700 = vmatprep.mubr.f32.mxu0 0.0
  %v2701 = vand.u32 %v2515, 4294901760
  %v2702 = vsub.f32 %v2515, %v2701
  %v2703 = vand.u32 %v2702, 4294901760
  %v2704 = vsub.f32 %v2702, %v2703
  %v2705 = vand.u32 %v2704, 4294901760
  %2706 = vmatmul.mubr.f32.gmra.mrb[0].mxu0 %v2705
  %v2707 = vpop.f32.mrb[0].mxu0
  %v2708 = vadd.f32 %v2481, %v2707
  %v2709 = vpop.f32.mrb[0].mxu0
  %2710 = vmatprep.mubr.f32.mxu0 0.0
  %v2711 = vand.u32 %v2518, 4294901760
  %v2712 = vsub.f32 %v2518, %v2711
  %v2713 = vand.u32 %v2712, 4294901760
  %v2714 = vsub.f32 %v2712, %v2713
  %v2715 = vand.u32 %v2714, 4294901760
  %2716 = vmatmul.mubr.f32.gmra.mrb[0].mxu0 %v2715
  %v2717 = vpop.f32.mrb[0].mxu0
  %v2718 = vadd.f32 %v2481, %v2717
  %v2719 = vpop.f32.mrb[0].mxu0
  %2720 = vmatprep.mubr.f32.mxu0 0.0
  %v2721 = vand.u32 %v2521, 4294901760
  %v2722 = vsub.f32 %v2521, %v2721
  %v2723 = vand.u32 %v2722, 4294901760
  %v2724 = vsub.f32 %v2722, %v2723
  %v2725 = vand.u32 %v2724, 4294901760
  %2726 = vmatmul.mubr.f32.gmra.mrb[0].mxu0 %v2725
  %v2727 = vpop.f32.mrb[0].mxu0
  %v2728 = vadd.f32 %v2481, %v2727
  %v2729 = vpop.f32.mrb[0].mxu0
  %2730 = vmatprep.mubr.f32.mxu0 0.0
  %v2731 = vand.u32 %v2524, 4294901760
  %v2732 = vsub.f32 %v2524, %v2731
  %v2733 = vand.u32 %v2732, 4294901760
  %v2734 = vsub.f32 %v2732, %v2733
  %v2735 = vand.u32 %v2734, 4294901760
  %2736 = vmatmul.mubr.f32.gmra.mrb[0].mxu0 %v2735
  %v2737 = vpop.f32.mrb[0].mxu0
  %v2738 = vadd.f32 %v2481, %v2737
  %v2739 = vpop.f32.mrb[0].mxu0
  %2740 = vmatprep.mubr.f32.mxu0 0.0
  %v2741 = vand.u32 %v2527, 4294901760
  %v2742 = vsub.f32 %v2527, %v2741
  %v2743 = vand.u32 %v2742, 4294901760
  %v2744 = vsub.f32 %v2742, %v2743
  %v2745 = vand.u32 %v2744, 4294901760
  %2746 = vmatmul.mubr.f32.gmra.mrb[0].mxu0 %v2745
  %v2747 = vpop.f32.mrb[0].mxu0
  %v2748 = vadd.f32 %v2481, %v2747
  %v2749 = vpop.f32.mrb[0].mxu0
  %2750 = vmatprep.mubr.f32.mxu0 0.0
  %v2751 = vand.u32 %v2530, 4294901760
  %v2752 = vsub.f32 %v2530, %v2751
  %v2753 = vand.u32 %v2752, 4294901760
  %v2754 = vsub.f32 %v2752, %v2753
  %v2755 = vand.u32 %v2754, 4294901760
  %2756 = vmatmul.mubr.f32.gmra.mrb[0].mxu0 %v2755
  %v2757 = vpop.f32.mrb[0].mxu0
  %v2758 = vadd.f32 %v2481, %v2757
  %v2759 = vpop.f32.mrb[0].mxu0
  %2760 = vdwg.mxu0
  %2761 = vmatprep.subr.mxu0 0.0
  %v2762 = vand.u32 %v2472, 4294901760
  %v2763 = vsub.f32 %v2472, %v2762
  %v2764 = vand.u32 %v2763, 4294901760
  %v2765 = vsub.f32 %v2763, %v2764
  %v2766 = vand.u32 %v2765, 4294901760
  %2767 = vmatpush1.msra.mxu0 %v2766
  %2768 = vmatprep.subr.mxu0 0.0
  %v2769 = vand.u32 %v2473, 4294901760
  %v2770 = vsub.f32 %v2473, %v2769
  %v2771 = vand.u32 %v2770, 4294901760
  %v2772 = vsub.f32 %v2770, %v2771
  %v2773 = vand.u32 %v2772, 4294901760
  %2774 = vmatpush1.msra.mxu0 %v2773
  %2775 = vmatprep.subr.mxu0 0.0
  %v2776 = vand.u32 %v2474, 4294901760
  %v2777 = vsub.f32 %v2474, %v2776
  %v2778 = vand.u32 %v2777, 4294901760
  %v2779 = vsub.f32 %v2777, %v2778
  %v2780 = vand.u32 %v2779, 4294901760
  %2781 = vmatpush1.msra.mxu0 %v2780
  %2782 = vmatprep.subr.mxu0 0.0
  %v2783 = vand.u32 %v2475, 4294901760
  %v2784 = vsub.f32 %v2475, %v2783
  %v2785 = vand.u32 %v2784, 4294901760
  %v2786 = vsub.f32 %v2784, %v2785
  %v2787 = vand.u32 %v2786, 4294901760
  %2788 = vmatpush1.msra.mxu0 %v2787
  %2789 = vmatprep.subr.mxu0 0.0
  %2790 = vmatpush1.msra.mxu0 0.0
  %2791 = vmatprep.subr.mxu0 0.0
  %2792 = vmatpush1.msra.mxu0 0.0
  %2793 = vmatprep.subr.mxu0 0.0
  %2794 = vmatpush1.msra.mxu0 0.0
  %2795 = vmatprep.subr.mxu0 0.0
  %2796 = vmatpush1.msra.mxu0 0.0
  %2797 = vmatprep.subr.mxu0 0.0
  %2798 = vmatpush1.msra.mxu0 0.0
  %2799 = vmatprep.subr.mxu0 0.0
  %2800 = vmatpush1.msra.mxu0 0.0
  %2801 = vmatprep.subr.mxu0 0.0
  %2802 = vmatpush1.msra.mxu0 0.0
  %2803 = vmatprep.subr.mxu0 0.0
  %2804 = vmatpush1.msra.mxu0 0.0
  %2805 = vmatprep.subr.mxu0 0.0
  %2806 = vmatpush1.msra.mxu0 0.0
  %2807 = vmatprep.subr.mxu0 0.0
  %2808 = vmatpush1.msra.mxu0 0.0
  %2809 = vmatprep.subr.mxu0 0.0
  %2810 = vmatpush1.msra.mxu0 0.0
  %2811 = vmatprep.subr.mxu0 0.0
  %2812 = vmatpush1.msra.mxu0 0.0
  %2813 = vmatprep.subr.mxu0 0.0
  %2814 = vmatpush1.msra.mxu0 0.0
  %2815 = vmatprep.subr.mxu0 0.0
  %2816 = vmatpush1.msra.mxu0 0.0
  %2817 = vmatprep.subr.mxu0 0.0
  %2818 = vmatpush1.msra.mxu0 0.0
  %2819 = vmatprep.subr.mxu0 0.0
  %2820 = vmatpush1.msra.mxu0 0.0
  %2821 = vmatprep.subr.mxu0 0.0
  %2822 = vmatpush1.msra.mxu0 0.0
  %2823 = vmatprep.subr.mxu0 0.0
  %2824 = vmatpush1.msra.mxu0 0.0
  %2825 = vmatprep.subr.mxu0 0.0
  %2826 = vmatpush1.msra.mxu0 0.0
  %2827 = vmatprep.subr.mxu0 0.0
  %2828 = vmatpush1.msra.mxu0 0.0
  %2829 = vmatprep.subr.mxu0 0.0
  %2830 = vmatpush1.msra.mxu0 0.0
  %2831 = vmatprep.subr.mxu0 0.0
  %2832 = vmatpush1.msra.mxu0 0.0
  %2833 = vmatprep.subr.mxu0 0.0
  %2834 = vmatpush1.msra.mxu0 0.0
  %2835 = vmatprep.subr.mxu0 0.0
  %2836 = vmatpush1.msra.mxu0 0.0
  %2837 = vmatprep.subr.mxu0 0.0
  %2838 = vmatpush1.msra.mxu0 0.0
  %2839 = vmatprep.subr.mxu0 0.0
  %2840 = vmatpush1.msra.mxu0 0.0
  %2841 = vmatprep.subr.mxu0 0.0
  %2842 = vmatpush1.msra.mxu0 0.0
  %2843 = vmatprep.subr.mxu0 0.0
  %2844 = vmatpush1.msra.mxu0 0.0
  %2845 = vmatprep.mubr.f32.mxu0 0.0
  %v2846 = vand.u32 %v2485, 4294901760
  %2847 = vmatmul.mubr.f32.gmra.mrb[0].mxu0 %v2846
  %v2848 = vpop.f32.mrb[0].mxu0
  %v2849 = vadd.f32 %v2608, %v2848
  %v2850 = vpop.f32.mrb[0].mxu0
  %2851 = vmatprep.mubr.f32.mxu0 0.0
  %v2852 = vand.u32 %v2488, 4294901760
  %2853 = vmatmul.mubr.f32.gmra.mrb[0].mxu0 %v2852
  %v2854 = vpop.f32.mrb[0].mxu0
  %v2855 = vadd.f32 %v2618, %v2854
  %v2856 = vpop.f32.mrb[0].mxu0
  %2857 = vmatprep.mubr.f32.mxu0 0.0
  %v2858 = vand.u32 %v2491, 4294901760
  %2859 = vmatmul.mubr.f32.gmra.mrb[0].mxu0 %v2858
  %v2860 = vpop.f32.mrb[0].mxu0
  %v2861 = vadd.f32 %v2628, %v2860
  %v2862 = vpop.f32.mrb[0].mxu0
  %2863 = vmatprep.mubr.f32.mxu0 0.0
  %v2864 = vand.u32 %v2494, 4294901760
  %2865 = vmatmul.mubr.f32.gmra.mrb[0].mxu0 %v2864
  %v2866 = vpop.f32.mrb[0].mxu0
  %v2867 = vadd.f32 %v2638, %v2866
  %v2868 = vpop.f32.mrb[0].mxu0
  %2869 = vmatprep.mubr.f32.mxu0 0.0
  %v2870 = vand.u32 %v2497, 4294901760
  %2871 = vmatmul.mubr.f32.gmra.mrb[0].mxu0 %v2870
  %v2872 = vpop.f32.mrb[0].mxu0
  %v2873 = vadd.f32 %v2648, %v2872
  %v2874 = vpop.f32.mrb[0].mxu0
  %2875 = vmatprep.mubr.f32.mxu0 0.0
  %v2876 = vand.u32 %v2500, 4294901760
  %2877 = vmatmul.mubr.f32.gmra.mrb[0].mxu0 %v2876
  %v2878 = vpop.f32.mrb[0].mxu0
  %v2879 = vadd.f32 %v2658, %v2878
  %v2880 = vpop.f32.mrb[0].mxu0
  %2881 = vmatprep.mubr.f32.mxu0 0.0
  %v2882 = vand.u32 %v2503, 4294901760
  %2883 = vmatmul.mubr.f32.gmra.mrb[0].mxu0 %v2882
  %v2884 = vpop.f32.mrb[0].mxu0
  %v2885 = vadd.f32 %v2668, %v2884
  %v2886 = vpop.f32.mrb[0].mxu0
  %2887 = vmatprep.mubr.f32.mxu0 0.0
  %v2888 = vand.u32 %v2506, 4294901760
  %2889 = vmatmul.mubr.f32.gmra.mrb[0].mxu0 %v2888
  %v2890 = vpop.f32.mrb[0].mxu0
  %v2891 = vadd.f32 %v2678, %v2890
  %v2892 = vpop.f32.mrb[0].mxu0
  %2893 = vmatprep.mubr.f32.mxu0 0.0
  %v2894 = vand.u32 %v2509, 4294901760
  %2895 = vmatmul.mubr.f32.gmra.mrb[0].mxu0 %v2894
  %v2896 = vpop.f32.mrb[0].mxu0
  %v2897 = vadd.f32 %v2688, %v2896
  %v2898 = vpop.f32.mrb[0].mxu0
  %2899 = vmatprep.mubr.f32.mxu0 0.0
  %v2900 = vand.u32 %v2512, 4294901760
  %2901 = vmatmul.mubr.f32.gmra.mrb[0].mxu0 %v2900
  %v2902 = vpop.f32.mrb[0].mxu0
  %v2903 = vadd.f32 %v2698, %v2902
  %v2904 = vpop.f32.mrb[0].mxu0
  %2905 = vmatprep.mubr.f32.mxu0 0.0
  %v2906 = vand.u32 %v2515, 4294901760
  %2907 = vmatmul.mubr.f32.gmra.mrb[0].mxu0 %v2906
  %v2908 = vpop.f32.mrb[0].mxu0
  %v2909 = vadd.f32 %v2708, %v2908
  %v2910 = vpop.f32.mrb[0].mxu0
  %2911 = vmatprep.mubr.f32.mxu0 0.0
  %v2912 = vand.u32 %v2518, 4294901760
  %2913 = vmatmul.mubr.f32.gmra.mrb[0].mxu0 %v2912
  %v2914 = vpop.f32.mrb[0].mxu0
  %v2915 = vadd.f32 %v2718, %v2914
  %v2916 = vpop.f32.mrb[0].mxu0
  %2917 = vmatprep.mubr.f32.mxu0 0.0
  %v2918 = vand.u32 %v2521, 4294901760
  %2919 = vmatmul.mubr.f32.gmra.mrb[0].mxu0 %v2918
  %v2920 = vpop.f32.mrb[0].mxu0
  %v2921 = vadd.f32 %v2728, %v2920
  %v2922 = vpop.f32.mrb[0].mxu0
  %2923 = vmatprep.mubr.f32.mxu0 0.0
  %v2924 = vand.u32 %v2524, 4294901760
  %2925 = vmatmul.mubr.f32.gmra.mrb[0].mxu0 %v2924
  %v2926 = vpop.f32.mrb[0].mxu0
  %v2927 = vadd.f32 %v2738, %v2926
  %v2928 = vpop.f32.mrb[0].mxu0
  %2929 = vmatprep.mubr.f32.mxu0 0.0
  %v2930 = vand.u32 %v2527, 4294901760
  %2931 = vmatmul.mubr.f32.gmra.mrb[0].mxu0 %v2930
  %v2932 = vpop.f32.mrb[0].mxu0
  %v2933 = vadd.f32 %v2748, %v2932
  %v2934 = vpop.f32.mrb[0].mxu0
  %2935 = vmatprep.mubr.f32.mxu0 0.0
  %v2936 = vand.u32 %v2530, 4294901760
  %2937 = vmatmul.mubr.f32.gmra.mrb[0].mxu0 %v2936
  %v2938 = vpop.f32.mrb[0].mxu0
  %v2939 = vadd.f32 %v2758, %v2938
  %v2940 = vpop.f32.mrb[0].mxu0
  %2941 = vdwg.mxu0
  %2942 = vmatprep.subr.mxu0 0.0
  %v2943 = vand.u32 %v2472, 4294901760
  %v2944 = vsub.f32 %v2472, %v2943
  %2945 = vmatpush1.msra.mxu0 %v2944
  %2946 = vmatprep.subr.mxu0 0.0
  %v2947 = vand.u32 %v2473, 4294901760
  %v2948 = vsub.f32 %v2473, %v2947
  %2949 = vmatpush1.msra.mxu0 %v2948
  %2950 = vmatprep.subr.mxu0 0.0
  %v2951 = vand.u32 %v2474, 4294901760
  %v2952 = vsub.f32 %v2474, %v2951
  %2953 = vmatpush1.msra.mxu0 %v2952
  %2954 = vmatprep.subr.mxu0 0.0
  %v2955 = vand.u32 %v2475, 4294901760
  %v2956 = vsub.f32 %v2475, %v2955
  %2957 = vmatpush1.msra.mxu0 %v2956
  %2958 = vmatprep.subr.mxu0 0.0
  %2959 = vmatpush1.msra.mxu0 0.0
  %2960 = vmatprep.subr.mxu0 0.0
  %2961 = vmatpush1.msra.mxu0 0.0
  %2962 = vmatprep.subr.mxu0 0.0
  %2963 = vmatpush1.msra.mxu0 0.0
  %2964 = vmatprep.subr.mxu0 0.0
  %2965 = vmatpush1.msra.mxu0 0.0
  %2966 = vmatprep.subr.mxu0 0.0
  %2967 = vmatpush1.msra.mxu0 0.0
  %2968 = vmatprep.subr.mxu0 0.0
  %2969 = vmatpush1.msra.mxu0 0.0
  %2970 = vmatprep.subr.mxu0 0.0
  %2971 = vmatpush1.msra.mxu0 0.0
  %2972 = vmatprep.subr.mxu0 0.0
  %2973 = vmatpush1.msra.mxu0 0.0
  %2974 = vmatprep.subr.mxu0 0.0
  %2975 = vmatpush1.msra.mxu0 0.0
  %2976 = vmatprep.subr.mxu0 0.0
  %2977 = vmatpush1.msra.mxu0 0.0
  %2978 = vmatprep.subr.mxu0 0.0
  %2979 = vmatpush1.msra.mxu0 0.0
  %2980 = vmatprep.subr.mxu0 0.0
  %2981 = vmatpush1.msra.mxu0 0.0
  %2982 = vmatprep.subr.mxu0 0.0
  %2983 = vmatpush1.msra.mxu0 0.0
  %2984 = vmatprep.subr.mxu0 0.0
  %2985 = vmatpush1.msra.mxu0 0.0
  %2986 = vmatprep.subr.mxu0 0.0
  %2987 = vmatpush1.msra.mxu0 0.0
  %2988 = vmatprep.subr.mxu0 0.0
  %2989 = vmatpush1.msra.mxu0 0.0
  %2990 = vmatprep.subr.mxu0 0.0
  %2991 = vmatpush1.msra.mxu0 0.0
  %2992 = vmatprep.subr.mxu0 0.0
  %2993 = vmatpush1.msra.mxu0 0.0
  %2994 = vmatprep.subr.mxu0 0.0
  %2995 = vmatpush1.msra.mxu0 0.0
  %2996 = vmatprep.subr.mxu0 0.0
  %2997 = vmatpush1.msra.mxu0 0.0
  %2998 = vmatprep.subr.mxu0 0.0
  %2999 = vmatpush1.msra.mxu0 0.0
  %3000 = vmatprep.subr.mxu0 0.0
  %3001 = vmatpush1.msra.mxu0 0.0
  %3002 = vmatprep.subr.mxu0 0.0
  %3003 = vmatpush1.msra.mxu0 0.0
  %3004 = vmatprep.subr.mxu0 0.0
  %3005 = vmatpush1.msra.mxu0 0.0
  %3006 = vmatprep.subr.mxu0 0.0
  %3007 = vmatpush1.msra.mxu0 0.0
  %3008 = vmatprep.subr.mxu0 0.0
  %3009 = vmatpush1.msra.mxu0 0.0
  %3010 = vmatprep.subr.mxu0 0.0
  %3011 = vmatpush1.msra.mxu0 0.0
  %3012 = vmatprep.subr.mxu0 0.0
  %3013 = vmatpush1.msra.mxu0 0.0
  %3014 = vmatprep.mubr.f32.mxu0 0.0
  %v3015 = vand.u32 %v2485, 4294901760
  %v3016 = vsub.f32 %v2485, %v3015
  %3017 = vmatmul.mubr.f32.gmra.mrb[0].mxu0 %v3016
  %v3018 = vpop.f32.mrb[0].mxu0
  %v3019 = vadd.f32 %v2849, %v3018
  %v3020 = vpop.f32.mrb[0].mxu0
  %3021 = vmatprep.mubr.f32.mxu0 0.0
  %v3022 = vand.u32 %v2488, 4294901760
  %v3023 = vsub.f32 %v2488, %v3022
  %3024 = vmatmul.mubr.f32.gmra.mrb[0].mxu0 %v3023
  %v3025 = vpop.f32.mrb[0].mxu0
  %v3026 = vadd.f32 %v2855, %v3025
  %v3027 = vpop.f32.mrb[0].mxu0
  %3028 = vmatprep.mubr.f32.mxu0 0.0
  %v3029 = vand.u32 %v2491, 4294901760
  %v3030 = vsub.f32 %v2491, %v3029
  %3031 = vmatmul.mubr.f32.gmra.mrb[0].mxu0 %v3030
  %v3032 = vpop.f32.mrb[0].mxu0
  %v3033 = vadd.f32 %v2861, %v3032
  %v3034 = vpop.f32.mrb[0].mxu0
  %3035 = vmatprep.mubr.f32.mxu0 0.0
  %v3036 = vand.u32 %v2494, 4294901760
  %v3037 = vsub.f32 %v2494, %v3036
  %3038 = vmatmul.mubr.f32.gmra.mrb[0].mxu0 %v3037
  %v3039 = vpop.f32.mrb[0].mxu0
  %v3040 = vadd.f32 %v2867, %v3039
  %v3041 = vpop.f32.mrb[0].mxu0
  %3042 = vmatprep.mubr.f32.mxu0 0.0
  %v3043 = vand.u32 %v2497, 4294901760
  %v3044 = vsub.f32 %v2497, %v3043
  %3045 = vmatmul.mubr.f32.gmra.mrb[0].mxu0 %v3044
  %v3046 = vpop.f32.mrb[0].mxu0
  %v3047 = vadd.f32 %v2873, %v3046
  %v3048 = vpop.f32.mrb[0].mxu0
  %3049 = vmatprep.mubr.f32.mxu0 0.0
  %v3050 = vand.u32 %v2500, 4294901760
  %v3051 = vsub.f32 %v2500, %v3050
  %3052 = vmatmul.mubr.f32.gmra.mrb[0].mxu0 %v3051
  %v3053 = vpop.f32.mrb[0].mxu0
  %v3054 = vadd.f32 %v2879, %v3053
  %v3055 = vpop.f32.mrb[0].mxu0
  %3056 = vmatprep.mubr.f32.mxu0 0.0
  %v3057 = vand.u32 %v2503, 4294901760
  %v3058 = vsub.f32 %v2503, %v3057
  %3059 = vmatmul.mubr.f32.gmra.mrb[0].mxu0 %v3058
  %v3060 = vpop.f32.mrb[0].mxu0
  %v3061 = vadd.f32 %v2885, %v3060
  %v3062 = vpop.f32.mrb[0].mxu0
  %3063 = vmatprep.mubr.f32.mxu0 0.0
  %v3064 = vand.u32 %v2506, 4294901760
  %v3065 = vsub.f32 %v2506, %v3064
  %3066 = vmatmul.mubr.f32.gmra.mrb[0].mxu0 %v3065
  %v3067 = vpop.f32.mrb[0].mxu0
  %v3068 = vadd.f32 %v2891, %v3067
  %v3069 = vpop.f32.mrb[0].mxu0
  %3070 = vmatprep.mubr.f32.mxu0 0.0
  %v3071 = vand.u32 %v2509, 4294901760
  %v3072 = vsub.f32 %v2509, %v3071
  %3073 = vmatmul.mubr.f32.gmra.mrb[0].mxu0 %v3072
  %v3074 = vpop.f32.mrb[0].mxu0
  %v3075 = vadd.f32 %v2897, %v3074
  %v3076 = vpop.f32.mrb[0].mxu0
  %3077 = vmatprep.mubr.f32.mxu0 0.0
  %v3078 = vand.u32 %v2512, 4294901760
  %v3079 = vsub.f32 %v2512, %v3078
  %3080 = vmatmul.mubr.f32.gmra.mrb[0].mxu0 %v3079
  %v3081 = vpop.f32.mrb[0].mxu0
  %v3082 = vadd.f32 %v2903, %v3081
  %v3083 = vpop.f32.mrb[0].mxu0
  %3084 = vmatprep.mubr.f32.mxu0 0.0
  %v3085 = vand.u32 %v2515, 4294901760
  %v3086 = vsub.f32 %v2515, %v3085
  %3087 = vmatmul.mubr.f32.gmra.mrb[0].mxu0 %v3086
  %v3088 = vpop.f32.mrb[0].mxu0
  %v3089 = vadd.f32 %v2909, %v3088
  %v3090 = vpop.f32.mrb[0].mxu0
  %3091 = vmatprep.mubr.f32.mxu0 0.0
  %v3092 = vand.u32 %v2518, 4294901760
  %v3093 = vsub.f32 %v2518, %v3092
  %3094 = vmatmul.mubr.f32.gmra.mrb[0].mxu0 %v3093
  %v3095 = vpop.f32.mrb[0].mxu0
  %v3096 = vadd.f32 %v2915, %v3095
  %v3097 = vpop.f32.mrb[0].mxu0
  %3098 = vmatprep.mubr.f32.mxu0 0.0
  %v3099 = vand.u32 %v2521, 4294901760
  %v3100 = vsub.f32 %v2521, %v3099
  %3101 = vmatmul.mubr.f32.gmra.mrb[0].mxu0 %v3100
  %v3102 = vpop.f32.mrb[0].mxu0
  %v3103 = vadd.f32 %v2921, %v3102
  %v3104 = vpop.f32.mrb[0].mxu0
  %3105 = vmatprep.mubr.f32.mxu0 0.0
  %v3106 = vand.u32 %v2524, 4294901760
  %v3107 = vsub.f32 %v2524, %v3106
  %3108 = vmatmul.mubr.f32.gmra.mrb[0].mxu0 %v3107
  %v3109 = vpop.f32.mrb[0].mxu0
  %v3110 = vadd.f32 %v2927, %v3109
  %v3111 = vpop.f32.mrb[0].mxu0
  %3112 = vmatprep.mubr.f32.mxu0 0.0
  %v3113 = vand.u32 %v2527, 4294901760
  %v3114 = vsub.f32 %v2527, %v3113
  %3115 = vmatmul.mubr.f32.gmra.mrb[0].mxu0 %v3114
  %v3116 = vpop.f32.mrb[0].mxu0
  %v3117 = vadd.f32 %v2933, %v3116
  %v3118 = vpop.f32.mrb[0].mxu0
  %3119 = vmatprep.mubr.f32.mxu0 0.0
  %v3120 = vand.u32 %v2530, 4294901760
  %v3121 = vsub.f32 %v2530, %v3120
  %3122 = vmatmul.mubr.f32.gmra.mrb[0].mxu0 %v3121
  %v3123 = vpop.f32.mrb[0].mxu0
  %v3124 = vadd.f32 %v2939, %v3123
  %v3125 = vpop.f32.mrb[0].mxu0
  %3126 = vdwg.mxu0
  %3127 = vmatprep.subr.mxu0 0.0
  %v3128 = vand.u32 %v2472, 4294901760
  %3129 = vmatpush1.msra.mxu0 %v3128
  %3130 = vmatprep.subr.mxu0 0.0
  %v3131 = vand.u32 %v2473, 4294901760
  %3132 = vmatpush1.msra.mxu0 %v3131
  %3133 = vmatprep.subr.mxu0 0.0
  %v3134 = vand.u32 %v2474, 4294901760
  %3135 = vmatpush1.msra.mxu0 %v3134
  %3136 = vmatprep.subr.mxu0 0.0
  %v3137 = vand.u32 %v2475, 4294901760
  %3138 = vmatpush1.msra.mxu0 %v3137
  %3139 = vmatprep.subr.mxu0 0.0
  %3140 = vmatpush1.msra.mxu0 0.0
  %3141 = vmatprep.subr.mxu0 0.0
  %3142 = vmatpush1.msra.mxu0 0.0
  %3143 = vmatprep.subr.mxu0 0.0
  %3144 = vmatpush1.msra.mxu0 0.0
  %3145 = vmatprep.subr.mxu0 0.0
  %3146 = vmatpush1.msra.mxu0 0.0
  %3147 = vmatprep.subr.mxu0 0.0
  %3148 = vmatpush1.msra.mxu0 0.0
  %3149 = vmatprep.subr.mxu0 0.0
  %3150 = vmatpush1.msra.mxu0 0.0
  %3151 = vmatprep.subr.mxu0 0.0
  %3152 = vmatpush1.msra.mxu0 0.0
  %3153 = vmatprep.subr.mxu0 0.0
  %3154 = vmatpush1.msra.mxu0 0.0
  %3155 = vmatprep.subr.mxu0 0.0
  %3156 = vmatpush1.msra.mxu0 0.0
  %3157 = vmatprep.subr.mxu0 0.0
  %3158 = vmatpush1.msra.mxu0 0.0
  %3159 = vmatprep.subr.mxu0 0.0
  %3160 = vmatpush1.msra.mxu0 0.0
  %3161 = vmatprep.subr.mxu0 0.0
  %3162 = vmatpush1.msra.mxu0 0.0
  %3163 = vmatprep.subr.mxu0 0.0
  %3164 = vmatpush1.msra.mxu0 0.0
  %3165 = vmatprep.subr.mxu0 0.0
  %3166 = vmatpush1.msra.mxu0 0.0
  %3167 = vmatprep.subr.mxu0 0.0
  %3168 = vmatpush1.msra.mxu0 0.0
  %3169 = vmatprep.subr.mxu0 0.0
  %3170 = vmatpush1.msra.mxu0 0.0
  %3171 = vmatprep.subr.mxu0 0.0
  %3172 = vmatpush1.msra.mxu0 0.0
  %3173 = vmatprep.subr.mxu0 0.0
  %3174 = vmatpush1.msra.mxu0 0.0
  %3175 = vmatprep.subr.mxu0 0.0
  %3176 = vmatpush1.msra.mxu0 0.0
  %3177 = vmatprep.subr.mxu0 0.0
  %3178 = vmatpush1.msra.mxu0 0.0
  %3179 = vmatprep.subr.mxu0 0.0
  %3180 = vmatpush1.msra.mxu0 0.0
  %3181 = vmatprep.subr.mxu0 0.0
  %3182 = vmatpush1.msra.mxu0 0.0
  %3183 = vmatprep.subr.mxu0 0.0
  %3184 = vmatpush1.msra.mxu0 0.0
  %3185 = vmatprep.subr.mxu0 0.0
  %3186 = vmatpush1.msra.mxu0 0.0
  %3187 = vmatprep.subr.mxu0 0.0
  %3188 = vmatpush1.msra.mxu0 0.0
  %3189 = vmatprep.subr.mxu0 0.0
  %3190 = vmatpush1.msra.mxu0 0.0
  %3191 = vmatprep.subr.mxu0 0.0
  %3192 = vmatpush1.msra.mxu0 0.0
  %3193 = vmatprep.subr.mxu0 0.0
  %3194 = vmatpush1.msra.mxu0 0.0
  %3195 = vmatprep.mubr.f32.mxu0 0.0
  %v3196 = vand.u32 %v2485, 4294901760
  %v3197 = vsub.f32 %v2485, %v3196
  %v3198 = vand.u32 %v3197, 4294901760
  %3199 = vmatmul.mubr.f32.gmra.mrb[0].mxu0 %v3198
  %v3200 = vpop.f32.mrb[0].mxu0
  %v3201 = vadd.f32 %v3019, %v3200
  %v3202 = vpop.f32.mrb[0].mxu0
  %3203 = vmatprep.mubr.f32.mxu0 0.0
  %v3204 = vand.u32 %v2488, 4294901760
  %v3205 = vsub.f32 %v2488, %v3204
  %v3206 = vand.u32 %v3205, 4294901760
  %3207 = vmatmul.mubr.f32.gmra.mrb[0].mxu0 %v3206
  %v3208 = vpop.f32.mrb[0].mxu0
  %v3209 = vadd.f32 %v3026, %v3208
  %v3210 = vpop.f32.mrb[0].mxu0
  %3211 = vmatprep.mubr.f32.mxu0 0.0
  %v3212 = vand.u32 %v2491, 4294901760
  %v3213 = vsub.f32 %v2491, %v3212
  %v3214 = vand.u32 %v3213, 4294901760
  %3215 = vmatmul.mubr.f32.gmra.mrb[0].mxu0 %v3214
  %v3216 = vpop.f32.mrb[0].mxu0
  %v3217 = vadd.f32 %v3033, %v3216
  %v3218 = vpop.f32.mrb[0].mxu0
  %3219 = vmatprep.mubr.f32.mxu0 0.0
  %v3220 = vand.u32 %v2494, 4294901760
  %v3221 = vsub.f32 %v2494, %v3220
  %v3222 = vand.u32 %v3221, 4294901760
  %3223 = vmatmul.mubr.f32.gmra.mrb[0].mxu0 %v3222
  %v3224 = vpop.f32.mrb[0].mxu0
  %v3225 = vadd.f32 %v3040, %v3224
  %v3226 = vpop.f32.mrb[0].mxu0
  %3227 = vmatprep.mubr.f32.mxu0 0.0
  %v3228 = vand.u32 %v2497, 4294901760
  %v3229 = vsub.f32 %v2497, %v3228
  %v3230 = vand.u32 %v3229, 4294901760
  %3231 = vmatmul.mubr.f32.gmra.mrb[0].mxu0 %v3230
  %v3232 = vpop.f32.mrb[0].mxu0
  %v3233 = vadd.f32 %v3047, %v3232
  %v3234 = vpop.f32.mrb[0].mxu0
  %3235 = vmatprep.mubr.f32.mxu0 0.0
  %v3236 = vand.u32 %v2500, 4294901760
  %v3237 = vsub.f32 %v2500, %v3236
  %v3238 = vand.u32 %v3237, 4294901760
  %3239 = vmatmul.mubr.f32.gmra.mrb[0].mxu0 %v3238
  %v3240 = vpop.f32.mrb[0].mxu0
  %v3241 = vadd.f32 %v3054, %v3240
  %v3242 = vpop.f32.mrb[0].mxu0
  %3243 = vmatprep.mubr.f32.mxu0 0.0
  %v3244 = vand.u32 %v2503, 4294901760
  %v3245 = vsub.f32 %v2503, %v3244
  %v3246 = vand.u32 %v3245, 4294901760
  %3247 = vmatmul.mubr.f32.gmra.mrb[0].mxu0 %v3246
  %v3248 = vpop.f32.mrb[0].mxu0
  %v3249 = vadd.f32 %v3061, %v3248
  %v3250 = vpop.f32.mrb[0].mxu0
  %3251 = vmatprep.mubr.f32.mxu0 0.0
  %v3252 = vand.u32 %v2506, 4294901760
  %v3253 = vsub.f32 %v2506, %v3252
  %v3254 = vand.u32 %v3253, 4294901760
  %3255 = vmatmul.mubr.f32.gmra.mrb[0].mxu0 %v3254
  %v3256 = vpop.f32.mrb[0].mxu0
  %v3257 = vadd.f32 %v3068, %v3256
  %v3258 = vpop.f32.mrb[0].mxu0
  %3259 = vmatprep.mubr.f32.mxu0 0.0
  %v3260 = vand.u32 %v2509, 4294901760
  %v3261 = vsub.f32 %v2509, %v3260
  %v3262 = vand.u32 %v3261, 4294901760
  %3263 = vmatmul.mubr.f32.gmra.mrb[0].mxu0 %v3262
  %v3264 = vpop.f32.mrb[0].mxu0
  %v3265 = vadd.f32 %v3075, %v3264
  %v3266 = vpop.f32.mrb[0].mxu0
  %3267 = vmatprep.mubr.f32.mxu0 0.0
  %v3268 = vand.u32 %v2512, 4294901760
  %v3269 = vsub.f32 %v2512, %v3268
  %v3270 = vand.u32 %v3269, 4294901760
  %3271 = vmatmul.mubr.f32.gmra.mrb[0].mxu0 %v3270
  %v3272 = vpop.f32.mrb[0].mxu0
  %v3273 = vadd.f32 %v3082, %v3272
  %v3274 = vpop.f32.mrb[0].mxu0
  %3275 = vmatprep.mubr.f32.mxu0 0.0
  %v3276 = vand.u32 %v2515, 4294901760
  %v3277 = vsub.f32 %v2515, %v3276
  %v3278 = vand.u32 %v3277, 4294901760
  %3279 = vmatmul.mubr.f32.gmra.mrb[0].mxu0 %v3278
  %v3280 = vpop.f32.mrb[0].mxu0
  %v3281 = vadd.f32 %v3089, %v3280
  %v3282 = vpop.f32.mrb[0].mxu0
  %3283 = vmatprep.mubr.f32.mxu0 0.0
  %v3284 = vand.u32 %v2518, 4294901760
  %v3285 = vsub.f32 %v2518, %v3284
  %v3286 = vand.u32 %v3285, 4294901760
  %3287 = vmatmul.mubr.f32.gmra.mrb[0].mxu0 %v3286
  %v3288 = vpop.f32.mrb[0].mxu0
  %v3289 = vadd.f32 %v3096, %v3288
  %v3290 = vpop.f32.mrb[0].mxu0
  %3291 = vmatprep.mubr.f32.mxu0 0.0
  %v3292 = vand.u32 %v2521, 4294901760
  %v3293 = vsub.f32 %v2521, %v3292
  %v3294 = vand.u32 %v3293, 4294901760
  %3295 = vmatmul.mubr.f32.gmra.mrb[0].mxu0 %v3294
  %v3296 = vpop.f32.mrb[0].mxu0
  %v3297 = vadd.f32 %v3103, %v3296
  %v3298 = vpop.f32.mrb[0].mxu0
  %3299 = vmatprep.mubr.f32.mxu0 0.0
  %v3300 = vand.u32 %v2524, 4294901760
  %v3301 = vsub.f32 %v2524, %v3300
  %v3302 = vand.u32 %v3301, 4294901760
  %3303 = vmatmul.mubr.f32.gmra.mrb[0].mxu0 %v3302
  %v3304 = vpop.f32.mrb[0].mxu0
  %v3305 = vadd.f32 %v3110, %v3304
  %v3306 = vpop.f32.mrb[0].mxu0
  %3307 = vmatprep.mubr.f32.mxu0 0.0
  %v3308 = vand.u32 %v2527, 4294901760
  %v3309 = vsub.f32 %v2527, %v3308
  %v3310 = vand.u32 %v3309, 4294901760
  %3311 = vmatmul.mubr.f32.gmra.mrb[0].mxu0 %v3310
  %v3312 = vpop.f32.mrb[0].mxu0
  %v3313 = vadd.f32 %v3117, %v3312
  %v3314 = vpop.f32.mrb[0].mxu0
  %3315 = vmatprep.mubr.f32.mxu0 0.0
  %v3316 = vand.u32 %v2530, 4294901760
  %v3317 = vsub.f32 %v2530, %v3316
  %v3318 = vand.u32 %v3317, 4294901760
  %3319 = vmatmul.mubr.f32.gmra.mrb[0].mxu0 %v3318
  %v3320 = vpop.f32.mrb[0].mxu0
  %v3321 = vadd.f32 %v3124, %v3320
  %v3322 = vpop.f32.mrb[0].mxu0
  %3323 = vdwg.mxu0
  %3324 = vmatprep.subr.mxu0 0.0
  %v3325 = vand.u32 %v2472, 4294901760
  %v3326 = vsub.f32 %v2472, %v3325
  %v3327 = vand.u32 %v3326, 4294901760
  %3328 = vmatpush1.msra.mxu0 %v3327
  %3329 = vmatprep.subr.mxu0 0.0
  %v3330 = vand.u32 %v2473, 4294901760
  %v3331 = vsub.f32 %v2473, %v3330
  %v3332 = vand.u32 %v3331, 4294901760
  %3333 = vmatpush1.msra.mxu0 %v3332
  %3334 = vmatprep.subr.mxu0 0.0
  %v3335 = vand.u32 %v2474, 4294901760
  %v3336 = vsub.f32 %v2474, %v3335
  %v3337 = vand.u32 %v3336, 4294901760
  %3338 = vmatpush1.msra.mxu0 %v3337
  %3339 = vmatprep.subr.mxu0 0.0
  %v3340 = vand.u32 %v2475, 4294901760
  %v3341 = vsub.f32 %v2475, %v3340
  %v3342 = vand.u32 %v3341, 4294901760
  %3343 = vmatpush1.msra.mxu0 %v3342
  %3344 = vmatprep.subr.mxu0 0.0
  %3345 = vmatpush1.msra.mxu0 0.0
  %3346 = vmatprep.subr.mxu0 0.0
  %3347 = vmatpush1.msra.mxu0 0.0
  %3348 = vmatprep.subr.mxu0 0.0
  %3349 = vmatpush1.msra.mxu0 0.0
  %3350 = vmatprep.subr.mxu0 0.0
  %3351 = vmatpush1.msra.mxu0 0.0
  %3352 = vmatprep.subr.mxu0 0.0
  %3353 = vmatpush1.msra.mxu0 0.0
  %3354 = vmatprep.subr.mxu0 0.0
  %3355 = vmatpush1.msra.mxu0 0.0
  %3356 = vmatprep.subr.mxu0 0.0
  %3357 = vmatpush1.msra.mxu0 0.0
  %3358 = vmatprep.subr.mxu0 0.0
  %3359 = vmatpush1.msra.mxu0 0.0
  %3360 = vmatprep.subr.mxu0 0.0
  %3361 = vmatpush1.msra.mxu0 0.0
  %3362 = vmatprep.subr.mxu0 0.0
  %3363 = vmatpush1.msra.mxu0 0.0
  %3364 = vmatprep.subr.mxu0 0.0
  %3365 = vmatpush1.msra.mxu0 0.0
  %3366 = vmatprep.subr.mxu0 0.0
  %3367 = vmatpush1.msra.mxu0 0.0
  %3368 = vmatprep.subr.mxu0 0.0
  %3369 = vmatpush1.msra.mxu0 0.0
  %3370 = vmatprep.subr.mxu0 0.0
  %3371 = vmatpush1.msra.mxu0 0.0
  %3372 = vmatprep.subr.mxu0 0.0
  %3373 = vmatpush1.msra.mxu0 0.0
  %3374 = vmatprep.subr.mxu0 0.0
  %3375 = vmatpush1.msra.mxu0 0.0
  %3376 = vmatprep.subr.mxu0 0.0
  %3377 = vmatpush1.msra.mxu0 0.0
  %3378 = vmatprep.subr.mxu0 0.0
  %3379 = vmatpush1.msra.mxu0 0.0
  %3380 = vmatprep.subr.mxu0 0.0
  %3381 = vmatpush1.msra.mxu0 0.0
  %3382 = vmatprep.subr.mxu0 0.0
  %3383 = vmatpush1.msra.mxu0 0.0
  %3384 = vmatprep.subr.mxu0 0.0
  %3385 = vmatpush1.msra.mxu0 0.0
  %3386 = vmatprep.subr.mxu0 0.0
  %3387 = vmatpush1.msra.mxu0 0.0
  %3388 = vmatprep.subr.mxu0 0.0
  %3389 = vmatpush1.msra.mxu0 0.0
  %3390 = vmatprep.subr.mxu0 0.0
  %3391 = vmatpush1.msra.mxu0 0.0
  %3392 = vmatprep.subr.mxu0 0.0
  %3393 = vmatpush1.msra.mxu0 0.0
  %3394 = vmatprep.subr.mxu0 0.0
  %3395 = vmatpush1.msra.mxu0 0.0
  %3396 = vmatprep.subr.mxu0 0.0
  %3397 = vmatpush1.msra.mxu0 0.0
  %3398 = vmatprep.subr.mxu0 0.0
  %3399 = vmatpush1.msra.mxu0 0.0
  %3400 = vmatprep.mubr.f32.mxu0 0.0
  %v3401 = vand.u32 %v2485, 4294901760
  %3402 = vmatmul.mubr.f32.gmra.mrb[0].mxu0 %v3401
  %v3403 = vpop.f32.mrb[0].mxu0
  %v3404 = vadd.f32 %v3201, %v3403
  %v3405 = vpop.f32.mrb[0].mxu0
  %3406 = vmatprep.mubr.f32.mxu0 0.0
  %v3407 = vand.u32 %v2488, 4294901760
  %3408 = vmatmul.mubr.f32.gmra.mrb[0].mxu0 %v3407
  %v3409 = vpop.f32.mrb[0].mxu0
  %v3410 = vadd.f32 %v3209, %v3409
  %v3411 = vpop.f32.mrb[0].mxu0
  %3412 = vmatprep.mubr.f32.mxu0 0.0
  %v3413 = vand.u32 %v2491, 4294901760
  %3414 = vmatmul.mubr.f32.gmra.mrb[0].mxu0 %v3413
  %v3415 = vpop.f32.mrb[0].mxu0
  %v3416 = vadd.f32 %v3217, %v3415
  %v3417 = vpop.f32.mrb[0].mxu0
  %3418 = vmatprep.mubr.f32.mxu0 0.0
  %v3419 = vand.u32 %v2494, 4294901760
  %3420 = vmatmul.mubr.f32.gmra.mrb[0].mxu0 %v3419
  %v3421 = vpop.f32.mrb[0].mxu0
  %v3422 = vadd.f32 %v3225, %v3421
  %v3423 = vpop.f32.mrb[0].mxu0
  %3424 = vmatprep.mubr.f32.mxu0 0.0
  %v3425 = vand.u32 %v2497, 4294901760
  %3426 = vmatmul.mubr.f32.gmra.mrb[0].mxu0 %v3425
  %v3427 = vpop.f32.mrb[0].mxu0
  %v3428 = vadd.f32 %v3233, %v3427
  %v3429 = vpop.f32.mrb[0].mxu0
  %3430 = vmatprep.mubr.f32.mxu0 0.0
  %v3431 = vand.u32 %v2500, 4294901760
  %3432 = vmatmul.mubr.f32.gmra.mrb[0].mxu0 %v3431
  %v3433 = vpop.f32.mrb[0].mxu0
  %v3434 = vadd.f32 %v3241, %v3433
  %v3435 = vpop.f32.mrb[0].mxu0
  %3436 = vmatprep.mubr.f32.mxu0 0.0
  %v3437 = vand.u32 %v2503, 4294901760
  %3438 = vmatmul.mubr.f32.gmra.mrb[0].mxu0 %v3437
  %v3439 = vpop.f32.mrb[0].mxu0
  %v3440 = vadd.f32 %v3249, %v3439
  %v3441 = vpop.f32.mrb[0].mxu0
  %3442 = vmatprep.mubr.f32.mxu0 0.0
  %v3443 = vand.u32 %v2506, 4294901760
  %3444 = vmatmul.mubr.f32.gmra.mrb[0].mxu0 %v3443
  %v3445 = vpop.f32.mrb[0].mxu0
  %v3446 = vadd.f32 %v3257, %v3445
  %v3447 = vpop.f32.mrb[0].mxu0
  %3448 = vmatprep.mubr.f32.mxu0 0.0
  %v3449 = vand.u32 %v2509, 4294901760
  %3450 = vmatmul.mubr.f32.gmra.mrb[0].mxu0 %v3449
  %v3451 = vpop.f32.mrb[0].mxu0
  %v3452 = vadd.f32 %v3265, %v3451
  %v3453 = vpop.f32.mrb[0].mxu0
  %3454 = vmatprep.mubr.f32.mxu0 0.0
  %v3455 = vand.u32 %v2512, 4294901760
  %3456 = vmatmul.mubr.f32.gmra.mrb[0].mxu0 %v3455
  %v3457 = vpop.f32.mrb[0].mxu0
  %v3458 = vadd.f32 %v3273, %v3457
  %v3459 = vpop.f32.mrb[0].mxu0
  %3460 = vmatprep.mubr.f32.mxu0 0.0
  %v3461 = vand.u32 %v2515, 4294901760
  %3462 = vmatmul.mubr.f32.gmra.mrb[0].mxu0 %v3461
  %v3463 = vpop.f32.mrb[0].mxu0
  %v3464 = vadd.f32 %v3281, %v3463
  %v3465 = vpop.f32.mrb[0].mxu0
  %3466 = vmatprep.mubr.f32.mxu0 0.0
  %v3467 = vand.u32 %v2518, 4294901760
  %3468 = vmatmul.mubr.f32.gmra.mrb[0].mxu0 %v3467
  %v3469 = vpop.f32.mrb[0].mxu0
  %v3470 = vadd.f32 %v3289, %v3469
  %v3471 = vpop.f32.mrb[0].mxu0
  %3472 = vmatprep.mubr.f32.mxu0 0.0
  %v3473 = vand.u32 %v2521, 4294901760
  %3474 = vmatmul.mubr.f32.gmra.mrb[0].mxu0 %v3473
  %v3475 = vpop.f32.mrb[0].mxu0
  %v3476 = vadd.f32 %v3297, %v3475
  %v3477 = vpop.f32.mrb[0].mxu0
  %3478 = vmatprep.mubr.f32.mxu0 0.0
  %v3479 = vand.u32 %v2524, 4294901760
  %3480 = vmatmul.mubr.f32.gmra.mrb[0].mxu0 %v3479
  %v3481 = vpop.f32.mrb[0].mxu0
  %v3482 = vadd.f32 %v3305, %v3481
  %v3483 = vpop.f32.mrb[0].mxu0
  %3484 = vmatprep.mubr.f32.mxu0 0.0
  %v3485 = vand.u32 %v2527, 4294901760
  %3486 = vmatmul.mubr.f32.gmra.mrb[0].mxu0 %v3485
  %v3487 = vpop.f32.mrb[0].mxu0
  %v3488 = vadd.f32 %v3313, %v3487
  %v3489 = vpop.f32.mrb[0].mxu0
  %3490 = vmatprep.mubr.f32.mxu0 0.0
  %v3491 = vand.u32 %v2530, 4294901760
  %3492 = vmatmul.mubr.f32.gmra.mrb[0].mxu0 %v3491
  %v3493 = vpop.f32.mrb[0].mxu0
  %v3494 = vadd.f32 %v3321, %v3493
  %v3495 = vpop.f32.mrb[0].mxu0
  %3496 = vdwg.mxu0
  %3497 = vmatprep.subr.mxu0 0.0
  %v3498 = vand.u32 %v2472, 4294901760
  %3499 = vmatpush1.msra.mxu0 %v3498
  %3500 = vmatprep.subr.mxu0 0.0
  %v3501 = vand.u32 %v2473, 4294901760
  %3502 = vmatpush1.msra.mxu0 %v3501
  %3503 = vmatprep.subr.mxu0 0.0
  %v3504 = vand.u32 %v2474, 4294901760
  %3505 = vmatpush1.msra.mxu0 %v3504
  %3506 = vmatprep.subr.mxu0 0.0
  %v3507 = vand.u32 %v2475, 4294901760
  %3508 = vmatpush1.msra.mxu0 %v3507
  %3509 = vmatprep.subr.mxu0 0.0
  %3510 = vmatpush1.msra.mxu0 0.0
  %3511 = vmatprep.subr.mxu0 0.0
  %3512 = vmatpush1.msra.mxu0 0.0
  %3513 = vmatprep.subr.mxu0 0.0
  %3514 = vmatpush1.msra.mxu0 0.0
  %3515 = vmatprep.subr.mxu0 0.0
  %3516 = vmatpush1.msra.mxu0 0.0
  %3517 = vmatprep.subr.mxu0 0.0
  %3518 = vmatpush1.msra.mxu0 0.0
  %3519 = vmatprep.subr.mxu0 0.0
  %3520 = vmatpush1.msra.mxu0 0.0
  %3521 = vmatprep.subr.mxu0 0.0
  %3522 = vmatpush1.msra.mxu0 0.0
  %3523 = vmatprep.subr.mxu0 0.0
  %3524 = vmatpush1.msra.mxu0 0.0
  %3525 = vmatprep.subr.mxu0 0.0
  %3526 = vmatpush1.msra.mxu0 0.0
  %3527 = vmatprep.subr.mxu0 0.0
  %3528 = vmatpush1.msra.mxu0 0.0
  %3529 = vmatprep.subr.mxu0 0.0
  %3530 = vmatpush1.msra.mxu0 0.0
  %3531 = vmatprep.subr.mxu0 0.0
  %3532 = vmatpush1.msra.mxu0 0.0
  %3533 = vmatprep.subr.mxu0 0.0
  %3534 = vmatpush1.msra.mxu0 0.0
  %3535 = vmatprep.subr.mxu0 0.0
  %3536 = vmatpush1.msra.mxu0 0.0
  %3537 = vmatprep.subr.mxu0 0.0
  %3538 = vmatpush1.msra.mxu0 0.0
  %3539 = vmatprep.subr.mxu0 0.0
  %3540 = vmatpush1.msra.mxu0 0.0
  %3541 = vmatprep.subr.mxu0 0.0
  %3542 = vmatpush1.msra.mxu0 0.0
  %3543 = vmatprep.subr.mxu0 0.0
  %3544 = vmatpush1.msra.mxu0 0.0
  %3545 = vmatprep.subr.mxu0 0.0
  %3546 = vmatpush1.msra.mxu0 0.0
  %3547 = vmatprep.subr.mxu0 0.0
  %3548 = vmatpush1.msra.mxu0 0.0
  %3549 = vmatprep.subr.mxu0 0.0
  %3550 = vmatpush1.msra.mxu0 0.0
  %3551 = vmatprep.subr.mxu0 0.0
  %3552 = vmatpush1.msra.mxu0 0.0
  %3553 = vmatprep.subr.mxu0 0.0
  %3554 = vmatpush1.msra.mxu0 0.0
  %3555 = vmatprep.subr.mxu0 0.0
  %3556 = vmatpush1.msra.mxu0 0.0
  %3557 = vmatprep.subr.mxu0 0.0
  %3558 = vmatpush1.msra.mxu0 0.0
  %3559 = vmatprep.subr.mxu0 0.0
  %3560 = vmatpush1.msra.mxu0 0.0
  %3561 = vmatprep.subr.mxu0 0.0
  %3562 = vmatpush1.msra.mxu0 0.0
  %3563 = vmatprep.subr.mxu0 0.0
  %3564 = vmatpush1.msra.mxu0 0.0
  %3565 = vmatprep.mubr.f32.mxu0 0.0
  %v3566 = vand.u32 %v2485, 4294901760
  %3567 = vmatmul.mubr.f32.gmra.mrb[0].mxu0 %v3566
  %v3568 = vpop.f32.mrb[0].mxu0
  %v3569 = vadd.f32 %v3404, %v3568
  %v3570 = vpop.f32.mrb[0].mxu0
  %3571 = vmatprep.mubr.f32.mxu0 0.0
  %v3572 = vand.u32 %v2488, 4294901760
  %3573 = vmatmul.mubr.f32.gmra.mrb[0].mxu0 %v3572
  %v3574 = vpop.f32.mrb[0].mxu0
  %v3575 = vadd.f32 %v3410, %v3574
  %v3576 = vpop.f32.mrb[0].mxu0
  %3577 = vmatprep.mubr.f32.mxu0 0.0
  %v3578 = vand.u32 %v2491, 4294901760
  %3579 = vmatmul.mubr.f32.gmra.mrb[0].mxu0 %v3578
  %v3580 = vpop.f32.mrb[0].mxu0
  %v3581 = vadd.f32 %v3416, %v3580
  %v3582 = vpop.f32.mrb[0].mxu0
  %3583 = vmatprep.mubr.f32.mxu0 0.0
  %v3584 = vand.u32 %v2494, 4294901760
  %3585 = vmatmul.mubr.f32.gmra.mrb[0].mxu0 %v3584
  %v3586 = vpop.f32.mrb[0].mxu0
  %v3587 = vadd.f32 %v3422, %v3586
  %v3588 = vpop.f32.mrb[0].mxu0
  %3589 = vmatprep.mubr.f32.mxu0 0.0
  %v3590 = vand.u32 %v2497, 4294901760
  %3591 = vmatmul.mubr.f32.gmra.mrb[0].mxu0 %v3590
  %v3592 = vpop.f32.mrb[0].mxu0
  %v3593 = vadd.f32 %v3428, %v3592
  %v3594 = vpop.f32.mrb[0].mxu0
  %3595 = vmatprep.mubr.f32.mxu0 0.0
  %v3596 = vand.u32 %v2500, 4294901760
  %3597 = vmatmul.mubr.f32.gmra.mrb[0].mxu0 %v3596
  %v3598 = vpop.f32.mrb[0].mxu0
  %v3599 = vadd.f32 %v3434, %v3598
  %v3600 = vpop.f32.mrb[0].mxu0
  %3601 = vmatprep.mubr.f32.mxu0 0.0
  %v3602 = vand.u32 %v2503, 4294901760
  %3603 = vmatmul.mubr.f32.gmra.mrb[0].mxu0 %v3602
  %v3604 = vpop.f32.mrb[0].mxu0
  %v3605 = vadd.f32 %v3440, %v3604
  %v3606 = vpop.f32.mrb[0].mxu0
  %3607 = vmatprep.mubr.f32.mxu0 0.0
  %v3608 = vand.u32 %v2506, 4294901760
  %3609 = vmatmul.mubr.f32.gmra.mrb[0].mxu0 %v3608
  %v3610 = vpop.f32.mrb[0].mxu0
  %v3611 = vadd.f32 %v3446, %v3610
  %v3612 = vpop.f32.mrb[0].mxu0
  %3613 = vmatprep.mubr.f32.mxu0 0.0
  %v3614 = vand.u32 %v2509, 4294901760
  %3615 = vmatmul.mubr.f32.gmra.mrb[0].mxu0 %v3614
  %v3616 = vpop.f32.mrb[0].mxu0
  %v3617 = vadd.f32 %v3452, %v3616
  %v3618 = vpop.f32.mrb[0].mxu0
  %3619 = vmatprep.mubr.f32.mxu0 0.0
  %v3620 = vand.u32 %v2512, 4294901760
  %3621 = vmatmul.mubr.f32.gmra.mrb[0].mxu0 %v3620
  %v3622 = vpop.f32.mrb[0].mxu0
  %v3623 = vadd.f32 %v3458, %v3622
  %v3624 = vpop.f32.mrb[0].mxu0
  %3625 = vmatprep.mubr.f32.mxu0 0.0
  %v3626 = vand.u32 %v2515, 4294901760
  %3627 = vmatmul.mubr.f32.gmra.mrb[0].mxu0 %v3626
  %v3628 = vpop.f32.mrb[0].mxu0
  %v3629 = vadd.f32 %v3464, %v3628
  %v3630 = vpop.f32.mrb[0].mxu0
  %3631 = vmatprep.mubr.f32.mxu0 0.0
  %v3632 = vand.u32 %v2518, 4294901760
  %3633 = vmatmul.mubr.f32.gmra.mrb[0].mxu0 %v3632
  %v3634 = vpop.f32.mrb[0].mxu0
  %v3635 = vadd.f32 %v3470, %v3634
  %v3636 = vpop.f32.mrb[0].mxu0
  %3637 = vmatprep.mubr.f32.mxu0 0.0
  %v3638 = vand.u32 %v2521, 4294901760
  %3639 = vmatmul.mubr.f32.gmra.mrb[0].mxu0 %v3638
  %v3640 = vpop.f32.mrb[0].mxu0
  %v3641 = vadd.f32 %v3476, %v3640
  %v3642 = vpop.f32.mrb[0].mxu0
  %3643 = vmatprep.mubr.f32.mxu0 0.0
  %v3644 = vand.u32 %v2524, 4294901760
  %3645 = vmatmul.mubr.f32.gmra.mrb[0].mxu0 %v3644
  %v3646 = vpop.f32.mrb[0].mxu0
  %v3647 = vadd.f32 %v3482, %v3646
  %v3648 = vpop.f32.mrb[0].mxu0
  %3649 = vmatprep.mubr.f32.mxu0 0.0
  %v3650 = vand.u32 %v2527, 4294901760
  %3651 = vmatmul.mubr.f32.gmra.mrb[0].mxu0 %v3650
  %v3652 = vpop.f32.mrb[0].mxu0
  %v3653 = vadd.f32 %v3488, %v3652
  %v3654 = vpop.f32.mrb[0].mxu0
  %3655 = vmatprep.mubr.f32.mxu0 0.0
  %v3656 = vand.u32 %v2530, 4294901760
  %3657 = vmatmul.mubr.f32.gmra.mrb[0].mxu0 %v3656
  %v3658 = vpop.f32.mrb[0].mxu0
  %v3659 = vadd.f32 %v3494, %v3658
  %v3660 = vpop.f32.mrb[0].mxu0
  %3661 = vdwg.mxu0
  %vm3662 = vcmask 130048
  %3663 = vst.msk [vmem:[%s7] sm:$0xff] %vm3662, %v3569
  %3664 = vst.msk [vmem:[%s7 + $0x8] sm:$0xff] %vm3662, %v3575
  %3665 = vst.msk [vmem:[%s7 + $0x10] sm:$0xff] %vm3662, %v3581
  %3666 = vst.msk [vmem:[%s7 + $0x18] sm:$0xff] %vm3662, %v3587
  %3667 = vst.msk [vmem:[%s7 + $0x20] sm:$0xff] %vm3662, %v3593
  %3668 = vst.msk [vmem:[%s7 + $0x28] sm:$0xff] %vm3662, %v3599
  %3669 = vst.msk [vmem:[%s7 + $0x30] sm:$0xff] %vm3662, %v3605
  %3670 = vst.msk [vmem:[%s7 + $0x38] sm:$0xff] %vm3662, %v3611
  %3671 = vst.msk [vmem:[%s7 + $0x40] sm:$0xff] %vm3662, %v3617
  %3672 = vst.msk [vmem:[%s7 + $0x48] sm:$0xff] %vm3662, %v3623
  %3673 = vst.msk [vmem:[%s7 + $0x50] sm:$0xff] %vm3662, %v3629
  %3674 = vst.msk [vmem:[%s7 + $0x58] sm:$0xff] %vm3662, %v3635
  %3675 = vst.msk [vmem:[%s7 + $0x60] sm:$0xff] %vm3662, %v3641
  %3676 = vst.msk [vmem:[%s7 + $0x68] sm:$0xff] %vm3662, %v3647
  %3677 = vst.msk [vmem:[%s7 + $0x70] sm:$0xff] %vm3662, %v3653
  %3678 = vst.msk [vmem:[%s7 + $0x78] sm:$0xff] %vm3662, %v3659
  // Predicated region
  $region30: #{tpu_custom_call.1} parent=0 // pred_check
    _
  $region31: #{tpu_custom_call.1} parent=0 // pred_check_branch
    %3680 = sbr.rel (0) target = $region33
  $region32: #{tpu_custom_call.1} parent=0 // pred_region
    _
  $region33: #{tpu_custom_call.1} parent=0 // pred_fallthru
    _
  // Predicated region
  $region34: #{tpu_custom_call.1} parent=0 // pred_check
    _
  $region35: #{tpu_custom_call.1} parent=0 // pred_check_branch
    %3682 = sbr.rel (0) target = $region37
  $region36: #{tpu_custom_call.1} parent=0 // pred_region
    _
  $region37: #{tpu_custom_call.1} parent=0 // pred_fallthru
    _

</llo_original>
